<compile_context>
chip_gen: v5e
topology: v5e:2x2
jax: 0.10.0
libtpu: 0.0.40
codegen_flags: <defaults>
</compile_context>

<pallas_src>
import jax
import jax.numpy as jnp
from jax import lax
from jax.experimental import pallas as pl
from jax.experimental.pallas import tpu as pltpu

SHARD_B = 8  # one sublane tile of batch rows per grid step / TensorCore shard


# ---------------------------------------------------------------------------
# Fused kernel factory (static shapes baked in).
# ---------------------------------------------------------------------------
def make_fused_kernel(S, T, SB, H, V2, L):

    def lstm_stack(Tl, x2d, layer_refs, init_states, pool_mask=None):
        """L stacked LSTM layers over Tl statically-unrolled timesteps.

        Weights/bias are pre-permuted to gate order [i | f | o | g]:
        one sigmoid over (SB, 3H), one tanh over (SB, H) per step.

        Layer 0: hoisted time-parallel input projection (one big matmul).
        Layers >= 1: per-step input projection from the previous layer's h(t)
        so independent layer pipelines can be wavefront-overlapped by the
        scheduler (only h@Whh remains on each layer's serial chain).
        """
        finals = []
        pooled = None
        prev_h = None
        for l, (wih_ref, whh_ref, b_ref) in enumerate(layer_refs):
            is_last = l == len(layer_refs) - 1
            wih = wih_ref[...]
            whh = whh_ref[...]
            b = b_ref[...]
            h, c = init_states[l]
            if l == 0:
                gproj = jnp.dot(x2d, wih, preferred_element_type=jnp.float32) + b
            outs = []
            if is_last and pool_mask is not None:
                pooled = jnp.zeros((SB, H), jnp.float32)
            for t in range(Tl):                      # static unroll (Tl <= 8 here)
                if l == 0:
                    g_in = gproj[t * SB:(t + 1) * SB, :]          # 8-aligned slice
                else:
                    g_in = jnp.dot(prev_h[t], wih,
                                   preferred_element_type=jnp.float32) + b
                gates = g_in + jnp.dot(h, whh, preferred_element_type=jnp.float32)
                sig = jax.nn.sigmoid(gates[:, :3 * H])            # [i | f | o] slab
                g_g = jnp.tanh(gates[:, 3 * H:])
                c = sig[:, H:2 * H] * c + sig[:, :H] * g_g
                h = sig[:, 2 * H:3 * H] * jnp.tanh(c)
                if is_last and pool_mask is not None:
                    # fused masked time-pool (pack_padded + out.sum(1) semantics)
                    pooled = pooled + pool_mask[t * SB:(t + 1) * SB, :] * h
                else:
                    outs.append(h)
            finals.append((h, c))
            prev_h = outs
        return finals, pooled

    def kernel(*refs):
        it = iter(refs)
        src_ref = next(it)                                     # (S*SB, I)  f32
        dec_ref = next(it)                                     # (T*SB, E)  f32
        pmask_ref = next(it)                                   # (T*SB, 1)  f32
        valid_ref = next(it)                                   # (SB, 1)    f32
        enc_layers = [(next(it), next(it), next(it)) for _ in range(L)]
        dec_layers = [(next(it), next(it), next(it)) for _ in range(L)]
        w1_ref, b1_ref, w2_ref, b2_ref, w3_ref, b3_ref = [next(it) for _ in range(6)]
        endoh_ref = next(it)                                   # (1, V2)
        loss_ref = next(it)                                    # out (1, 1) partial sum

        zeros = jnp.zeros((SB, H), jnp.float32)

        # ------------------------------ encoder ------------------------------
        enc_finals, _ = lstm_stack(S, src_ref[...], enc_layers, [(zeros, zeros)] * L)

        # ------------- decoder (init = encoder final states) + masked pool ---
        _, pooled = lstm_stack(T, dec_ref[...], dec_layers, enc_finals,
                               pool_mask=pmask_ref[...])       # pooled: (SB, H)

        # ------------- head: 3x Linear, softmax, CE(softmax probs, End) ------
        x = jnp.dot(pooled, w1_ref[...], preferred_element_type=jnp.float32) + b1_ref[...]
        x = jnp.dot(x, w2_ref[...], preferred_element_type=jnp.float32) + b2_ref[...]
        logits = jnp.dot(x, w3_ref[...], preferred_element_type=jnp.float32) + b3_ref[...]

        m = jnp.max(logits, axis=-1, keepdims=True)
        e = jnp.exp(logits - m)
        scores = e * pl.reciprocal(jnp.sum(e, axis=-1, keepdims=True), approx=True)

        # nn.CrossEntropyLoss applied to the softmax *probabilities* (as the module does).
        m2 = jnp.max(scores, axis=-1, keepdims=True)
        lse = jnp.log(jnp.sum(jnp.exp(scores - m2), axis=-1, keepdims=True)) + m2
        tgt = jnp.sum(scores * endoh_ref[...], axis=-1, keepdims=True)
        per_ex = (lse - tgt) * valid_ref[...]                  # mask padded batch rows
        loss_ref[...] = jnp.sum(per_ex, axis=0, keepdims=True)  # per-shard partial sum

    return kernel


# ---------------------------------------------------------------------------
# Wrapper: one pallas_call (grid over batch shards) for the full forward.
# ---------------------------------------------------------------------------
def forward_pallas(params, source_bsf, tgt_ids_bt, lengths_b):
    B, S, I = source_bsf.shape
    _, T = tgt_ids_bt.shape
    L = len(params["enc"])
    H = params["enc"][0][1].shape[0]
    V2, E = params["emb"].shape

    SB = SHARD_B
    B_pad = ((B + SB - 1) // SB) * SB
    G = B_pad // SB
    pad = B_pad - B

    # ---- pad batch to a whole number of sublane tiles (masked out of the loss) ----
    src_p = jnp.pad(source_bsf.astype(jnp.float32), ((0, pad), (0, 0), (0, 0)))
    ids_p = jnp.pad(tgt_ids_bt.astype(jnp.int32), ((0, pad), (0, 0)))
    len_p = jnp.pad(lengths_b.astype(jnp.int32), ((0, pad),))

    # ---- embedding gather wrapper-side (exact); kernel gets dec_x0 directly ----
    dec_x0 = jnp.take(params["emb"].astype(jnp.float32), ids_p, axis=0)  # (B_pad, T, E)

    # ---- per-shard, time-major, flattened layouts (sublane/lane aligned) ----
    def shard_time_major(x_btf):
        Bp, Tl, F = x_btf.shape
        x = jnp.transpose(x_btf, (1, 0, 2)).reshape(Tl, G, SB, F)
        return jnp.transpose(x, (1, 0, 2, 3)).reshape(G, Tl * SB, F)

    src3 = shard_time_major(src_p)                      # (G, S*SB, I)
    dec3 = shard_time_major(dec_x0)                     # (G, T*SB, E)

    # ---- pooling mask (t < len) and valid-row mask, hoisted out of the step loop ----
    pmask_bt = (jnp.arange(T)[None, :] < len_p[:, None]).astype(jnp.float32)
    pmask3 = shard_time_major(pmask_bt[..., None])      # (G, T*SB, 1)
    valid3 = (jnp.arange(B_pad) < B).astype(jnp.float32).reshape(G, SB, 1)

    # ---- gate-column permutation [i|f|g|o] -> [i|f|o|g] (one sigmoid slab + one tanh) ----
    def permute_gates(w):
        Hh = w.shape[-1] // 4
        return jnp.concatenate(
            [w[..., :2 * Hh], w[..., 3 * Hh:], w[..., 2 * Hh:3 * Hh]], axis=-1)

    def permute_layer(lay):
        wih, whh, b = lay
        return (permute_gates(wih), permute_gates(whh), permute_gates(b))

    enc_l = [permute_layer(lay) for lay in params["enc"]]
    dec_l = [permute_layer(lay) for lay in params["dec"]]

    inputs = [src3, dec3, pmask3, valid3]
    for lay in enc_l:
        inputs.extend(lay)
    for lay in dec_l:
        inputs.extend(lay)
    inputs.extend(params["fc"])
    inputs.append(params["end_onehot"])

    def full_spec(a):
        nd = a.ndim
        return pl.BlockSpec(a.shape, lambda g, _n=nd: (0,) * _n)

    in_specs = [
        pl.BlockSpec((None, S * SB, I), lambda g: (g, 0, 0)),
        pl.BlockSpec((None, T * SB, E), lambda g: (g, 0, 0)),
        pl.BlockSpec((None, T * SB, 1), lambda g: (g, 0, 0)),
        pl.BlockSpec((None, SB, 1), lambda g: (g, 0, 0)),
    ] + [full_spec(a) for a in inputs[4:]]

    partial = pl.pallas_call(
        make_fused_kernel(S, T, SB, H, V2, L),
        out_shape=jax.ShapeDtypeStruct((G, 1, 1), jnp.float32),
        grid=(G,),
        in_specs=in_specs,
        out_specs=pl.BlockSpec((None, 1, 1), lambda g: (g, 0, 0)),
        compiler_params=pltpu.CompilerParams(
            dimension_semantics=("parallel",),          # batch shards -> v7x megacore
            vmem_limit_bytes=32 * 1024 * 1024),
    )(*inputs)

    return jnp.sum(partial) / B                          # mean over the REAL batch


# ---------------------------------------------------------------------------
# Pure-JAX reference (lax.scan LSTM, original PyTorch gate order) for checking.
# ---------------------------------------------------------------------------
def lstm_layer_ref(x_tbi, wih, whh, b, h0, c0):
    def step(carry, x_t):
        h, c = carry
        gates = x_t @ wih + h @ whh + b[0]
        H = h.shape[-1]
        i = jax.nn.sigmoid(gates[:, 0 * H:1 * H])
        f = jax.nn.sigmoid(gates[:, 1 * H:2 * H])
        g = jnp.tanh(gates[:, 2 * H:3 * H])
        o = jax.nn.sigmoid(gates[:, 3 * H:4 * H])
        c = f * c + i * g
        h = o * jnp.tanh(c)
        return (h, c), h

    (hT, cT), out = lax.scan(step, (h0, c0), x_tbi)
    return out, hT, cT


def forward_ref(params, source_bsf, tgt_ids_bt, lengths_b):
    B, S, I = source_bsf.shape
    L = len(params["enc"])
    H = params["enc"][0][1].shape[0]
    src_tbi = jnp.transpose(source_bsf, (1, 0, 2))

    def run_stack(x, layer_params, h0, c0):
        inp = x
        hs, cs = [], []
        for l, (wih, whh, b) in enumerate(layer_params):
            inp, hT, cT = lstm_layer_ref(inp, wih, whh, b, h0[l], c0[l])
            hs.append(hT)
            cs.append(cT)
        return inp, jnp.stack(hs), jnp.stack(cs)

    zeros = jnp.zeros((L, B, H), jnp.float32)
    _, h_enc, c_enc = run_stack(src_tbi, params["enc"], zeros, zeros)
    emb_tbe = jnp.transpose(jnp.take(params["emb"], tgt_ids_bt, axis=0), (1, 0, 2))
    dec_out, _, _ = run_stack(emb_tbe, params["dec"], h_enc, c_enc)

    T = emb_tbe.shape[0]
    mask = (jnp.arange(T)[:, None] < lengths_b[None, :]).astype(jnp.float32)[..., None]
    pooled = jnp.sum(dec_out * mask, axis=0)
    w1, b1, w2, b2, w3, b3 = params["fc"]
    logits = ((pooled @ w1 + b1) @ w2 + b2) @ w3 + b3
    scores = jax.nn.softmax(logits, axis=-1)
    logp = jax.nn.log_softmax(scores, axis=-1)
    return -jnp.mean(jnp.sum(logp * params["end_onehot"], axis=-1))


# ---------------------------------------------------------------------------
if __name__ == "__main__":
    # Hyperparameters (kwargs of the module).
    input_size = 8          # source feature dim
    rnn_n_hidden = 32
    rnn_n_layers = 2
    embedding_dim = 16
    vocab = [chr(ord("a") + i) for i in range(10)]     # output_size = 10
    output_size = len(vocab)
    V2 = output_size + 2                               # +Start, +End
    B, S = 2, 8

    full_vocab = ["Start"] + vocab + ["End"]
    token_to_idx = {tk: i for i, tk in enumerate(full_vocab)}
    end_idx = token_to_idx["End"]

    # Deterministic parameter init.
    key = jax.random.PRNGKey(0)

    def nxt():
        global key
        key, sub = jax.random.split(key)
        return sub

    def init(shape, scale=0.1):
        return scale * jax.random.normal(nxt(), shape, dtype=jnp.float32)

    def make_lstm_params(n_layers, in_dim, hidden):
        layers = []
        for l in range(n_layers):
            d_in = in_dim if l == 0 else hidden
            wih = init((d_in, 4 * hidden))
            whh = init((hidden, 4 * hidden))
            b = init((1, 4 * hidden))      # bias_ih + bias_hh combined
            layers.append((wih, whh, b))
        return layers

    params = {
        "enc": make_lstm_params(rnn_n_layers, input_size, rnn_n_hidden),
        "dec": make_lstm_params(rnn_n_layers, embedding_dim, rnn_n_hidden),
        "emb": init((V2, embedding_dim), scale=1.0),
        "fc": (
            init((rnn_n_hidden, 5 * rnn_n_hidden)), init((1, 5 * rnn_n_hidden)),
            init((5 * rnn_n_hidden, 2 * rnn_n_hidden)), init((1, 2 * rnn_n_hidden)),
            init((2 * rnn_n_hidden, V2)), init((1, V2)),
        ),
        "end_onehot": jax.nn.one_hot(end_idx, V2, dtype=jnp.float32)[None, :],
    }

    # Example inputs.
    source = jax.random.normal(nxt(), (B, S, input_size), dtype=jnp.float32)
    targets = [["a", "b", "c"], ["d", "e", "f", "g", "h"]]
    lengths = [len(tg) + 2 for tg in targets]
    max_len = max(lengths) - 2
    T = max_len + 2
    tgt_ids = []
    for tg in targets:
        toks = ["Start"] + tg + ["End"] + ["End"] * (max_len - len(tg))
        tgt_ids.append([token_to_idx[t] for t in toks])
    tgt_ids = jnp.array(tgt_ids, dtype=jnp.int32)            # (B, T)
    lengths_b = jnp.array(lengths, dtype=jnp.int32)          # (B,)

    fwd = jax.jit(forward_pallas)
    loss = jax.block_until_ready(fwd(params, source, tgt_ids, lengths_b))

    loss_ref = jax.block_until_ready(forward_ref(params, source, tgt_ids, lengths_b))
    assert jnp.isfinite(loss), "non-finite loss from Pallas kernel"
    assert jnp.allclose(loss, loss_ref, rtol=2e-3, atol=1e-3), (loss, loss_ref)

    print("KERNEL_OK")
</pallas_src>

<mosaic_0001>
module attributes {stable_mosaic.version = 11 : i64} {
  func.func @kernel(%arg0: i32, %arg1: memref<1x64x8xf32, #tpu.memory_space<vmem>>, %arg2: memref<1x56x16xf32, #tpu.memory_space<vmem>>, %arg3: memref<1x56x1xf32, #tpu.memory_space<vmem>>, %arg4: memref<1x8x1xf32, #tpu.memory_space<vmem>>, %arg5: memref<8x128xf32, #tpu.memory_space<vmem>>, %arg6: memref<32x128xf32, #tpu.memory_space<vmem>>, %arg7: memref<1x128xf32, #tpu.memory_space<vmem>>, %arg8: memref<32x128xf32, #tpu.memory_space<vmem>>, %arg9: memref<32x128xf32, #tpu.memory_space<vmem>>, %arg10: memref<1x128xf32, #tpu.memory_space<vmem>>, %arg11: memref<16x128xf32, #tpu.memory_space<vmem>>, %arg12: memref<32x128xf32, #tpu.memory_space<vmem>>, %arg13: memref<1x128xf32, #tpu.memory_space<vmem>>, %arg14: memref<32x128xf32, #tpu.memory_space<vmem>>, %arg15: memref<32x128xf32, #tpu.memory_space<vmem>>, %arg16: memref<1x128xf32, #tpu.memory_space<vmem>>, %arg17: memref<32x160xf32, #tpu.memory_space<vmem>>, %arg18: memref<1x160xf32, #tpu.memory_space<vmem>>, %arg19: memref<160x64xf32, #tpu.memory_space<vmem>>, %arg20: memref<1x64xf32, #tpu.memory_space<vmem>>, %arg21: memref<64x12xf32, #tpu.memory_space<vmem>>, %arg22: memref<1x12xf32, #tpu.memory_space<vmem>>, %arg23: memref<1x12xf32, #tpu.memory_space<vmem>>, %arg24: memref<1x1x1xf32, #tpu.memory_space<vmem>>) attributes {dimension_semantics = [#tpu.dimension_semantics<parallel>], iteration_bounds = array<i64: 1>, scalar_prefetch = 0 : i64, scratch_operands = 0 : i64, tpu.core_type = #tpu.core_type<tc>, window_params = [{transform_indices = @transform_0, window_bounds = array<i64: 1, 64, 8>}, {transform_indices = @transform_1, window_bounds = array<i64: 1, 56, 16>}, {transform_indices = @transform_2, window_bounds = array<i64: 1, 56, 1>}, {transform_indices = @transform_3, window_bounds = array<i64: 1, 8, 1>}, {pipeline_mode = #tpu.pipeline_mode<synchronous>, transform_indices = @transform_4, window_bounds = array<i64: 8, 128>}, {pipeline_mode = #tpu.pipeline_mode<synchronous>, transform_indices = @transform_5, window_bounds = array<i64: 32, 128>}, {pipeline_mode = #tpu.pipeline_mode<synchronous>, transform_indices = @transform_6, window_bounds = array<i64: 1, 128>}, {pipeline_mode = #tpu.pipeline_mode<synchronous>, transform_indices = @transform_7, window_bounds = array<i64: 32, 128>}, {pipeline_mode = #tpu.pipeline_mode<synchronous>, transform_indices = @transform_8, window_bounds = array<i64: 32, 128>}, {pipeline_mode = #tpu.pipeline_mode<synchronous>, transform_indices = @transform_9, window_bounds = array<i64: 1, 128>}, {pipeline_mode = #tpu.pipeline_mode<synchronous>, transform_indices = @transform_10, window_bounds = array<i64: 16, 128>}, {pipeline_mode = #tpu.pipeline_mode<synchronous>, transform_indices = @transform_11, window_bounds = array<i64: 32, 128>}, {pipeline_mode = #tpu.pipeline_mode<synchronous>, transform_indices = @transform_12, window_bounds = array<i64: 1, 128>}, {pipeline_mode = #tpu.pipeline_mode<synchronous>, transform_indices = @transform_13, window_bounds = array<i64: 32, 128>}, {pipeline_mode = #tpu.pipeline_mode<synchronous>, transform_indices = @transform_14, window_bounds = array<i64: 32, 128>}, {pipeline_mode = #tpu.pipeline_mode<synchronous>, transform_indices = @transform_15, window_bounds = array<i64: 1, 128>}, {pipeline_mode = #tpu.pipeline_mode<synchronous>, transform_indices = @transform_16, window_bounds = array<i64: 32, 160>}, {pipeline_mode = #tpu.pipeline_mode<synchronous>, transform_indices = @transform_17, window_bounds = array<i64: 1, 160>}, {pipeline_mode = #tpu.pipeline_mode<synchronous>, transform_indices = @transform_18, window_bounds = array<i64: 160, 64>}, {pipeline_mode = #tpu.pipeline_mode<synchronous>, transform_indices = @transform_19, window_bounds = array<i64: 1, 64>}, {pipeline_mode = #tpu.pipeline_mode<synchronous>, transform_indices = @transform_20, window_bounds = array<i64: 64, 12>}, {pipeline_mode = #tpu.pipeline_mode<synchronous>, transform_indices = @transform_21, window_bounds = array<i64: 1, 12>}, {pipeline_mode = #tpu.pipeline_mode<synchronous>, transform_indices = @transform_22, window_bounds = array<i64: 1, 12>}, {transform_indices = @transform_23, window_bounds = array<i64: 1, 1, 1>}]} {
    %cst = arith.constant 0.000000e+00 : f32
    %0 = vector.broadcast %cst : f32 to vector<8x32xf32>
    %c0 = arith.constant 0 : index
    %c0_0 = arith.constant 0 : index
    %c0_1 = arith.constant 0 : index
    %1 = vector.load %arg1[%c0, %c0_0, %c0_1] : memref<1x64x8xf32, #tpu.memory_space<vmem>>, vector<1x64x8xf32>
    %2 = vector.shape_cast %1 : vector<1x64x8xf32> to vector<64x8xf32>
    %c0_2 = arith.constant 0 : index
    %c0_3 = arith.constant 0 : index
    %3 = vector.load %arg5[%c0_2, %c0_3] : memref<8x128xf32, #tpu.memory_space<vmem>>, vector<8x128xf32>
    %c0_4 = arith.constant 0 : index
    %c0_5 = arith.constant 0 : index
    %4 = vector.load %arg6[%c0_4, %c0_5] : memref<32x128xf32, #tpu.memory_space<vmem>>, vector<32x128xf32>
    %c0_6 = arith.constant 0 : index
    %c0_7 = arith.constant 0 : index
    %5 = vector.load %arg7[%c0_6, %c0_7] : memref<1x128xf32, #tpu.memory_space<vmem>>, vector<1x128xf32>
    %cst_8 = arith.constant dense<0.000000e+00> : vector<64x128xf32>
    %6 = tpu.matmul %2, %3, %cst_8 {dimension_numbers = #tpu.dot_dimension_numbers<[1], [0], [0], [1], [0, 0, 1, 1], [], []>} : vector<64x8xf32>, vector<8x128xf32>, vector<64x128xf32> -> vector<64x128xf32>
    %7 = vector.broadcast %5 : vector<1x128xf32> to vector<64x128xf32>
    %8 = arith.addf %6, %7 : vector<64x128xf32>
    %9 = vector.extract_strided_slice %8 {offsets = [0, 0], sizes = [8, 128], strides = [1, 1]} : vector<64x128xf32> to vector<8x128xf32>
    %cst_9 = arith.constant dense<0.000000e+00> : vector<8x128xf32>
    %10 = tpu.matmul %0, %4, %cst_9 {dimension_numbers = #tpu.dot_dimension_numbers<[1], [0], [0], [1], [0, 0, 1, 1], [], []>} : vector<8x32xf32>, vector<32x128xf32>, vector<8x128xf32> -> vector<8x128xf32>
    %11 = arith.addf %9, %10 : vector<8x128xf32>
    %12 = vector.extract_strided_slice %11 {offsets = [0, 0], sizes = [8, 96], strides = [1, 1]} : vector<8x128xf32> to vector<8x96xf32>
    %13 = arith.negf %12 : vector<8x96xf32>
    %14 = math.exp %13 : vector<8x96xf32>
    %cst_10 = arith.constant 1.000000e+00 : f32
    %15 = vector.broadcast %cst_10 : f32 to vector<8x96xf32>
    %16 = arith.addf %15, %14 : vector<8x96xf32>
    %17 = arith.divf %15, %16 : vector<8x96xf32>
    %18 = vector.extract_strided_slice %11 {offsets = [0, 96], sizes = [8, 32], strides = [1, 1]} : vector<8x128xf32> to vector<8x32xf32>
    %19 = math.tanh %18 : vector<8x32xf32>
    %20 = vector.extract_strided_slice %17 {offsets = [0, 32], sizes = [8, 32], strides = [1, 1]} : vector<8x96xf32> to vector<8x32xf32>
    %21 = arith.mulf %20, %0 : vector<8x32xf32>
    %22 = vector.extract_strided_slice %17 {offsets = [0, 0], sizes = [8, 32], strides = [1, 1]} : vector<8x96xf32> to vector<8x32xf32>
    %23 = arith.mulf %22, %19 : vector<8x32xf32>
    %24 = arith.addf %21, %23 : vector<8x32xf32>
    %25 = vector.extract_strided_slice %17 {offsets = [0, 64], sizes = [8, 32], strides = [1, 1]} : vector<8x96xf32> to vector<8x32xf32>
    %26 = math.tanh %24 : vector<8x32xf32>
    %27 = arith.mulf %25, %26 : vector<8x32xf32>
    %28 = vector.extract_strided_slice %8 {offsets = [8, 0], sizes = [8, 128], strides = [1, 1]} : vector<64x128xf32> to vector<8x128xf32>
    %cst_11 = arith.constant dense<0.000000e+00> : vector<8x128xf32>
    %29 = tpu.matmul %27, %4, %cst_11 {dimension_numbers = #tpu.dot_dimension_numbers<[1], [0], [0], [1], [0, 0, 1, 1], [], []>} : vector<8x32xf32>, vector<32x128xf32>, vector<8x128xf32> -> vector<8x128xf32>
    %30 = arith.addf %28, %29 : vector<8x128xf32>
    %31 = vector.extract_strided_slice %30 {offsets = [0, 0], sizes = [8, 96], strides = [1, 1]} : vector<8x128xf32> to vector<8x96xf32>
    %32 = arith.negf %31 : vector<8x96xf32>
    %33 = math.exp %32 : vector<8x96xf32>
    %cst_12 = arith.constant 1.000000e+00 : f32
    %34 = vector.broadcast %cst_12 : f32 to vector<8x96xf32>
    %35 = arith.addf %34, %33 : vector<8x96xf32>
    %36 = arith.divf %34, %35 : vector<8x96xf32>
    %37 = vector.extract_strided_slice %30 {offsets = [0, 96], sizes = [8, 32], strides = [1, 1]} : vector<8x128xf32> to vector<8x32xf32>
    %38 = math.tanh %37 : vector<8x32xf32>
    %39 = vector.extract_strided_slice %36 {offsets = [0, 32], sizes = [8, 32], strides = [1, 1]} : vector<8x96xf32> to vector<8x32xf32>
    %40 = arith.mulf %39, %24 : vector<8x32xf32>
    %41 = vector.extract_strided_slice %36 {offsets = [0, 0], sizes = [8, 32], strides = [1, 1]} : vector<8x96xf32> to vector<8x32xf32>
    %42 = arith.mulf %41, %38 : vector<8x32xf32>
    %43 = arith.addf %40, %42 : vector<8x32xf32>
    %44 = vector.extract_strided_slice %36 {offsets = [0, 64], sizes = [8, 32], strides = [1, 1]} : vector<8x96xf32> to vector<8x32xf32>
    %45 = math.tanh %43 : vector<8x32xf32>
    %46 = arith.mulf %44, %45 : vector<8x32xf32>
    %47 = vector.extract_strided_slice %8 {offsets = [16, 0], sizes = [8, 128], strides = [1, 1]} : vector<64x128xf32> to vector<8x128xf32>
    %cst_13 = arith.constant dense<0.000000e+00> : vector<8x128xf32>
    %48 = tpu.matmul %46, %4, %cst_13 {dimension_numbers = #tpu.dot_dimension_numbers<[1], [0], [0], [1], [0, 0, 1, 1], [], []>} : vector<8x32xf32>, vector<32x128xf32>, vector<8x128xf32> -> vector<8x128xf32>
    %49 = arith.addf %47, %48 : vector<8x128xf32>
    %50 = vector.extract_strided_slice %49 {offsets = [0, 0], sizes = [8, 96], strides = [1, 1]} : vector<8x128xf32> to vector<8x96xf32>
    %51 = arith.negf %50 : vector<8x96xf32>
    %52 = math.exp %51 : vector<8x96xf32>
    %cst_14 = arith.constant 1.000000e+00 : f32
    %53 = vector.broadcast %cst_14 : f32 to vector<8x96xf32>
    %54 = arith.addf %53, %52 : vector<8x96xf32>
    %55 = arith.divf %53, %54 : vector<8x96xf32>
    %56 = vector.extract_strided_slice %49 {offsets = [0, 96], sizes = [8, 32], strides = [1, 1]} : vector<8x128xf32> to vector<8x32xf32>
    %57 = math.tanh %56 : vector<8x32xf32>
    %58 = vector.extract_strided_slice %55 {offsets = [0, 32], sizes = [8, 32], strides = [1, 1]} : vector<8x96xf32> to vector<8x32xf32>
    %59 = arith.mulf %58, %43 : vector<8x32xf32>
    %60 = vector.extract_strided_slice %55 {offsets = [0, 0], sizes = [8, 32], strides = [1, 1]} : vector<8x96xf32> to vector<8x32xf32>
    %61 = arith.mulf %60, %57 : vector<8x32xf32>
    %62 = arith.addf %59, %61 : vector<8x32xf32>
    %63 = vector.extract_strided_slice %55 {offsets = [0, 64], sizes = [8, 32], strides = [1, 1]} : vector<8x96xf32> to vector<8x32xf32>
    %64 = math.tanh %62 : vector<8x32xf32>
    %65 = arith.mulf %63, %64 : vector<8x32xf32>
    %66 = vector.extract_strided_slice %8 {offsets = [24, 0], sizes = [8, 128], strides = [1, 1]} : vector<64x128xf32> to vector<8x128xf32>
    %cst_15 = arith.constant dense<0.000000e+00> : vector<8x128xf32>
    %67 = tpu.matmul %65, %4, %cst_15 {dimension_numbers = #tpu.dot_dimension_numbers<[1], [0], [0], [1], [0, 0, 1, 1], [], []>} : vector<8x32xf32>, vector<32x128xf32>, vector<8x128xf32> -> vector<8x128xf32>
    %68 = arith.addf %66, %67 : vector<8x128xf32>
    %69 = vector.extract_strided_slice %68 {offsets = [0, 0], sizes = [8, 96], strides = [1, 1]} : vector<8x128xf32> to vector<8x96xf32>
    %70 = arith.negf %69 : vector<8x96xf32>
    %71 = math.exp %70 : vector<8x96xf32>
    %cst_16 = arith.constant 1.000000e+00 : f32
    %72 = vector.broadcast %cst_16 : f32 to vector<8x96xf32>
    %73 = arith.addf %72, %71 : vector<8x96xf32>
    %74 = arith.divf %72, %73 : vector<8x96xf32>
    %75 = vector.extract_strided_slice %68 {offsets = [0, 96], sizes = [8, 32], strides = [1, 1]} : vector<8x128xf32> to vector<8x32xf32>
    %76 = math.tanh %75 : vector<8x32xf32>
    %77 = vector.extract_strided_slice %74 {offsets = [0, 32], sizes = [8, 32], strides = [1, 1]} : vector<8x96xf32> to vector<8x32xf32>
    %78 = arith.mulf %77, %62 : vector<8x32xf32>
    %79 = vector.extract_strided_slice %74 {offsets = [0, 0], sizes = [8, 32], strides = [1, 1]} : vector<8x96xf32> to vector<8x32xf32>
    %80 = arith.mulf %79, %76 : vector<8x32xf32>
    %81 = arith.addf %78, %80 : vector<8x32xf32>
    %82 = vector.extract_strided_slice %74 {offsets = [0, 64], sizes = [8, 32], strides = [1, 1]} : vector<8x96xf32> to vector<8x32xf32>
    %83 = math.tanh %81 : vector<8x32xf32>
    %84 = arith.mulf %82, %83 : vector<8x32xf32>
    %85 = vector.extract_strided_slice %8 {offsets = [32, 0], sizes = [8, 128], strides = [1, 1]} : vector<64x128xf32> to vector<8x128xf32>
    %cst_17 = arith.constant dense<0.000000e+00> : vector<8x128xf32>
    %86 = tpu.matmul %84, %4, %cst_17 {dimension_numbers = #tpu.dot_dimension_numbers<[1], [0], [0], [1], [0, 0, 1, 1], [], []>} : vector<8x32xf32>, vector<32x128xf32>, vector<8x128xf32> -> vector<8x128xf32>
    %87 = arith.addf %85, %86 : vector<8x128xf32>
    %88 = vector.extract_strided_slice %87 {offsets = [0, 0], sizes = [8, 96], strides = [1, 1]} : vector<8x128xf32> to vector<8x96xf32>
    %89 = arith.negf %88 : vector<8x96xf32>
    %90 = math.exp %89 : vector<8x96xf32>
    %cst_18 = arith.constant 1.000000e+00 : f32
    %91 = vector.broadcast %cst_18 : f32 to vector<8x96xf32>
    %92 = arith.addf %91, %90 : vector<8x96xf32>
    %93 = arith.divf %91, %92 : vector<8x96xf32>
    %94 = vector.extract_strided_slice %87 {offsets = [0, 96], sizes = [8, 32], strides = [1, 1]} : vector<8x128xf32> to vector<8x32xf32>
    %95 = math.tanh %94 : vector<8x32xf32>
    %96 = vector.extract_strided_slice %93 {offsets = [0, 32], sizes = [8, 32], strides = [1, 1]} : vector<8x96xf32> to vector<8x32xf32>
    %97 = arith.mulf %96, %81 : vector<8x32xf32>
    %98 = vector.extract_strided_slice %93 {offsets = [0, 0], sizes = [8, 32], strides = [1, 1]} : vector<8x96xf32> to vector<8x32xf32>
    %99 = arith.mulf %98, %95 : vector<8x32xf32>
    %100 = arith.addf %97, %99 : vector<8x32xf32>
    %101 = vector.extract_strided_slice %93 {offsets = [0, 64], sizes = [8, 32], strides = [1, 1]} : vector<8x96xf32> to vector<8x32xf32>
    %102 = math.tanh %100 : vector<8x32xf32>
    %103 = arith.mulf %101, %102 : vector<8x32xf32>
    %104 = vector.extract_strided_slice %8 {offsets = [40, 0], sizes = [8, 128], strides = [1, 1]} : vector<64x128xf32> to vector<8x128xf32>
    %cst_19 = arith.constant dense<0.000000e+00> : vector<8x128xf32>
    %105 = tpu.matmul %103, %4, %cst_19 {dimension_numbers = #tpu.dot_dimension_numbers<[1], [0], [0], [1], [0, 0, 1, 1], [], []>} : vector<8x32xf32>, vector<32x128xf32>, vector<8x128xf32> -> vector<8x128xf32>
    %106 = arith.addf %104, %105 : vector<8x128xf32>
    %107 = vector.extract_strided_slice %106 {offsets = [0, 0], sizes = [8, 96], strides = [1, 1]} : vector<8x128xf32> to vector<8x96xf32>
    %108 = arith.negf %107 : vector<8x96xf32>
    %109 = math.exp %108 : vector<8x96xf32>
    %cst_20 = arith.constant 1.000000e+00 : f32
    %110 = vector.broadcast %cst_20 : f32 to vector<8x96xf32>
    %111 = arith.addf %110, %109 : vector<8x96xf32>
    %112 = arith.divf %110, %111 : vector<8x96xf32>
    %113 = vector.extract_strided_slice %106 {offsets = [0, 96], sizes = [8, 32], strides = [1, 1]} : vector<8x128xf32> to vector<8x32xf32>
    %114 = math.tanh %113 : vector<8x32xf32>
    %115 = vector.extract_strided_slice %112 {offsets = [0, 32], sizes = [8, 32], strides = [1, 1]} : vector<8x96xf32> to vector<8x32xf32>
    %116 = arith.mulf %115, %100 : vector<8x32xf32>
    %117 = vector.extract_strided_slice %112 {offsets = [0, 0], sizes = [8, 32], strides = [1, 1]} : vector<8x96xf32> to vector<8x32xf32>
    %118 = arith.mulf %117, %114 : vector<8x32xf32>
    %119 = arith.addf %116, %118 : vector<8x32xf32>
    %120 = vector.extract_strided_slice %112 {offsets = [0, 64], sizes = [8, 32], strides = [1, 1]} : vector<8x96xf32> to vector<8x32xf32>
    %121 = math.tanh %119 : vector<8x32xf32>
    %122 = arith.mulf %120, %121 : vector<8x32xf32>
    %123 = vector.extract_strided_slice %8 {offsets = [48, 0], sizes = [8, 128], strides = [1, 1]} : vector<64x128xf32> to vector<8x128xf32>
    %cst_21 = arith.constant dense<0.000000e+00> : vector<8x128xf32>
    %124 = tpu.matmul %122, %4, %cst_21 {dimension_numbers = #tpu.dot_dimension_numbers<[1], [0], [0], [1], [0, 0, 1, 1], [], []>} : vector<8x32xf32>, vector<32x128xf32>, vector<8x128xf32> -> vector<8x128xf32>
    %125 = arith.addf %123, %124 : vector<8x128xf32>
    %126 = vector.extract_strided_slice %125 {offsets = [0, 0], sizes = [8, 96], strides = [1, 1]} : vector<8x128xf32> to vector<8x96xf32>
    %127 = arith.negf %126 : vector<8x96xf32>
    %128 = math.exp %127 : vector<8x96xf32>
    %cst_22 = arith.constant 1.000000e+00 : f32
    %129 = vector.broadcast %cst_22 : f32 to vector<8x96xf32>
    %130 = arith.addf %129, %128 : vector<8x96xf32>
    %131 = arith.divf %129, %130 : vector<8x96xf32>
    %132 = vector.extract_strided_slice %125 {offsets = [0, 96], sizes = [8, 32], strides = [1, 1]} : vector<8x128xf32> to vector<8x32xf32>
    %133 = math.tanh %132 : vector<8x32xf32>
    %134 = vector.extract_strided_slice %131 {offsets = [0, 32], sizes = [8, 32], strides = [1, 1]} : vector<8x96xf32> to vector<8x32xf32>
    %135 = arith.mulf %134, %119 : vector<8x32xf32>
    %136 = vector.extract_strided_slice %131 {offsets = [0, 0], sizes = [8, 32], strides = [1, 1]} : vector<8x96xf32> to vector<8x32xf32>
    %137 = arith.mulf %136, %133 : vector<8x32xf32>
    %138 = arith.addf %135, %137 : vector<8x32xf32>
    %139 = vector.extract_strided_slice %131 {offsets = [0, 64], sizes = [8, 32], strides = [1, 1]} : vector<8x96xf32> to vector<8x32xf32>
    %140 = math.tanh %138 : vector<8x32xf32>
    %141 = arith.mulf %139, %140 : vector<8x32xf32>
    %142 = vector.extract_strided_slice %8 {offsets = [56, 0], sizes = [8, 128], strides = [1, 1]} : vector<64x128xf32> to vector<8x128xf32>
    %cst_23 = arith.constant dense<0.000000e+00> : vector<8x128xf32>
    %143 = tpu.matmul %141, %4, %cst_23 {dimension_numbers = #tpu.dot_dimension_numbers<[1], [0], [0], [1], [0, 0, 1, 1], [], []>} : vector<8x32xf32>, vector<32x128xf32>, vector<8x128xf32> -> vector<8x128xf32>
    %144 = arith.addf %142, %143 : vector<8x128xf32>
    %145 = vector.extract_strided_slice %144 {offsets = [0, 0], sizes = [8, 96], strides = [1, 1]} : vector<8x128xf32> to vector<8x96xf32>
    %146 = arith.negf %145 : vector<8x96xf32>
    %147 = math.exp %146 : vector<8x96xf32>
    %cst_24 = arith.constant 1.000000e+00 : f32
    %148 = vector.broadcast %cst_24 : f32 to vector<8x96xf32>
    %149 = arith.addf %148, %147 : vector<8x96xf32>
    %150 = arith.divf %148, %149 : vector<8x96xf32>
    %151 = vector.extract_strided_slice %144 {offsets = [0, 96], sizes = [8, 32], strides = [1, 1]} : vector<8x128xf32> to vector<8x32xf32>
    %152 = math.tanh %151 : vector<8x32xf32>
    %153 = vector.extract_strided_slice %150 {offsets = [0, 32], sizes = [8, 32], strides = [1, 1]} : vector<8x96xf32> to vector<8x32xf32>
    %154 = arith.mulf %153, %138 : vector<8x32xf32>
    %155 = vector.extract_strided_slice %150 {offsets = [0, 0], sizes = [8, 32], strides = [1, 1]} : vector<8x96xf32> to vector<8x32xf32>
    %156 = arith.mulf %155, %152 : vector<8x32xf32>
    %157 = arith.addf %154, %156 : vector<8x32xf32>
    %158 = vector.extract_strided_slice %150 {offsets = [0, 64], sizes = [8, 32], strides = [1, 1]} : vector<8x96xf32> to vector<8x32xf32>
    %159 = math.tanh %157 : vector<8x32xf32>
    %160 = arith.mulf %158, %159 : vector<8x32xf32>
    %c0_25 = arith.constant 0 : index
    %c0_26 = arith.constant 0 : index
    %161 = vector.load %arg8[%c0_25, %c0_26] : memref<32x128xf32, #tpu.memory_space<vmem>>, vector<32x128xf32>
    %c0_27 = arith.constant 0 : index
    %c0_28 = arith.constant 0 : index
    %162 = vector.load %arg9[%c0_27, %c0_28] : memref<32x128xf32, #tpu.memory_space<vmem>>, vector<32x128xf32>
    %c0_29 = arith.constant 0 : index
    %c0_30 = arith.constant 0 : index
    %163 = vector.load %arg10[%c0_29, %c0_30] : memref<1x128xf32, #tpu.memory_space<vmem>>, vector<1x128xf32>
    %cst_31 = arith.constant dense<0.000000e+00> : vector<8x128xf32>
    %164 = tpu.matmul %27, %161, %cst_31 {dimension_numbers = #tpu.dot_dimension_numbers<[1], [0], [0], [1], [0, 0, 1, 1], [], []>} : vector<8x32xf32>, vector<32x128xf32>, vector<8x128xf32> -> vector<8x128xf32>
    %165 = vector.broadcast %163 : vector<1x128xf32> to vector<8x128xf32>
    %166 = arith.addf %164, %165 : vector<8x128xf32>
    %cst_32 = arith.constant dense<0.000000e+00> : vector<8x128xf32>
    %167 = tpu.matmul %0, %162, %cst_32 {dimension_numbers = #tpu.dot_dimension_numbers<[1], [0], [0], [1], [0, 0, 1, 1], [], []>} : vector<8x32xf32>, vector<32x128xf32>, vector<8x128xf32> -> vector<8x128xf32>
    %168 = arith.addf %166, %167 : vector<8x128xf32>
    %169 = vector.extract_strided_slice %168 {offsets = [0, 0], sizes = [8, 96], strides = [1, 1]} : vector<8x128xf32> to vector<8x96xf32>
    %170 = arith.negf %169 : vector<8x96xf32>
    %171 = math.exp %170 : vector<8x96xf32>
    %cst_33 = arith.constant 1.000000e+00 : f32
    %172 = vector.broadcast %cst_33 : f32 to vector<8x96xf32>
    %173 = arith.addf %172, %171 : vector<8x96xf32>
    %174 = arith.divf %172, %173 : vector<8x96xf32>
    %175 = vector.extract_strided_slice %168 {offsets = [0, 96], sizes = [8, 32], strides = [1, 1]} : vector<8x128xf32> to vector<8x32xf32>
    %176 = math.tanh %175 : vector<8x32xf32>
    %177 = vector.extract_strided_slice %174 {offsets = [0, 32], sizes = [8, 32], strides = [1, 1]} : vector<8x96xf32> to vector<8x32xf32>
    %178 = arith.mulf %177, %0 : vector<8x32xf32>
    %179 = vector.extract_strided_slice %174 {offsets = [0, 0], sizes = [8, 32], strides = [1, 1]} : vector<8x96xf32> to vector<8x32xf32>
    %180 = arith.mulf %179, %176 : vector<8x32xf32>
    %181 = arith.addf %178, %180 : vector<8x32xf32>
    %182 = vector.extract_strided_slice %174 {offsets = [0, 64], sizes = [8, 32], strides = [1, 1]} : vector<8x96xf32> to vector<8x32xf32>
    %183 = math.tanh %181 : vector<8x32xf32>
    %184 = arith.mulf %182, %183 : vector<8x32xf32>
    %cst_34 = arith.constant dense<0.000000e+00> : vector<8x128xf32>
    %185 = tpu.matmul %46, %161, %cst_34 {dimension_numbers = #tpu.dot_dimension_numbers<[1], [0], [0], [1], [0, 0, 1, 1], [], []>} : vector<8x32xf32>, vector<32x128xf32>, vector<8x128xf32> -> vector<8x128xf32>
    %186 = vector.broadcast %163 : vector<1x128xf32> to vector<8x128xf32>
    %187 = arith.addf %185, %186 : vector<8x128xf32>
    %cst_35 = arith.constant dense<0.000000e+00> : vector<8x128xf32>
    %188 = tpu.matmul %184, %162, %cst_35 {dimension_numbers = #tpu.dot_dimension_numbers<[1], [0], [0], [1], [0, 0, 1, 1], [], []>} : vector<8x32xf32>, vector<32x128xf32>, vector<8x128xf32> -> vector<8x128xf32>
    %189 = arith.addf %187, %188 : vector<8x128xf32>
    %190 = vector.extract_strided_slice %189 {offsets = [0, 0], sizes = [8, 96], strides = [1, 1]} : vector<8x128xf32> to vector<8x96xf32>
    %191 = arith.negf %190 : vector<8x96xf32>
    %192 = math.exp %191 : vector<8x96xf32>
    %cst_36 = arith.constant 1.000000e+00 : f32
    %193 = vector.broadcast %cst_36 : f32 to vector<8x96xf32>
    %194 = arith.addf %193, %192 : vector<8x96xf32>
    %195 = arith.divf %193, %194 : vector<8x96xf32>
    %196 = vector.extract_strided_slice %189 {offsets = [0, 96], sizes = [8, 32], strides = [1, 1]} : vector<8x128xf32> to vector<8x32xf32>
    %197 = math.tanh %196 : vector<8x32xf32>
    %198 = vector.extract_strided_slice %195 {offsets = [0, 32], sizes = [8, 32], strides = [1, 1]} : vector<8x96xf32> to vector<8x32xf32>
    %199 = arith.mulf %198, %181 : vector<8x32xf32>
    %200 = vector.extract_strided_slice %195 {offsets = [0, 0], sizes = [8, 32], strides = [1, 1]} : vector<8x96xf32> to vector<8x32xf32>
    %201 = arith.mulf %200, %197 : vector<8x32xf32>
    %202 = arith.addf %199, %201 : vector<8x32xf32>
    %203 = vector.extract_strided_slice %195 {offsets = [0, 64], sizes = [8, 32], strides = [1, 1]} : vector<8x96xf32> to vector<8x32xf32>
    %204 = math.tanh %202 : vector<8x32xf32>
    %205 = arith.mulf %203, %204 : vector<8x32xf32>
    %cst_37 = arith.constant dense<0.000000e+00> : vector<8x128xf32>
    %206 = tpu.matmul %65, %161, %cst_37 {dimension_numbers = #tpu.dot_dimension_numbers<[1], [0], [0], [1], [0, 0, 1, 1], [], []>} : vector<8x32xf32>, vector<32x128xf32>, vector<8x128xf32> -> vector<8x128xf32>
    %207 = vector.broadcast %163 : vector<1x128xf32> to vector<8x128xf32>
    %208 = arith.addf %206, %207 : vector<8x128xf32>
    %cst_38 = arith.constant dense<0.000000e+00> : vector<8x128xf32>
    %209 = tpu.matmul %205, %162, %cst_38 {dimension_numbers = #tpu.dot_dimension_numbers<[1], [0], [0], [1], [0, 0, 1, 1], [], []>} : vector<8x32xf32>, vector<32x128xf32>, vector<8x128xf32> -> vector<8x128xf32>
    %210 = arith.addf %208, %209 : vector<8x128xf32>
    %211 = vector.extract_strided_slice %210 {offsets = [0, 0], sizes = [8, 96], strides = [1, 1]} : vector<8x128xf32> to vector<8x96xf32>
    %212 = arith.negf %211 : vector<8x96xf32>
    %213 = math.exp %212 : vector<8x96xf32>
    %cst_39 = arith.constant 1.000000e+00 : f32
    %214 = vector.broadcast %cst_39 : f32 to vector<8x96xf32>
    %215 = arith.addf %214, %213 : vector<8x96xf32>
    %216 = arith.divf %214, %215 : vector<8x96xf32>
    %217 = vector.extract_strided_slice %210 {offsets = [0, 96], sizes = [8, 32], strides = [1, 1]} : vector<8x128xf32> to vector<8x32xf32>
    %218 = math.tanh %217 : vector<8x32xf32>
    %219 = vector.extract_strided_slice %216 {offsets = [0, 32], sizes = [8, 32], strides = [1, 1]} : vector<8x96xf32> to vector<8x32xf32>
    %220 = arith.mulf %219, %202 : vector<8x32xf32>
    %221 = vector.extract_strided_slice %216 {offsets = [0, 0], sizes = [8, 32], strides = [1, 1]} : vector<8x96xf32> to vector<8x32xf32>
    %222 = arith.mulf %221, %218 : vector<8x32xf32>
    %223 = arith.addf %220, %222 : vector<8x32xf32>
    %224 = vector.extract_strided_slice %216 {offsets = [0, 64], sizes = [8, 32], strides = [1, 1]} : vector<8x96xf32> to vector<8x32xf32>
    %225 = math.tanh %223 : vector<8x32xf32>
    %226 = arith.mulf %224, %225 : vector<8x32xf32>
    %cst_40 = arith.constant dense<0.000000e+00> : vector<8x128xf32>
    %227 = tpu.matmul %84, %161, %cst_40 {dimension_numbers = #tpu.dot_dimension_numbers<[1], [0], [0], [1], [0, 0, 1, 1], [], []>} : vector<8x32xf32>, vector<32x128xf32>, vector<8x128xf32> -> vector<8x128xf32>
    %228 = vector.broadcast %163 : vector<1x128xf32> to vector<8x128xf32>
    %229 = arith.addf %227, %228 : vector<8x128xf32>
    %cst_41 = arith.constant dense<0.000000e+00> : vector<8x128xf32>
    %230 = tpu.matmul %226, %162, %cst_41 {dimension_numbers = #tpu.dot_dimension_numbers<[1], [0], [0], [1], [0, 0, 1, 1], [], []>} : vector<8x32xf32>, vector<32x128xf32>, vector<8x128xf32> -> vector<8x128xf32>
    %231 = arith.addf %229, %230 : vector<8x128xf32>
    %232 = vector.extract_strided_slice %231 {offsets = [0, 0], sizes = [8, 96], strides = [1, 1]} : vector<8x128xf32> to vector<8x96xf32>
    %233 = arith.negf %232 : vector<8x96xf32>
    %234 = math.exp %233 : vector<8x96xf32>
    %cst_42 = arith.constant 1.000000e+00 : f32
    %235 = vector.broadcast %cst_42 : f32 to vector<8x96xf32>
    %236 = arith.addf %235, %234 : vector<8x96xf32>
    %237 = arith.divf %235, %236 : vector<8x96xf32>
    %238 = vector.extract_strided_slice %231 {offsets = [0, 96], sizes = [8, 32], strides = [1, 1]} : vector<8x128xf32> to vector<8x32xf32>
    %239 = math.tanh %238 : vector<8x32xf32>
    %240 = vector.extract_strided_slice %237 {offsets = [0, 32], sizes = [8, 32], strides = [1, 1]} : vector<8x96xf32> to vector<8x32xf32>
    %241 = arith.mulf %240, %223 : vector<8x32xf32>
    %242 = vector.extract_strided_slice %237 {offsets = [0, 0], sizes = [8, 32], strides = [1, 1]} : vector<8x96xf32> to vector<8x32xf32>
    %243 = arith.mulf %242, %239 : vector<8x32xf32>
    %244 = arith.addf %241, %243 : vector<8x32xf32>
    %245 = vector.extract_strided_slice %237 {offsets = [0, 64], sizes = [8, 32], strides = [1, 1]} : vector<8x96xf32> to vector<8x32xf32>
    %246 = math.tanh %244 : vector<8x32xf32>
    %247 = arith.mulf %245, %246 : vector<8x32xf32>
    %cst_43 = arith.constant dense<0.000000e+00> : vector<8x128xf32>
    %248 = tpu.matmul %103, %161, %cst_43 {dimension_numbers = #tpu.dot_dimension_numbers<[1], [0], [0], [1], [0, 0, 1, 1], [], []>} : vector<8x32xf32>, vector<32x128xf32>, vector<8x128xf32> -> vector<8x128xf32>
    %249 = vector.broadcast %163 : vector<1x128xf32> to vector<8x128xf32>
    %250 = arith.addf %248, %249 : vector<8x128xf32>
    %cst_44 = arith.constant dense<0.000000e+00> : vector<8x128xf32>
    %251 = tpu.matmul %247, %162, %cst_44 {dimension_numbers = #tpu.dot_dimension_numbers<[1], [0], [0], [1], [0, 0, 1, 1], [], []>} : vector<8x32xf32>, vector<32x128xf32>, vector<8x128xf32> -> vector<8x128xf32>
    %252 = arith.addf %250, %251 : vector<8x128xf32>
    %253 = vector.extract_strided_slice %252 {offsets = [0, 0], sizes = [8, 96], strides = [1, 1]} : vector<8x128xf32> to vector<8x96xf32>
    %254 = arith.negf %253 : vector<8x96xf32>
    %255 = math.exp %254 : vector<8x96xf32>
    %cst_45 = arith.constant 1.000000e+00 : f32
    %256 = vector.broadcast %cst_45 : f32 to vector<8x96xf32>
    %257 = arith.addf %256, %255 : vector<8x96xf32>
    %258 = arith.divf %256, %257 : vector<8x96xf32>
    %259 = vector.extract_strided_slice %252 {offsets = [0, 96], sizes = [8, 32], strides = [1, 1]} : vector<8x128xf32> to vector<8x32xf32>
    %260 = math.tanh %259 : vector<8x32xf32>
    %261 = vector.extract_strided_slice %258 {offsets = [0, 32], sizes = [8, 32], strides = [1, 1]} : vector<8x96xf32> to vector<8x32xf32>
    %262 = arith.mulf %261, %244 : vector<8x32xf32>
    %263 = vector.extract_strided_slice %258 {offsets = [0, 0], sizes = [8, 32], strides = [1, 1]} : vector<8x96xf32> to vector<8x32xf32>
    %264 = arith.mulf %263, %260 : vector<8x32xf32>
    %265 = arith.addf %262, %264 : vector<8x32xf32>
    %266 = vector.extract_strided_slice %258 {offsets = [0, 64], sizes = [8, 32], strides = [1, 1]} : vector<8x96xf32> to vector<8x32xf32>
    %267 = math.tanh %265 : vector<8x32xf32>
    %268 = arith.mulf %266, %267 : vector<8x32xf32>
    %cst_46 = arith.constant dense<0.000000e+00> : vector<8x128xf32>
    %269 = tpu.matmul %122, %161, %cst_46 {dimension_numbers = #tpu.dot_dimension_numbers<[1], [0], [0], [1], [0, 0, 1, 1], [], []>} : vector<8x32xf32>, vector<32x128xf32>, vector<8x128xf32> -> vector<8x128xf32>
    %270 = vector.broadcast %163 : vector<1x128xf32> to vector<8x128xf32>
    %271 = arith.addf %269, %270 : vector<8x128xf32>
    %cst_47 = arith.constant dense<0.000000e+00> : vector<8x128xf32>
    %272 = tpu.matmul %268, %162, %cst_47 {dimension_numbers = #tpu.dot_dimension_numbers<[1], [0], [0], [1], [0, 0, 1, 1], [], []>} : vector<8x32xf32>, vector<32x128xf32>, vector<8x128xf32> -> vector<8x128xf32>
    %273 = arith.addf %271, %272 : vector<8x128xf32>
    %274 = vector.extract_strided_slice %273 {offsets = [0, 0], sizes = [8, 96], strides = [1, 1]} : vector<8x128xf32> to vector<8x96xf32>
    %275 = arith.negf %274 : vector<8x96xf32>
    %276 = math.exp %275 : vector<8x96xf32>
    %cst_48 = arith.constant 1.000000e+00 : f32
    %277 = vector.broadcast %cst_48 : f32 to vector<8x96xf32>
    %278 = arith.addf %277, %276 : vector<8x96xf32>
    %279 = arith.divf %277, %278 : vector<8x96xf32>
    %280 = vector.extract_strided_slice %273 {offsets = [0, 96], sizes = [8, 32], strides = [1, 1]} : vector<8x128xf32> to vector<8x32xf32>
    %281 = math.tanh %280 : vector<8x32xf32>
    %282 = vector.extract_strided_slice %279 {offsets = [0, 32], sizes = [8, 32], strides = [1, 1]} : vector<8x96xf32> to vector<8x32xf32>
    %283 = arith.mulf %282, %265 : vector<8x32xf32>
    %284 = vector.extract_strided_slice %279 {offsets = [0, 0], sizes = [8, 32], strides = [1, 1]} : vector<8x96xf32> to vector<8x32xf32>
    %285 = arith.mulf %284, %281 : vector<8x32xf32>
    %286 = arith.addf %283, %285 : vector<8x32xf32>
    %287 = vector.extract_strided_slice %279 {offsets = [0, 64], sizes = [8, 32], strides = [1, 1]} : vector<8x96xf32> to vector<8x32xf32>
    %288 = math.tanh %286 : vector<8x32xf32>
    %289 = arith.mulf %287, %288 : vector<8x32xf32>
    %cst_49 = arith.constant dense<0.000000e+00> : vector<8x128xf32>
    %290 = tpu.matmul %141, %161, %cst_49 {dimension_numbers = #tpu.dot_dimension_numbers<[1], [0], [0], [1], [0, 0, 1, 1], [], []>} : vector<8x32xf32>, vector<32x128xf32>, vector<8x128xf32> -> vector<8x128xf32>
    %291 = vector.broadcast %163 : vector<1x128xf32> to vector<8x128xf32>
    %292 = arith.addf %290, %291 : vector<8x128xf32>
    %cst_50 = arith.constant dense<0.000000e+00> : vector<8x128xf32>
    %293 = tpu.matmul %289, %162, %cst_50 {dimension_numbers = #tpu.dot_dimension_numbers<[1], [0], [0], [1], [0, 0, 1, 1], [], []>} : vector<8x32xf32>, vector<32x128xf32>, vector<8x128xf32> -> vector<8x128xf32>
    %294 = arith.addf %292, %293 : vector<8x128xf32>
    %295 = vector.extract_strided_slice %294 {offsets = [0, 0], sizes = [8, 96], strides = [1, 1]} : vector<8x128xf32> to vector<8x96xf32>
    %296 = arith.negf %295 : vector<8x96xf32>
    %297 = math.exp %296 : vector<8x96xf32>
    %cst_51 = arith.constant 1.000000e+00 : f32
    %298 = vector.broadcast %cst_51 : f32 to vector<8x96xf32>
    %299 = arith.addf %298, %297 : vector<8x96xf32>
    %300 = arith.divf %298, %299 : vector<8x96xf32>
    %301 = vector.extract_strided_slice %294 {offsets = [0, 96], sizes = [8, 32], strides = [1, 1]} : vector<8x128xf32> to vector<8x32xf32>
    %302 = math.tanh %301 : vector<8x32xf32>
    %303 = vector.extract_strided_slice %300 {offsets = [0, 32], sizes = [8, 32], strides = [1, 1]} : vector<8x96xf32> to vector<8x32xf32>
    %304 = arith.mulf %303, %286 : vector<8x32xf32>
    %305 = vector.extract_strided_slice %300 {offsets = [0, 0], sizes = [8, 32], strides = [1, 1]} : vector<8x96xf32> to vector<8x32xf32>
    %306 = arith.mulf %305, %302 : vector<8x32xf32>
    %307 = arith.addf %304, %306 : vector<8x32xf32>
    %308 = vector.extract_strided_slice %300 {offsets = [0, 64], sizes = [8, 32], strides = [1, 1]} : vector<8x96xf32> to vector<8x32xf32>
    %309 = math.tanh %307 : vector<8x32xf32>
    %310 = arith.mulf %308, %309 : vector<8x32xf32>
    %cst_52 = arith.constant dense<0.000000e+00> : vector<8x128xf32>
    %311 = tpu.matmul %160, %161, %cst_52 {dimension_numbers = #tpu.dot_dimension_numbers<[1], [0], [0], [1], [0, 0, 1, 1], [], []>} : vector<8x32xf32>, vector<32x128xf32>, vector<8x128xf32> -> vector<8x128xf32>
    %312 = vector.broadcast %163 : vector<1x128xf32> to vector<8x128xf32>
    %313 = arith.addf %311, %312 : vector<8x128xf32>
    %cst_53 = arith.constant dense<0.000000e+00> : vector<8x128xf32>
    %314 = tpu.matmul %310, %162, %cst_53 {dimension_numbers = #tpu.dot_dimension_numbers<[1], [0], [0], [1], [0, 0, 1, 1], [], []>} : vector<8x32xf32>, vector<32x128xf32>, vector<8x128xf32> -> vector<8x128xf32>
    %315 = arith.addf %313, %314 : vector<8x128xf32>
    %316 = vector.extract_strided_slice %315 {offsets = [0, 0], sizes = [8, 96], strides = [1, 1]} : vector<8x128xf32> to vector<8x96xf32>
    %317 = arith.negf %316 : vector<8x96xf32>
    %318 = math.exp %317 : vector<8x96xf32>
    %cst_54 = arith.constant 1.000000e+00 : f32
    %319 = vector.broadcast %cst_54 : f32 to vector<8x96xf32>
    %320 = arith.addf %319, %318 : vector<8x96xf32>
    %321 = arith.divf %319, %320 : vector<8x96xf32>
    %322 = vector.extract_strided_slice %315 {offsets = [0, 96], sizes = [8, 32], strides = [1, 1]} : vector<8x128xf32> to vector<8x32xf32>
    %323 = math.tanh %322 : vector<8x32xf32>
    %324 = vector.extract_strided_slice %321 {offsets = [0, 32], sizes = [8, 32], strides = [1, 1]} : vector<8x96xf32> to vector<8x32xf32>
    %325 = arith.mulf %324, %307 : vector<8x32xf32>
    %326 = vector.extract_strided_slice %321 {offsets = [0, 0], sizes = [8, 32], strides = [1, 1]} : vector<8x96xf32> to vector<8x32xf32>
    %327 = arith.mulf %326, %323 : vector<8x32xf32>
    %328 = arith.addf %325, %327 : vector<8x32xf32>
    %329 = vector.extract_strided_slice %321 {offsets = [0, 64], sizes = [8, 32], strides = [1, 1]} : vector<8x96xf32> to vector<8x32xf32>
    %330 = math.tanh %328 : vector<8x32xf32>
    %331 = arith.mulf %329, %330 : vector<8x32xf32>
    %c0_55 = arith.constant 0 : index
    %c0_56 = arith.constant 0 : index
    %c0_57 = arith.constant 0 : index
    %332 = vector.load %arg2[%c0_55, %c0_56, %c0_57] : memref<1x56x16xf32, #tpu.memory_space<vmem>>, vector<1x56x16xf32>
    %333 = vector.shape_cast %332 : vector<1x56x16xf32> to vector<56x16xf32>
    %c0_58 = arith.constant 0 : index
    %c0_59 = arith.constant 0 : index
    %c0_60 = arith.constant 0 : index
    %334 = vector.load %arg3[%c0_58, %c0_59, %c0_60] : memref<1x56x1xf32, #tpu.memory_space<vmem>>, vector<1x56x1xf32>
    %335 = vector.shape_cast %334 : vector<1x56x1xf32> to vector<56x1xf32>
    %c0_61 = arith.constant 0 : index
    %c0_62 = arith.constant 0 : index
    %336 = vector.load %arg11[%c0_61, %c0_62] : memref<16x128xf32, #tpu.memory_space<vmem>>, vector<16x128xf32>
    %c0_63 = arith.constant 0 : index
    %c0_64 = arith.constant 0 : index
    %337 = vector.load %arg12[%c0_63, %c0_64] : memref<32x128xf32, #tpu.memory_space<vmem>>, vector<32x128xf32>
    %c0_65 = arith.constant 0 : index
    %c0_66 = arith.constant 0 : index
    %338 = vector.load %arg13[%c0_65, %c0_66] : memref<1x128xf32, #tpu.memory_space<vmem>>, vector<1x128xf32>
    %cst_67 = arith.constant dense<0.000000e+00> : vector<56x128xf32>
    %339 = tpu.matmul %333, %336, %cst_67 {dimension_numbers = #tpu.dot_dimension_numbers<[1], [0], [0], [1], [0, 0, 1, 1], [], []>} : vector<56x16xf32>, vector<16x128xf32>, vector<56x128xf32> -> vector<56x128xf32>
    %340 = vector.broadcast %338 : vector<1x128xf32> to vector<56x128xf32>
    %341 = arith.addf %339, %340 : vector<56x128xf32>
    %342 = vector.extract_strided_slice %341 {offsets = [0, 0], sizes = [8, 128], strides = [1, 1]} : vector<56x128xf32> to vector<8x128xf32>
    %cst_68 = arith.constant dense<0.000000e+00> : vector<8x128xf32>
    %343 = tpu.matmul %160, %337, %cst_68 {dimension_numbers = #tpu.dot_dimension_numbers<[1], [0], [0], [1], [0, 0, 1, 1], [], []>} : vector<8x32xf32>, vector<32x128xf32>, vector<8x128xf32> -> vector<8x128xf32>
    %344 = arith.addf %342, %343 : vector<8x128xf32>
    %345 = vector.extract_strided_slice %344 {offsets = [0, 0], sizes = [8, 96], strides = [1, 1]} : vector<8x128xf32> to vector<8x96xf32>
    %346 = arith.negf %345 : vector<8x96xf32>
    %347 = math.exp %346 : vector<8x96xf32>
    %cst_69 = arith.constant 1.000000e+00 : f32
    %348 = vector.broadcast %cst_69 : f32 to vector<8x96xf32>
    %349 = arith.addf %348, %347 : vector<8x96xf32>
    %350 = arith.divf %348, %349 : vector<8x96xf32>
    %351 = vector.extract_strided_slice %344 {offsets = [0, 96], sizes = [8, 32], strides = [1, 1]} : vector<8x128xf32> to vector<8x32xf32>
    %352 = math.tanh %351 : vector<8x32xf32>
    %353 = vector.extract_strided_slice %350 {offsets = [0, 32], sizes = [8, 32], strides = [1, 1]} : vector<8x96xf32> to vector<8x32xf32>
    %354 = arith.mulf %353, %157 : vector<8x32xf32>
    %355 = vector.extract_strided_slice %350 {offsets = [0, 0], sizes = [8, 32], strides = [1, 1]} : vector<8x96xf32> to vector<8x32xf32>
    %356 = arith.mulf %355, %352 : vector<8x32xf32>
    %357 = arith.addf %354, %356 : vector<8x32xf32>
    %358 = vector.extract_strided_slice %350 {offsets = [0, 64], sizes = [8, 32], strides = [1, 1]} : vector<8x96xf32> to vector<8x32xf32>
    %359 = math.tanh %357 : vector<8x32xf32>
    %360 = arith.mulf %358, %359 : vector<8x32xf32>
    %361 = vector.extract_strided_slice %341 {offsets = [8, 0], sizes = [8, 128], strides = [1, 1]} : vector<56x128xf32> to vector<8x128xf32>
    %cst_70 = arith.constant dense<0.000000e+00> : vector<8x128xf32>
    %362 = tpu.matmul %360, %337, %cst_70 {dimension_numbers = #tpu.dot_dimension_numbers<[1], [0], [0], [1], [0, 0, 1, 1], [], []>} : vector<8x32xf32>, vector<32x128xf32>, vector<8x128xf32> -> vector<8x128xf32>
    %363 = arith.addf %361, %362 : vector<8x128xf32>
    %364 = vector.extract_strided_slice %363 {offsets = [0, 0], sizes = [8, 96], strides = [1, 1]} : vector<8x128xf32> to vector<8x96xf32>
    %365 = arith.negf %364 : vector<8x96xf32>
    %366 = math.exp %365 : vector<8x96xf32>
    %cst_71 = arith.constant 1.000000e+00 : f32
    %367 = vector.broadcast %cst_71 : f32 to vector<8x96xf32>
    %368 = arith.addf %367, %366 : vector<8x96xf32>
    %369 = arith.divf %367, %368 : vector<8x96xf32>
    %370 = vector.extract_strided_slice %363 {offsets = [0, 96], sizes = [8, 32], strides = [1, 1]} : vector<8x128xf32> to vector<8x32xf32>
    %371 = math.tanh %370 : vector<8x32xf32>
    %372 = vector.extract_strided_slice %369 {offsets = [0, 32], sizes = [8, 32], strides = [1, 1]} : vector<8x96xf32> to vector<8x32xf32>
    %373 = arith.mulf %372, %357 : vector<8x32xf32>
    %374 = vector.extract_strided_slice %369 {offsets = [0, 0], sizes = [8, 32], strides = [1, 1]} : vector<8x96xf32> to vector<8x32xf32>
    %375 = arith.mulf %374, %371 : vector<8x32xf32>
    %376 = arith.addf %373, %375 : vector<8x32xf32>
    %377 = vector.extract_strided_slice %369 {offsets = [0, 64], sizes = [8, 32], strides = [1, 1]} : vector<8x96xf32> to vector<8x32xf32>
    %378 = math.tanh %376 : vector<8x32xf32>
    %379 = arith.mulf %377, %378 : vector<8x32xf32>
    %380 = vector.extract_strided_slice %341 {offsets = [16, 0], sizes = [8, 128], strides = [1, 1]} : vector<56x128xf32> to vector<8x128xf32>
    %cst_72 = arith.constant dense<0.000000e+00> : vector<8x128xf32>
    %381 = tpu.matmul %379, %337, %cst_72 {dimension_numbers = #tpu.dot_dimension_numbers<[1], [0], [0], [1], [0, 0, 1, 1], [], []>} : vector<8x32xf32>, vector<32x128xf32>, vector<8x128xf32> -> vector<8x128xf32>
    %382 = arith.addf %380, %381 : vector<8x128xf32>
    %383 = vector.extract_strided_slice %382 {offsets = [0, 0], sizes = [8, 96], strides = [1, 1]} : vector<8x128xf32> to vector<8x96xf32>
    %384 = arith.negf %383 : vector<8x96xf32>
    %385 = math.exp %384 : vector<8x96xf32>
    %cst_73 = arith.constant 1.000000e+00 : f32
    %386 = vector.broadcast %cst_73 : f32 to vector<8x96xf32>
    %387 = arith.addf %386, %385 : vector<8x96xf32>
    %388 = arith.divf %386, %387 : vector<8x96xf32>
    %389 = vector.extract_strided_slice %382 {offsets = [0, 96], sizes = [8, 32], strides = [1, 1]} : vector<8x128xf32> to vector<8x32xf32>
    %390 = math.tanh %389 : vector<8x32xf32>
    %391 = vector.extract_strided_slice %388 {offsets = [0, 32], sizes = [8, 32], strides = [1, 1]} : vector<8x96xf32> to vector<8x32xf32>
    %392 = arith.mulf %391, %376 : vector<8x32xf32>
    %393 = vector.extract_strided_slice %388 {offsets = [0, 0], sizes = [8, 32], strides = [1, 1]} : vector<8x96xf32> to vector<8x32xf32>
    %394 = arith.mulf %393, %390 : vector<8x32xf32>
    %395 = arith.addf %392, %394 : vector<8x32xf32>
    %396 = vector.extract_strided_slice %388 {offsets = [0, 64], sizes = [8, 32], strides = [1, 1]} : vector<8x96xf32> to vector<8x32xf32>
    %397 = math.tanh %395 : vector<8x32xf32>
    %398 = arith.mulf %396, %397 : vector<8x32xf32>
    %399 = vector.extract_strided_slice %341 {offsets = [24, 0], sizes = [8, 128], strides = [1, 1]} : vector<56x128xf32> to vector<8x128xf32>
    %cst_74 = arith.constant dense<0.000000e+00> : vector<8x128xf32>
    %400 = tpu.matmul %398, %337, %cst_74 {dimension_numbers = #tpu.dot_dimension_numbers<[1], [0], [0], [1], [0, 0, 1, 1], [], []>} : vector<8x32xf32>, vector<32x128xf32>, vector<8x128xf32> -> vector<8x128xf32>
    %401 = arith.addf %399, %400 : vector<8x128xf32>
    %402 = vector.extract_strided_slice %401 {offsets = [0, 0], sizes = [8, 96], strides = [1, 1]} : vector<8x128xf32> to vector<8x96xf32>
    %403 = arith.negf %402 : vector<8x96xf32>
    %404 = math.exp %403 : vector<8x96xf32>
    %cst_75 = arith.constant 1.000000e+00 : f32
    %405 = vector.broadcast %cst_75 : f32 to vector<8x96xf32>
    %406 = arith.addf %405, %404 : vector<8x96xf32>
    %407 = arith.divf %405, %406 : vector<8x96xf32>
    %408 = vector.extract_strided_slice %401 {offsets = [0, 96], sizes = [8, 32], strides = [1, 1]} : vector<8x128xf32> to vector<8x32xf32>
    %409 = math.tanh %408 : vector<8x32xf32>
    %410 = vector.extract_strided_slice %407 {offsets = [0, 32], sizes = [8, 32], strides = [1, 1]} : vector<8x96xf32> to vector<8x32xf32>
    %411 = arith.mulf %410, %395 : vector<8x32xf32>
    %412 = vector.extract_strided_slice %407 {offsets = [0, 0], sizes = [8, 32], strides = [1, 1]} : vector<8x96xf32> to vector<8x32xf32>
    %413 = arith.mulf %412, %409 : vector<8x32xf32>
    %414 = arith.addf %411, %413 : vector<8x32xf32>
    %415 = vector.extract_strided_slice %407 {offsets = [0, 64], sizes = [8, 32], strides = [1, 1]} : vector<8x96xf32> to vector<8x32xf32>
    %416 = math.tanh %414 : vector<8x32xf32>
    %417 = arith.mulf %415, %416 : vector<8x32xf32>
    %418 = vector.extract_strided_slice %341 {offsets = [32, 0], sizes = [8, 128], strides = [1, 1]} : vector<56x128xf32> to vector<8x128xf32>
    %cst_76 = arith.constant dense<0.000000e+00> : vector<8x128xf32>
    %419 = tpu.matmul %417, %337, %cst_76 {dimension_numbers = #tpu.dot_dimension_numbers<[1], [0], [0], [1], [0, 0, 1, 1], [], []>} : vector<8x32xf32>, vector<32x128xf32>, vector<8x128xf32> -> vector<8x128xf32>
    %420 = arith.addf %418, %419 : vector<8x128xf32>
    %421 = vector.extract_strided_slice %420 {offsets = [0, 0], sizes = [8, 96], strides = [1, 1]} : vector<8x128xf32> to vector<8x96xf32>
    %422 = arith.negf %421 : vector<8x96xf32>
    %423 = math.exp %422 : vector<8x96xf32>
    %cst_77 = arith.constant 1.000000e+00 : f32
    %424 = vector.broadcast %cst_77 : f32 to vector<8x96xf32>
    %425 = arith.addf %424, %423 : vector<8x96xf32>
    %426 = arith.divf %424, %425 : vector<8x96xf32>
    %427 = vector.extract_strided_slice %420 {offsets = [0, 96], sizes = [8, 32], strides = [1, 1]} : vector<8x128xf32> to vector<8x32xf32>
    %428 = math.tanh %427 : vector<8x32xf32>
    %429 = vector.extract_strided_slice %426 {offsets = [0, 32], sizes = [8, 32], strides = [1, 1]} : vector<8x96xf32> to vector<8x32xf32>
    %430 = arith.mulf %429, %414 : vector<8x32xf32>
    %431 = vector.extract_strided_slice %426 {offsets = [0, 0], sizes = [8, 32], strides = [1, 1]} : vector<8x96xf32> to vector<8x32xf32>
    %432 = arith.mulf %431, %428 : vector<8x32xf32>
    %433 = arith.addf %430, %432 : vector<8x32xf32>
    %434 = vector.extract_strided_slice %426 {offsets = [0, 64], sizes = [8, 32], strides = [1, 1]} : vector<8x96xf32> to vector<8x32xf32>
    %435 = math.tanh %433 : vector<8x32xf32>
    %436 = arith.mulf %434, %435 : vector<8x32xf32>
    %437 = vector.extract_strided_slice %341 {offsets = [40, 0], sizes = [8, 128], strides = [1, 1]} : vector<56x128xf32> to vector<8x128xf32>
    %cst_78 = arith.constant dense<0.000000e+00> : vector<8x128xf32>
    %438 = tpu.matmul %436, %337, %cst_78 {dimension_numbers = #tpu.dot_dimension_numbers<[1], [0], [0], [1], [0, 0, 1, 1], [], []>} : vector<8x32xf32>, vector<32x128xf32>, vector<8x128xf32> -> vector<8x128xf32>
    %439 = arith.addf %437, %438 : vector<8x128xf32>
    %440 = vector.extract_strided_slice %439 {offsets = [0, 0], sizes = [8, 96], strides = [1, 1]} : vector<8x128xf32> to vector<8x96xf32>
    %441 = arith.negf %440 : vector<8x96xf32>
    %442 = math.exp %441 : vector<8x96xf32>
    %cst_79 = arith.constant 1.000000e+00 : f32
    %443 = vector.broadcast %cst_79 : f32 to vector<8x96xf32>
    %444 = arith.addf %443, %442 : vector<8x96xf32>
    %445 = arith.divf %443, %444 : vector<8x96xf32>
    %446 = vector.extract_strided_slice %439 {offsets = [0, 96], sizes = [8, 32], strides = [1, 1]} : vector<8x128xf32> to vector<8x32xf32>
    %447 = math.tanh %446 : vector<8x32xf32>
    %448 = vector.extract_strided_slice %445 {offsets = [0, 32], sizes = [8, 32], strides = [1, 1]} : vector<8x96xf32> to vector<8x32xf32>
    %449 = arith.mulf %448, %433 : vector<8x32xf32>
    %450 = vector.extract_strided_slice %445 {offsets = [0, 0], sizes = [8, 32], strides = [1, 1]} : vector<8x96xf32> to vector<8x32xf32>
    %451 = arith.mulf %450, %447 : vector<8x32xf32>
    %452 = arith.addf %449, %451 : vector<8x32xf32>
    %453 = vector.extract_strided_slice %445 {offsets = [0, 64], sizes = [8, 32], strides = [1, 1]} : vector<8x96xf32> to vector<8x32xf32>
    %454 = math.tanh %452 : vector<8x32xf32>
    %455 = arith.mulf %453, %454 : vector<8x32xf32>
    %456 = vector.extract_strided_slice %341 {offsets = [48, 0], sizes = [8, 128], strides = [1, 1]} : vector<56x128xf32> to vector<8x128xf32>
    %cst_80 = arith.constant dense<0.000000e+00> : vector<8x128xf32>
    %457 = tpu.matmul %455, %337, %cst_80 {dimension_numbers = #tpu.dot_dimension_numbers<[1], [0], [0], [1], [0, 0, 1, 1], [], []>} : vector<8x32xf32>, vector<32x128xf32>, vector<8x128xf32> -> vector<8x128xf32>
    %458 = arith.addf %456, %457 : vector<8x128xf32>
    %459 = vector.extract_strided_slice %458 {offsets = [0, 0], sizes = [8, 96], strides = [1, 1]} : vector<8x128xf32> to vector<8x96xf32>
    %460 = arith.negf %459 : vector<8x96xf32>
    %461 = math.exp %460 : vector<8x96xf32>
    %cst_81 = arith.constant 1.000000e+00 : f32
    %462 = vector.broadcast %cst_81 : f32 to vector<8x96xf32>
    %463 = arith.addf %462, %461 : vector<8x96xf32>
    %464 = arith.divf %462, %463 : vector<8x96xf32>
    %465 = vector.extract_strided_slice %458 {offsets = [0, 96], sizes = [8, 32], strides = [1, 1]} : vector<8x128xf32> to vector<8x32xf32>
    %466 = math.tanh %465 : vector<8x32xf32>
    %467 = vector.extract_strided_slice %464 {offsets = [0, 32], sizes = [8, 32], strides = [1, 1]} : vector<8x96xf32> to vector<8x32xf32>
    %468 = arith.mulf %467, %452 : vector<8x32xf32>
    %469 = vector.extract_strided_slice %464 {offsets = [0, 0], sizes = [8, 32], strides = [1, 1]} : vector<8x96xf32> to vector<8x32xf32>
    %470 = arith.mulf %469, %466 : vector<8x32xf32>
    %471 = arith.addf %468, %470 : vector<8x32xf32>
    %472 = vector.extract_strided_slice %464 {offsets = [0, 64], sizes = [8, 32], strides = [1, 1]} : vector<8x96xf32> to vector<8x32xf32>
    %473 = math.tanh %471 : vector<8x32xf32>
    %474 = arith.mulf %472, %473 : vector<8x32xf32>
    %c0_82 = arith.constant 0 : index
    %c0_83 = arith.constant 0 : index
    %475 = vector.load %arg14[%c0_82, %c0_83] : memref<32x128xf32, #tpu.memory_space<vmem>>, vector<32x128xf32>
    %c0_84 = arith.constant 0 : index
    %c0_85 = arith.constant 0 : index
    %476 = vector.load %arg15[%c0_84, %c0_85] : memref<32x128xf32, #tpu.memory_space<vmem>>, vector<32x128xf32>
    %c0_86 = arith.constant 0 : index
    %c0_87 = arith.constant 0 : index
    %477 = vector.load %arg16[%c0_86, %c0_87] : memref<1x128xf32, #tpu.memory_space<vmem>>, vector<1x128xf32>
    %cst_88 = arith.constant 0.000000e+00 : f32
    %478 = vector.broadcast %cst_88 : f32 to vector<8x32xf32>
    %cst_89 = arith.constant dense<0.000000e+00> : vector<8x128xf32>
    %479 = tpu.matmul %360, %475, %cst_89 {dimension_numbers = #tpu.dot_dimension_numbers<[1], [0], [0], [1], [0, 0, 1, 1], [], []>} : vector<8x32xf32>, vector<32x128xf32>, vector<8x128xf32> -> vector<8x128xf32>
    %480 = vector.broadcast %477 : vector<1x128xf32> to vector<8x128xf32>
    %481 = arith.addf %479, %480 : vector<8x128xf32>
    %cst_90 = arith.constant dense<0.000000e+00> : vector<8x128xf32>
    %482 = tpu.matmul %331, %476, %cst_90 {dimension_numbers = #tpu.dot_dimension_numbers<[1], [0], [0], [1], [0, 0, 1, 1], [], []>} : vector<8x32xf32>, vector<32x128xf32>, vector<8x128xf32> -> vector<8x128xf32>
    %483 = arith.addf %481, %482 : vector<8x128xf32>
    %484 = vector.extract_strided_slice %483 {offsets = [0, 0], sizes = [8, 96], strides = [1, 1]} : vector<8x128xf32> to vector<8x96xf32>
    %485 = arith.negf %484 : vector<8x96xf32>
    %486 = math.exp %485 : vector<8x96xf32>
    %cst_91 = arith.constant 1.000000e+00 : f32
    %487 = vector.broadcast %cst_91 : f32 to vector<8x96xf32>
    %488 = arith.addf %487, %486 : vector<8x96xf32>
    %489 = arith.divf %487, %488 : vector<8x96xf32>
    %490 = vector.extract_strided_slice %483 {offsets = [0, 96], sizes = [8, 32], strides = [1, 1]} : vector<8x128xf32> to vector<8x32xf32>
    %491 = math.tanh %490 : vector<8x32xf32>
    %492 = vector.extract_strided_slice %489 {offsets = [0, 32], sizes = [8, 32], strides = [1, 1]} : vector<8x96xf32> to vector<8x32xf32>
    %493 = arith.mulf %492, %328 : vector<8x32xf32>
    %494 = vector.extract_strided_slice %489 {offsets = [0, 0], sizes = [8, 32], strides = [1, 1]} : vector<8x96xf32> to vector<8x32xf32>
    %495 = arith.mulf %494, %491 : vector<8x32xf32>
    %496 = arith.addf %493, %495 : vector<8x32xf32>
    %497 = vector.extract_strided_slice %489 {offsets = [0, 64], sizes = [8, 32], strides = [1, 1]} : vector<8x96xf32> to vector<8x32xf32>
    %498 = math.tanh %496 : vector<8x32xf32>
    %499 = arith.mulf %497, %498 : vector<8x32xf32>
    %500 = vector.extract_strided_slice %335 {offsets = [0, 0], sizes = [8, 1], strides = [1, 1]} : vector<56x1xf32> to vector<8x1xf32>
    %501 = vector.broadcast %500 : vector<8x1xf32> to vector<8x32xf32>
    %502 = arith.mulf %501, %499 : vector<8x32xf32>
    %503 = arith.addf %478, %502 : vector<8x32xf32>
    %cst_92 = arith.constant dense<0.000000e+00> : vector<8x128xf32>
    %504 = tpu.matmul %379, %475, %cst_92 {dimension_numbers = #tpu.dot_dimension_numbers<[1], [0], [0], [1], [0, 0, 1, 1], [], []>} : vector<8x32xf32>, vector<32x128xf32>, vector<8x128xf32> -> vector<8x128xf32>
    %505 = vector.broadcast %477 : vector<1x128xf32> to vector<8x128xf32>
    %506 = arith.addf %504, %505 : vector<8x128xf32>
    %cst_93 = arith.constant dense<0.000000e+00> : vector<8x128xf32>
    %507 = tpu.matmul %499, %476, %cst_93 {dimension_numbers = #tpu.dot_dimension_numbers<[1], [0], [0], [1], [0, 0, 1, 1], [], []>} : vector<8x32xf32>, vector<32x128xf32>, vector<8x128xf32> -> vector<8x128xf32>
    %508 = arith.addf %506, %507 : vector<8x128xf32>
    %509 = vector.extract_strided_slice %508 {offsets = [0, 0], sizes = [8, 96], strides = [1, 1]} : vector<8x128xf32> to vector<8x96xf32>
    %510 = arith.negf %509 : vector<8x96xf32>
    %511 = math.exp %510 : vector<8x96xf32>
    %cst_94 = arith.constant 1.000000e+00 : f32
    %512 = vector.broadcast %cst_94 : f32 to vector<8x96xf32>
    %513 = arith.addf %512, %511 : vector<8x96xf32>
    %514 = arith.divf %512, %513 : vector<8x96xf32>
    %515 = vector.extract_strided_slice %508 {offsets = [0, 96], sizes = [8, 32], strides = [1, 1]} : vector<8x128xf32> to vector<8x32xf32>
    %516 = math.tanh %515 : vector<8x32xf32>
    %517 = vector.extract_strided_slice %514 {offsets = [0, 32], sizes = [8, 32], strides = [1, 1]} : vector<8x96xf32> to vector<8x32xf32>
    %518 = arith.mulf %517, %496 : vector<8x32xf32>
    %519 = vector.extract_strided_slice %514 {offsets = [0, 0], sizes = [8, 32], strides = [1, 1]} : vector<8x96xf32> to vector<8x32xf32>
    %520 = arith.mulf %519, %516 : vector<8x32xf32>
    %521 = arith.addf %518, %520 : vector<8x32xf32>
    %522 = vector.extract_strided_slice %514 {offsets = [0, 64], sizes = [8, 32], strides = [1, 1]} : vector<8x96xf32> to vector<8x32xf32>
    %523 = math.tanh %521 : vector<8x32xf32>
    %524 = arith.mulf %522, %523 : vector<8x32xf32>
    %525 = vector.extract_strided_slice %335 {offsets = [8, 0], sizes = [8, 1], strides = [1, 1]} : vector<56x1xf32> to vector<8x1xf32>
    %526 = vector.broadcast %525 : vector<8x1xf32> to vector<8x32xf32>
    %527 = arith.mulf %526, %524 : vector<8x32xf32>
    %528 = arith.addf %503, %527 : vector<8x32xf32>
    %cst_95 = arith.constant dense<0.000000e+00> : vector<8x128xf32>
    %529 = tpu.matmul %398, %475, %cst_95 {dimension_numbers = #tpu.dot_dimension_numbers<[1], [0], [0], [1], [0, 0, 1, 1], [], []>} : vector<8x32xf32>, vector<32x128xf32>, vector<8x128xf32> -> vector<8x128xf32>
    %530 = vector.broadcast %477 : vector<1x128xf32> to vector<8x128xf32>
    %531 = arith.addf %529, %530 : vector<8x128xf32>
    %cst_96 = arith.constant dense<0.000000e+00> : vector<8x128xf32>
    %532 = tpu.matmul %524, %476, %cst_96 {dimension_numbers = #tpu.dot_dimension_numbers<[1], [0], [0], [1], [0, 0, 1, 1], [], []>} : vector<8x32xf32>, vector<32x128xf32>, vector<8x128xf32> -> vector<8x128xf32>
    %533 = arith.addf %531, %532 : vector<8x128xf32>
    %534 = vector.extract_strided_slice %533 {offsets = [0, 0], sizes = [8, 96], strides = [1, 1]} : vector<8x128xf32> to vector<8x96xf32>
    %535 = arith.negf %534 : vector<8x96xf32>
    %536 = math.exp %535 : vector<8x96xf32>
    %cst_97 = arith.constant 1.000000e+00 : f32
    %537 = vector.broadcast %cst_97 : f32 to vector<8x96xf32>
    %538 = arith.addf %537, %536 : vector<8x96xf32>
    %539 = arith.divf %537, %538 : vector<8x96xf32>
    %540 = vector.extract_strided_slice %533 {offsets = [0, 96], sizes = [8, 32], strides = [1, 1]} : vector<8x128xf32> to vector<8x32xf32>
    %541 = math.tanh %540 : vector<8x32xf32>
    %542 = vector.extract_strided_slice %539 {offsets = [0, 32], sizes = [8, 32], strides = [1, 1]} : vector<8x96xf32> to vector<8x32xf32>
    %543 = arith.mulf %542, %521 : vector<8x32xf32>
    %544 = vector.extract_strided_slice %539 {offsets = [0, 0], sizes = [8, 32], strides = [1, 1]} : vector<8x96xf32> to vector<8x32xf32>
    %545 = arith.mulf %544, %541 : vector<8x32xf32>
    %546 = arith.addf %543, %545 : vector<8x32xf32>
    %547 = vector.extract_strided_slice %539 {offsets = [0, 64], sizes = [8, 32], strides = [1, 1]} : vector<8x96xf32> to vector<8x32xf32>
    %548 = math.tanh %546 : vector<8x32xf32>
    %549 = arith.mulf %547, %548 : vector<8x32xf32>
    %550 = vector.extract_strided_slice %335 {offsets = [16, 0], sizes = [8, 1], strides = [1, 1]} : vector<56x1xf32> to vector<8x1xf32>
    %551 = vector.broadcast %550 : vector<8x1xf32> to vector<8x32xf32>
    %552 = arith.mulf %551, %549 : vector<8x32xf32>
    %553 = arith.addf %528, %552 : vector<8x32xf32>
    %cst_98 = arith.constant dense<0.000000e+00> : vector<8x128xf32>
    %554 = tpu.matmul %417, %475, %cst_98 {dimension_numbers = #tpu.dot_dimension_numbers<[1], [0], [0], [1], [0, 0, 1, 1], [], []>} : vector<8x32xf32>, vector<32x128xf32>, vector<8x128xf32> -> vector<8x128xf32>
    %555 = vector.broadcast %477 : vector<1x128xf32> to vector<8x128xf32>
    %556 = arith.addf %554, %555 : vector<8x128xf32>
    %cst_99 = arith.constant dense<0.000000e+00> : vector<8x128xf32>
    %557 = tpu.matmul %549, %476, %cst_99 {dimension_numbers = #tpu.dot_dimension_numbers<[1], [0], [0], [1], [0, 0, 1, 1], [], []>} : vector<8x32xf32>, vector<32x128xf32>, vector<8x128xf32> -> vector<8x128xf32>
    %558 = arith.addf %556, %557 : vector<8x128xf32>
    %559 = vector.extract_strided_slice %558 {offsets = [0, 0], sizes = [8, 96], strides = [1, 1]} : vector<8x128xf32> to vector<8x96xf32>
    %560 = arith.negf %559 : vector<8x96xf32>
    %561 = math.exp %560 : vector<8x96xf32>
    %cst_100 = arith.constant 1.000000e+00 : f32
    %562 = vector.broadcast %cst_100 : f32 to vector<8x96xf32>
    %563 = arith.addf %562, %561 : vector<8x96xf32>
    %564 = arith.divf %562, %563 : vector<8x96xf32>
    %565 = vector.extract_strided_slice %558 {offsets = [0, 96], sizes = [8, 32], strides = [1, 1]} : vector<8x128xf32> to vector<8x32xf32>
    %566 = math.tanh %565 : vector<8x32xf32>
    %567 = vector.extract_strided_slice %564 {offsets = [0, 32], sizes = [8, 32], strides = [1, 1]} : vector<8x96xf32> to vector<8x32xf32>
    %568 = arith.mulf %567, %546 : vector<8x32xf32>
    %569 = vector.extract_strided_slice %564 {offsets = [0, 0], sizes = [8, 32], strides = [1, 1]} : vector<8x96xf32> to vector<8x32xf32>
    %570 = arith.mulf %569, %566 : vector<8x32xf32>
    %571 = arith.addf %568, %570 : vector<8x32xf32>
    %572 = vector.extract_strided_slice %564 {offsets = [0, 64], sizes = [8, 32], strides = [1, 1]} : vector<8x96xf32> to vector<8x32xf32>
    %573 = math.tanh %571 : vector<8x32xf32>
    %574 = arith.mulf %572, %573 : vector<8x32xf32>
    %575 = vector.extract_strided_slice %335 {offsets = [24, 0], sizes = [8, 1], strides = [1, 1]} : vector<56x1xf32> to vector<8x1xf32>
    %576 = vector.broadcast %575 : vector<8x1xf32> to vector<8x32xf32>
    %577 = arith.mulf %576, %574 : vector<8x32xf32>
    %578 = arith.addf %553, %577 : vector<8x32xf32>
    %cst_101 = arith.constant dense<0.000000e+00> : vector<8x128xf32>
    %579 = tpu.matmul %436, %475, %cst_101 {dimension_numbers = #tpu.dot_dimension_numbers<[1], [0], [0], [1], [0, 0, 1, 1], [], []>} : vector<8x32xf32>, vector<32x128xf32>, vector<8x128xf32> -> vector<8x128xf32>
    %580 = vector.broadcast %477 : vector<1x128xf32> to vector<8x128xf32>
    %581 = arith.addf %579, %580 : vector<8x128xf32>
    %cst_102 = arith.constant dense<0.000000e+00> : vector<8x128xf32>
    %582 = tpu.matmul %574, %476, %cst_102 {dimension_numbers = #tpu.dot_dimension_numbers<[1], [0], [0], [1], [0, 0, 1, 1], [], []>} : vector<8x32xf32>, vector<32x128xf32>, vector<8x128xf32> -> vector<8x128xf32>
    %583 = arith.addf %581, %582 : vector<8x128xf32>
    %584 = vector.extract_strided_slice %583 {offsets = [0, 0], sizes = [8, 96], strides = [1, 1]} : vector<8x128xf32> to vector<8x96xf32>
    %585 = arith.negf %584 : vector<8x96xf32>
    %586 = math.exp %585 : vector<8x96xf32>
    %cst_103 = arith.constant 1.000000e+00 : f32
    %587 = vector.broadcast %cst_103 : f32 to vector<8x96xf32>
    %588 = arith.addf %587, %586 : vector<8x96xf32>
    %589 = arith.divf %587, %588 : vector<8x96xf32>
    %590 = vector.extract_strided_slice %583 {offsets = [0, 96], sizes = [8, 32], strides = [1, 1]} : vector<8x128xf32> to vector<8x32xf32>
    %591 = math.tanh %590 : vector<8x32xf32>
    %592 = vector.extract_strided_slice %589 {offsets = [0, 32], sizes = [8, 32], strides = [1, 1]} : vector<8x96xf32> to vector<8x32xf32>
    %593 = arith.mulf %592, %571 : vector<8x32xf32>
    %594 = vector.extract_strided_slice %589 {offsets = [0, 0], sizes = [8, 32], strides = [1, 1]} : vector<8x96xf32> to vector<8x32xf32>
    %595 = arith.mulf %594, %591 : vector<8x32xf32>
    %596 = arith.addf %593, %595 : vector<8x32xf32>
    %597 = vector.extract_strided_slice %589 {offsets = [0, 64], sizes = [8, 32], strides = [1, 1]} : vector<8x96xf32> to vector<8x32xf32>
    %598 = math.tanh %596 : vector<8x32xf32>
    %599 = arith.mulf %597, %598 : vector<8x32xf32>
    %600 = vector.extract_strided_slice %335 {offsets = [32, 0], sizes = [8, 1], strides = [1, 1]} : vector<56x1xf32> to vector<8x1xf32>
    %601 = vector.broadcast %600 : vector<8x1xf32> to vector<8x32xf32>
    %602 = arith.mulf %601, %599 : vector<8x32xf32>
    %603 = arith.addf %578, %602 : vector<8x32xf32>
    %cst_104 = arith.constant dense<0.000000e+00> : vector<8x128xf32>
    %604 = tpu.matmul %455, %475, %cst_104 {dimension_numbers = #tpu.dot_dimension_numbers<[1], [0], [0], [1], [0, 0, 1, 1], [], []>} : vector<8x32xf32>, vector<32x128xf32>, vector<8x128xf32> -> vector<8x128xf32>
    %605 = vector.broadcast %477 : vector<1x128xf32> to vector<8x128xf32>
    %606 = arith.addf %604, %605 : vector<8x128xf32>
    %cst_105 = arith.constant dense<0.000000e+00> : vector<8x128xf32>
    %607 = tpu.matmul %599, %476, %cst_105 {dimension_numbers = #tpu.dot_dimension_numbers<[1], [0], [0], [1], [0, 0, 1, 1], [], []>} : vector<8x32xf32>, vector<32x128xf32>, vector<8x128xf32> -> vector<8x128xf32>
    %608 = arith.addf %606, %607 : vector<8x128xf32>
    %609 = vector.extract_strided_slice %608 {offsets = [0, 0], sizes = [8, 96], strides = [1, 1]} : vector<8x128xf32> to vector<8x96xf32>
    %610 = arith.negf %609 : vector<8x96xf32>
    %611 = math.exp %610 : vector<8x96xf32>
    %cst_106 = arith.constant 1.000000e+00 : f32
    %612 = vector.broadcast %cst_106 : f32 to vector<8x96xf32>
    %613 = arith.addf %612, %611 : vector<8x96xf32>
    %614 = arith.divf %612, %613 : vector<8x96xf32>
    %615 = vector.extract_strided_slice %608 {offsets = [0, 96], sizes = [8, 32], strides = [1, 1]} : vector<8x128xf32> to vector<8x32xf32>
    %616 = math.tanh %615 : vector<8x32xf32>
    %617 = vector.extract_strided_slice %614 {offsets = [0, 32], sizes = [8, 32], strides = [1, 1]} : vector<8x96xf32> to vector<8x32xf32>
    %618 = arith.mulf %617, %596 : vector<8x32xf32>
    %619 = vector.extract_strided_slice %614 {offsets = [0, 0], sizes = [8, 32], strides = [1, 1]} : vector<8x96xf32> to vector<8x32xf32>
    %620 = arith.mulf %619, %616 : vector<8x32xf32>
    %621 = arith.addf %618, %620 : vector<8x32xf32>
    %622 = vector.extract_strided_slice %614 {offsets = [0, 64], sizes = [8, 32], strides = [1, 1]} : vector<8x96xf32> to vector<8x32xf32>
    %623 = math.tanh %621 : vector<8x32xf32>
    %624 = arith.mulf %622, %623 : vector<8x32xf32>
    %625 = vector.extract_strided_slice %335 {offsets = [40, 0], sizes = [8, 1], strides = [1, 1]} : vector<56x1xf32> to vector<8x1xf32>
    %626 = vector.broadcast %625 : vector<8x1xf32> to vector<8x32xf32>
    %627 = arith.mulf %626, %624 : vector<8x32xf32>
    %628 = arith.addf %603, %627 : vector<8x32xf32>
    %cst_107 = arith.constant dense<0.000000e+00> : vector<8x128xf32>
    %629 = tpu.matmul %474, %475, %cst_107 {dimension_numbers = #tpu.dot_dimension_numbers<[1], [0], [0], [1], [0, 0, 1, 1], [], []>} : vector<8x32xf32>, vector<32x128xf32>, vector<8x128xf32> -> vector<8x128xf32>
    %630 = vector.broadcast %477 : vector<1x128xf32> to vector<8x128xf32>
    %631 = arith.addf %629, %630 : vector<8x128xf32>
    %cst_108 = arith.constant dense<0.000000e+00> : vector<8x128xf32>
    %632 = tpu.matmul %624, %476, %cst_108 {dimension_numbers = #tpu.dot_dimension_numbers<[1], [0], [0], [1], [0, 0, 1, 1], [], []>} : vector<8x32xf32>, vector<32x128xf32>, vector<8x128xf32> -> vector<8x128xf32>
    %633 = arith.addf %631, %632 : vector<8x128xf32>
    %634 = vector.extract_strided_slice %633 {offsets = [0, 0], sizes = [8, 96], strides = [1, 1]} : vector<8x128xf32> to vector<8x96xf32>
    %635 = arith.negf %634 : vector<8x96xf32>
    %636 = math.exp %635 : vector<8x96xf32>
    %cst_109 = arith.constant 1.000000e+00 : f32
    %637 = vector.broadcast %cst_109 : f32 to vector<8x96xf32>
    %638 = arith.addf %637, %636 : vector<8x96xf32>
    %639 = arith.divf %637, %638 : vector<8x96xf32>
    %640 = vector.extract_strided_slice %633 {offsets = [0, 96], sizes = [8, 32], strides = [1, 1]} : vector<8x128xf32> to vector<8x32xf32>
    %641 = math.tanh %640 : vector<8x32xf32>
    %642 = vector.extract_strided_slice %639 {offsets = [0, 32], sizes = [8, 32], strides = [1, 1]} : vector<8x96xf32> to vector<8x32xf32>
    %643 = arith.mulf %642, %621 : vector<8x32xf32>
    %644 = vector.extract_strided_slice %639 {offsets = [0, 0], sizes = [8, 32], strides = [1, 1]} : vector<8x96xf32> to vector<8x32xf32>
    %645 = arith.mulf %644, %641 : vector<8x32xf32>
    %646 = arith.addf %643, %645 : vector<8x32xf32>
    %647 = vector.extract_strided_slice %639 {offsets = [0, 64], sizes = [8, 32], strides = [1, 1]} : vector<8x96xf32> to vector<8x32xf32>
    %648 = math.tanh %646 : vector<8x32xf32>
    %649 = arith.mulf %647, %648 : vector<8x32xf32>
    %650 = vector.extract_strided_slice %335 {offsets = [48, 0], sizes = [8, 1], strides = [1, 1]} : vector<56x1xf32> to vector<8x1xf32>
    %651 = vector.broadcast %650 : vector<8x1xf32> to vector<8x32xf32>
    %652 = arith.mulf %651, %649 : vector<8x32xf32>
    %653 = arith.addf %628, %652 : vector<8x32xf32>
    %c0_110 = arith.constant 0 : index
    %c0_111 = arith.constant 0 : index
    %654 = vector.load %arg17[%c0_110, %c0_111] : memref<32x160xf32, #tpu.memory_space<vmem>>, vector<32x160xf32>
    %cst_112 = arith.constant dense<0.000000e+00> : vector<8x160xf32>
    %655 = tpu.matmul %653, %654, %cst_112 {dimension_numbers = #tpu.dot_dimension_numbers<[1], [0], [0], [1], [0, 0, 1, 1], [], []>} : vector<8x32xf32>, vector<32x160xf32>, vector<8x160xf32> -> vector<8x160xf32>
    %c0_113 = arith.constant 0 : index
    %c0_114 = arith.constant 0 : index
    %656 = vector.load %arg18[%c0_113, %c0_114] : memref<1x160xf32, #tpu.memory_space<vmem>>, vector<1x160xf32>
    %657 = vector.broadcast %656 : vector<1x160xf32> to vector<8x160xf32>
    %658 = arith.addf %655, %657 : vector<8x160xf32>
    %c0_115 = arith.constant 0 : index
    %c0_116 = arith.constant 0 : index
    %659 = vector.load %arg19[%c0_115, %c0_116] : memref<160x64xf32, #tpu.memory_space<vmem>>, vector<160x64xf32>
    %cst_117 = arith.constant dense<0.000000e+00> : vector<8x64xf32>
    %660 = tpu.matmul %658, %659, %cst_117 {dimension_numbers = #tpu.dot_dimension_numbers<[1], [0], [0], [1], [0, 0, 1, 1], [], []>} : vector<8x160xf32>, vector<160x64xf32>, vector<8x64xf32> -> vector<8x64xf32>
    %c0_118 = arith.constant 0 : index
    %c0_119 = arith.constant 0 : index
    %661 = vector.load %arg20[%c0_118, %c0_119] : memref<1x64xf32, #tpu.memory_space<vmem>>, vector<1x64xf32>
    %662 = vector.broadcast %661 : vector<1x64xf32> to vector<8x64xf32>
    %663 = arith.addf %660, %662 : vector<8x64xf32>
    %c0_120 = arith.constant 0 : index
    %c0_121 = arith.constant 0 : index
    %664 = vector.load %arg21[%c0_120, %c0_121] : memref<64x12xf32, #tpu.memory_space<vmem>>, vector<64x12xf32>
    %cst_122 = arith.constant dense<0.000000e+00> : vector<8x12xf32>
    %665 = tpu.matmul %663, %664, %cst_122 {dimension_numbers = #tpu.dot_dimension_numbers<[1], [0], [0], [1], [0, 0, 1, 1], [], []>} : vector<8x64xf32>, vector<64x12xf32>, vector<8x12xf32> -> vector<8x12xf32>
    %c0_123 = arith.constant 0 : index
    %c0_124 = arith.constant 0 : index
    %666 = vector.load %arg22[%c0_123, %c0_124] : memref<1x12xf32, #tpu.memory_space<vmem>>, vector<1x12xf32>
    %667 = vector.broadcast %666 : vector<1x12xf32> to vector<8x12xf32>
    %668 = arith.addf %665, %667 : vector<8x12xf32>
    %cst_125 = arith.constant dense<0xFF800000> : vector<8xf32>
    %669 = vector.multi_reduction <maximumf>, %668, %cst_125 [1] : vector<8x12xf32> to vector<8xf32>
    %670 = vector.shape_cast %669 : vector<8xf32> to vector<8x1xf32>
    %671 = vector.broadcast %670 : vector<8x1xf32> to vector<8x12xf32>
    %672 = arith.subf %668, %671 : vector<8x12xf32>
    %673 = math.exp %672 : vector<8x12xf32>
    %cst_126 = arith.constant dense<0.000000e+00> : vector<8xf32>
    %674 = vector.multi_reduction <add>, %673, %cst_126 [1] : vector<8x12xf32> to vector<8xf32>
    %675 = vector.shape_cast %674 : vector<8xf32> to vector<8x1xf32>
    %676 = tpu.reciprocal %675 {approx = true} : vector<8x1xf32> -> vector<8x1xf32>
    %677 = vector.broadcast %676 : vector<8x1xf32> to vector<8x12xf32>
    %678 = arith.mulf %673, %677 : vector<8x12xf32>
    %cst_127 = arith.constant dense<0xFF800000> : vector<8xf32>
    %679 = vector.multi_reduction <maximumf>, %678, %cst_127 [1] : vector<8x12xf32> to vector<8xf32>
    %680 = vector.shape_cast %679 : vector<8xf32> to vector<8x1xf32>
    %681 = vector.broadcast %680 : vector<8x1xf32> to vector<8x12xf32>
    %682 = arith.subf %678, %681 : vector<8x12xf32>
    %683 = math.exp %682 : vector<8x12xf32>
    %cst_128 = arith.constant dense<0.000000e+00> : vector<8xf32>
    %684 = vector.multi_reduction <add>, %683, %cst_128 [1] : vector<8x12xf32> to vector<8xf32>
    %685 = vector.shape_cast %684 : vector<8xf32> to vector<8x1xf32>
    %686 = math.log %685 : vector<8x1xf32>
    %687 = arith.addf %686, %680 : vector<8x1xf32>
    %c0_129 = arith.constant 0 : index
    %c0_130 = arith.constant 0 : index
    %688 = vector.load %arg23[%c0_129, %c0_130] : memref<1x12xf32, #tpu.memory_space<vmem>>, vector<1x12xf32>
    %689 = vector.broadcast %688 : vector<1x12xf32> to vector<8x12xf32>
    %690 = arith.mulf %678, %689 : vector<8x12xf32>
    %cst_131 = arith.constant dense<0.000000e+00> : vector<8xf32>
    %691 = vector.multi_reduction <add>, %690, %cst_131 [1] : vector<8x12xf32> to vector<8xf32>
    %692 = vector.shape_cast %691 : vector<8xf32> to vector<8x1xf32>
    %693 = arith.subf %687, %692 : vector<8x1xf32>
    %c0_132 = arith.constant 0 : index
    %c0_133 = arith.constant 0 : index
    %c0_134 = arith.constant 0 : index
    %694 = vector.load %arg4[%c0_132, %c0_133, %c0_134] : memref<1x8x1xf32, #tpu.memory_space<vmem>>, vector<1x8x1xf32>
    %695 = vector.shape_cast %694 : vector<1x8x1xf32> to vector<8x1xf32>
    %696 = arith.mulf %693, %695 : vector<8x1xf32>
    %cst_135 = arith.constant dense<0.000000e+00> : vector<1xf32>
    %697 = vector.multi_reduction <add>, %696, %cst_135 [0] : vector<8x1xf32> to vector<1xf32>
    %698 = vector.shape_cast %697 : vector<1xf32> to vector<1x1xf32>
    %c0_136 = arith.constant 0 : index
    %c0_137 = arith.constant 0 : index
    %c0_138 = arith.constant 0 : index
    %699 = vector.load %arg24[%c0_136, %c0_137, %c0_138] : memref<1x1x1xf32, #tpu.memory_space<vmem>>, vector<1x1x1xf32>
    %700 = vector.shape_cast %699 : vector<1x1x1xf32> to vector<1x1xf32>
    %701 = vector.shape_cast %698 : vector<1x1xf32> to vector<1x1x1xf32>
    tpu.vector_store %arg24[%c0_136, %c0_137, %c0_138], %701 {strides = array<i32>} : memref<1x1x1xf32, #tpu.memory_space<vmem>>, vector<1x1x1xf32>,
    return
  }
  func.func @transform_0(%arg0: i32) -> (i32, i32, i32) {
    %c0_i32 = arith.constant 0 : i32
    %c0_i32_0 = arith.constant 0 : i32
    %c0_i32_1 = arith.constant 0 : i32
    return %arg0, %c0_i32, %c0_i32_0 : i32, i32, i32
  }
  func.func @transform_1(%arg0: i32) -> (i32, i32, i32) {
    %c0_i32 = arith.constant 0 : i32
    %c0_i32_0 = arith.constant 0 : i32
    %c0_i32_1 = arith.constant 0 : i32
    return %arg0, %c0_i32, %c0_i32_0 : i32, i32, i32
  }
  func.func @transform_2(%arg0: i32) -> (i32, i32, i32) {
    %c0_i32 = arith.constant 0 : i32
    %c0_i32_0 = arith.constant 0 : i32
    %c0_i32_1 = arith.constant 0 : i32
    return %arg0, %c0_i32, %c0_i32_0 : i32, i32, i32
  }
  func.func @transform_3(%arg0: i32) -> (i32, i32, i32) {
    %c0_i32 = arith.constant 0 : i32
    %c0_i32_0 = arith.constant 0 : i32
    %c0_i32_1 = arith.constant 0 : i32
    return %arg0, %c0_i32, %c0_i32_0 : i32, i32, i32
  }
  func.func @transform_4(%arg0: i32) -> (i32, i32) {
    %c0_i32 = arith.constant 0 : i32
    %c0_i32_0 = arith.constant 0 : i32
    %c0_i32_1 = arith.constant 0 : i32
    return %c0_i32, %c0_i32_0 : i32, i32
  }
  func.func @transform_5(%arg0: i32) -> (i32, i32) {
    %c0_i32 = arith.constant 0 : i32
    %c0_i32_0 = arith.constant 0 : i32
    %c0_i32_1 = arith.constant 0 : i32
    return %c0_i32, %c0_i32_0 : i32, i32
  }
  func.func @transform_6(%arg0: i32) -> (i32, i32) {
    %c0_i32 = arith.constant 0 : i32
    %c0_i32_0 = arith.constant 0 : i32
    %c0_i32_1 = arith.constant 0 : i32
    return %c0_i32, %c0_i32_0 : i32, i32
  }
  func.func @transform_7(%arg0: i32) -> (i32, i32) {
    %c0_i32 = arith.constant 0 : i32
    %c0_i32_0 = arith.constant 0 : i32
    %c0_i32_1 = arith.constant 0 : i32
    return %c0_i32, %c0_i32_0 : i32, i32
  }
  func.func @transform_8(%arg0: i32) -> (i32, i32) {
    %c0_i32 = arith.constant 0 : i32
    %c0_i32_0 = arith.constant 0 : i32
    %c0_i32_1 = arith.constant 0 : i32
    return %c0_i32, %c0_i32_0 : i32, i32
  }
  func.func @transform_9(%arg0: i32) -> (i32, i32) {
    %c0_i32 = arith.constant 0 : i32
    %c0_i32_0 = arith.constant 0 : i32
    %c0_i32_1 = arith.constant 0 : i32
    return %c0_i32, %c0_i32_0 : i32, i32
  }
  func.func @transform_10(%arg0: i32) -> (i32, i32) {
    %c0_i32 = arith.constant 0 : i32
    %c0_i32_0 = arith.constant 0 : i32
    %c0_i32_1 = arith.constant 0 : i32
    return %c0_i32, %c0_i32_0 : i32, i32
  }
  func.func @transform_11(%arg0: i32) -> (i32, i32) {
    %c0_i32 = arith.constant 0 : i32
    %c0_i32_0 = arith.constant 0 : i32
    %c0_i32_1 = arith.constant 0 : i32
    return %c0_i32, %c0_i32_0 : i32, i32
  }
  func.func @transform_12(%arg0: i32) -> (i32, i32) {
    %c0_i32 = arith.constant 0 : i32
    %c0_i32_0 = arith.constant 0 : i32
    %c0_i32_1 = arith.constant 0 : i32
    return %c0_i32, %c0_i32_0 : i32, i32
  }
  func.func @transform_13(%arg0: i32) -> (i32, i32) {
    %c0_i32 = arith.constant 0 : i32
    %c0_i32_0 = arith.constant 0 : i32
    %c0_i32_1 = arith.constant 0 : i32
    return %c0_i32, %c0_i32_0 : i32, i32
  }
  func.func @transform_14(%arg0: i32) -> (i32, i32) {
    %c0_i32 = arith.constant 0 : i32
    %c0_i32_0 = arith.constant 0 : i32
    %c0_i32_1 = arith.constant 0 : i32
    return %c0_i32, %c0_i32_0 : i32, i32
  }
  func.func @transform_15(%arg0: i32) -> (i32, i32) {
    %c0_i32 = arith.constant 0 : i32
    %c0_i32_0 = arith.constant 0 : i32
    %c0_i32_1 = arith.constant 0 : i32
    return %c0_i32, %c0_i32_0 : i32, i32
  }
  func.func @transform_16(%arg0: i32) -> (i32, i32) {
    %c0_i32 = arith.constant 0 : i32
    %c0_i32_0 = arith.constant 0 : i32
    %c0_i32_1 = arith.constant 0 : i32
    return %c0_i32, %c0_i32_0 : i32, i32
  }
  func.func @transform_17(%arg0: i32) -> (i32, i32) {
    %c0_i32 = arith.constant 0 : i32
    %c0_i32_0 = arith.constant 0 : i32
    %c0_i32_1 = arith.constant 0 : i32
    return %c0_i32, %c0_i32_0 : i32, i32
  }
  func.func @transform_18(%arg0: i32) -> (i32, i32) {
    %c0_i32 = arith.constant 0 : i32
    %c0_i32_0 = arith.constant 0 : i32
    %c0_i32_1 = arith.constant 0 : i32
    return %c0_i32, %c0_i32_0 : i32, i32
  }
  func.func @transform_19(%arg0: i32) -> (i32, i32) {
    %c0_i32 = arith.constant 0 : i32
    %c0_i32_0 = arith.constant 0 : i32
    %c0_i32_1 = arith.constant 0 : i32
    return %c0_i32, %c0_i32_0 : i32, i32
  }
  func.func @transform_20(%arg0: i32) -> (i32, i32) {
    %c0_i32 = arith.constant 0 : i32
    %c0_i32_0 = arith.constant 0 : i32
    %c0_i32_1 = arith.constant 0 : i32
    return %c0_i32, %c0_i32_0 : i32, i32
  }
  func.func @transform_21(%arg0: i32) -> (i32, i32) {
    %c0_i32 = arith.constant 0 : i32
    %c0_i32_0 = arith.constant 0 : i32
    %c0_i32_1 = arith.constant 0 : i32
    return %c0_i32, %c0_i32_0 : i32, i32
  }
  func.func @transform_22(%arg0: i32) -> (i32, i32) {
    %c0_i32 = arith.constant 0 : i32
    %c0_i32_0 = arith.constant 0 : i32
    %c0_i32_1 = arith.constant 0 : i32
    return %c0_i32, %c0_i32_0 : i32, i32
  }
  func.func @transform_23(%arg0: i32) -> (i32, i32, i32) {
    %c0_i32 = arith.constant 0 : i32
    %c0_i32_0 = arith.constant 0 : i32
    %c0_i32_1 = arith.constant 0 : i32
    return %arg0, %c0_i32, %c0_i32_0 : i32, i32, i32
  }
}

</mosaic_0001>

<llo_original>
// kernel: forward_pallas.1
$region0: #{forward_pallas.1}
  #allocation0 [shape = 'u32[]', space=smem, size = 0x4, offset = 0x4, fixed_abs, tag = 'smem constant byte address 0x4 - core index']
  #allocation1 [shape = 'u32[72,128]{1,0:T(1,128)}', space=vmem, size = 0x9000, scoped, tag = 'internal scratch']
  %s0 = inlined_call_operand.vmem [shape: f32[1,64,8], index: 0, kind: input, shape index: {}]
  %s1 = inlined_call_operand.vmem [shape: f32[1,56,16], index: 1, kind: input, shape index: {}]
  %s2 = inlined_call_operand.vmem [shape: f32[1,56,1], index: 2, kind: input, shape index: {}]
  %s3 = inlined_call_operand.vmem [shape: f32[1,8,1], index: 3, kind: input, shape index: {}]
  %s4 = inlined_call_operand.vmem [shape: f32[8,128], index: 4, kind: input, shape index: {}]
  %s5 = inlined_call_operand.vmem [shape: f32[32,128], index: 5, kind: input, shape index: {}]
  %s6 = inlined_call_operand.vmem [shape: f32[1,128], index: 6, kind: input, shape index: {}]
  %s7 = inlined_call_operand.vmem [shape: f32[32,128], index: 7, kind: input, shape index: {}]
  %s8 = inlined_call_operand.vmem [shape: f32[32,128], index: 8, kind: input, shape index: {}]
  %s9 = inlined_call_operand.vmem [shape: f32[1,128], index: 9, kind: input, shape index: {}]
  %s10 = inlined_call_operand.vmem [shape: f32[16,128], index: 10, kind: input, shape index: {}]
  %s11 = inlined_call_operand.vmem [shape: f32[32,128], index: 11, kind: input, shape index: {}]
  %s12 = inlined_call_operand.vmem [shape: f32[1,128], index: 12, kind: input, shape index: {}]
  %s13 = inlined_call_operand.vmem [shape: f32[32,128], index: 13, kind: input, shape index: {}]
  %s14 = inlined_call_operand.vmem [shape: f32[32,128], index: 14, kind: input, shape index: {}]
  %s15 = inlined_call_operand.vmem [shape: f32[1,128], index: 15, kind: input, shape index: {}]
  %s16 = inlined_call_operand.vmem [shape: f32[32,160], index: 16, kind: input, shape index: {}]
  %s17 = inlined_call_operand.vmem [shape: f32[1,160], index: 17, kind: input, shape index: {}]
  %s18 = inlined_call_operand.vmem [shape: f32[160,64], index: 18, kind: input, shape index: {}]
  %s19 = inlined_call_operand.vmem [shape: f32[1,64], index: 19, kind: input, shape index: {}]
  %s20 = inlined_call_operand.vmem [shape: f32[64,12], index: 20, kind: input, shape index: {}]
  %s21 = inlined_call_operand.vmem [shape: f32[1,12], index: 21, kind: input, shape index: {}]
  %s22 = inlined_call_operand.vmem [shape: f32[1,12], index: 22, kind: input, shape index: {}]
  %s23 = inlined_call_operand.hbm [shape: f32[1,1,1], index: 23, kind: output, shape index: {}]
  %s24 = sld [smem:[#allocation0]]
  $region102: #{forward_pallas.1} parent=0
    _
  %s26 = ssub.s32 1, %s24
  %s27 = scalar_select 0, %s26, %s24
  $region1: #{forward_pallas.1} parent=0
    #allocation2 [shape = 'u8[512]{0}', space=vmem, size = 0x400, scoped, tag = 'output window, operand 0, single buffered']
    #allocation3 [shape = 's32[1]{0}', space=sflag, size = 0x4, scoped, tag = 'scoped memory for forward_pallas.1']
    %28 = vsyncpa [#allocation3], 0
    // Predicated region
    $region2: #{forward_pallas.1} parent=1 // pred_check
      _
    $region3: #{forward_pallas.1} parent=1 // pred_check_branch
      %30 = sbr.rel (0) target = $region5
    $region4: #{forward_pallas.1} parent=1 // pred_region
      _
    $region5: #{forward_pallas.1} parent=1 // pred_fallthru
      _
    // Predicated region
    $region6: #{forward_pallas.1} parent=1 // pred_check
      _
    $region7: #{forward_pallas.1} parent=1 // pred_check_branch
      %32 = sbr.rel (0) target = $region9
    $region8: #{forward_pallas.1} parent=1 // pred_region
      _
    $region9: #{forward_pallas.1} parent=1 // pred_fallthru
      _
    // Predicated region
    $region10: #{forward_pallas.1} parent=1 // pred_check
      _
    $region11: #{forward_pallas.1} parent=1 // pred_check_branch
      %34 = sbr.rel (0) target = $region13
    $region12: #{forward_pallas.1} parent=1 // pred_region
      _
    $region13: #{forward_pallas.1} parent=1 // pred_fallthru
      _
    // Predicated region
    $region14: #{forward_pallas.1} parent=1 // pred_check
      _
    $region15: #{forward_pallas.1} parent=1 // pred_check_branch
      %36 = sbr.rel (0) target = $region17
    $region16: #{forward_pallas.1} parent=1 // pred_region
      _
    $region17: #{forward_pallas.1} parent=1 // pred_fallthru
      _
    // Predicated region
    $region18: #{forward_pallas.1} parent=1 // pred_check
      _
    $region19: #{forward_pallas.1} parent=1 // pred_check_branch
      %38 = sbr.rel (0) target = $region21
    $region20: #{forward_pallas.1} parent=1 // pred_region
      _
    $region21: #{forward_pallas.1} parent=1 // pred_fallthru
      _
    // Predicated region
    $region22: #{forward_pallas.1} parent=1 // pred_check
      _
    $region23: #{forward_pallas.1} parent=1 // pred_check_branch
      %40 = sbr.rel (0) target = $region25
    $region24: #{forward_pallas.1} parent=1 // pred_region
      _
    $region25: #{forward_pallas.1} parent=1 // pred_fallthru
      _
    // Predicated region
    $region26: #{forward_pallas.1} parent=1 // pred_check
      _
    $region27: #{forward_pallas.1} parent=1 // pred_check_branch
      %42 = sbr.rel (0) target = $region29
    $region28: #{forward_pallas.1} parent=1 // pred_region
      _
    $region29: #{forward_pallas.1} parent=1 // pred_fallthru
      _
    // Predicated region
    $region30: #{forward_pallas.1} parent=1 // pred_check
      _
    $region31: #{forward_pallas.1} parent=1 // pred_check_branch
      %44 = sbr.rel (0) target = $region33
    $region32: #{forward_pallas.1} parent=1 // pred_region
      _
    $region33: #{forward_pallas.1} parent=1 // pred_fallthru
      _
    // Predicated region
    $region34: #{forward_pallas.1} parent=1 // pred_check
      _
    $region35: #{forward_pallas.1} parent=1 // pred_check_branch
      %46 = sbr.rel (0) target = $region37
    $region36: #{forward_pallas.1} parent=1 // pred_region
      _
    $region37: #{forward_pallas.1} parent=1 // pred_fallthru
      _
    // Predicated region
    $region38: #{forward_pallas.1} parent=1 // pred_check
      _
    $region39: #{forward_pallas.1} parent=1 // pred_check_branch
      %48 = sbr.rel (0) target = $region41
    $region40: #{forward_pallas.1} parent=1 // pred_region
      _
    $region41: #{forward_pallas.1} parent=1 // pred_fallthru
      _
    // Predicated region
    $region42: #{forward_pallas.1} parent=1 // pred_check
      _
    $region43: #{forward_pallas.1} parent=1 // pred_check_branch
      %50 = sbr.rel (0) target = $region45
    $region44: #{forward_pallas.1} parent=1 // pred_region
      _
    $region45: #{forward_pallas.1} parent=1 // pred_fallthru
      _
    // Predicated region
    $region46: #{forward_pallas.1} parent=1 // pred_check
      _
    $region47: #{forward_pallas.1} parent=1 // pred_check_branch
      %52 = sbr.rel (0) target = $region49
    $region48: #{forward_pallas.1} parent=1 // pred_region
      _
    $region49: #{forward_pallas.1} parent=1 // pred_fallthru
      _
    // Predicated region
    $region50: #{forward_pallas.1} parent=1 // pred_check
      _
    $region51: #{forward_pallas.1} parent=1 // pred_check_branch
      %54 = sbr.rel (0) target = $region53
    $region52: #{forward_pallas.1} parent=1 // pred_region
      _
    $region53: #{forward_pallas.1} parent=1 // pred_fallthru
      _
    // Predicated region
    $region54: #{forward_pallas.1} parent=1 // pred_check
      _
    $region55: #{forward_pallas.1} parent=1 // pred_check_branch
      %56 = sbr.rel (0) target = $region57
    $region56: #{forward_pallas.1} parent=1 // pred_region
      _
    $region57: #{forward_pallas.1} parent=1 // pred_fallthru
      _
    // Predicated region
    $region58: #{forward_pallas.1} parent=1 // pred_check
      _
    $region59: #{forward_pallas.1} parent=1 // pred_check_branch
      %58 = sbr.rel (0) target = $region61
    $region60: #{forward_pallas.1} parent=1 // pred_region
      _
    $region61: #{forward_pallas.1} parent=1 // pred_fallthru
      _
    // Predicated region
    $region62: #{forward_pallas.1} parent=1 // pred_check
      _
    $region63: #{forward_pallas.1} parent=1 // pred_check_branch
      %60 = sbr.rel (0) target = $region65
    $region64: #{forward_pallas.1} parent=1 // pred_region
      _
    $region65: #{forward_pallas.1} parent=1 // pred_fallthru
      _
    // Predicated region
    $region66: #{forward_pallas.1} parent=1 // pred_check
      _
    $region67: #{forward_pallas.1} parent=1 // pred_check_branch
      %62 = sbr.rel (0) target = $region69
    $region68: #{forward_pallas.1} parent=1 // pred_region
      _
    $region69: #{forward_pallas.1} parent=1 // pred_fallthru
      _
    // Predicated region
    $region70: #{forward_pallas.1} parent=1 // pred_check
      _
    $region71: #{forward_pallas.1} parent=1 // pred_check_branch
      %64 = sbr.rel (0) target = $region73
    $region72: #{forward_pallas.1} parent=1 // pred_region
      _
    $region73: #{forward_pallas.1} parent=1 // pred_fallthru
      _
    // Predicated region
    $region74: #{forward_pallas.1} parent=1 // pred_check
      _
    $region75: #{forward_pallas.1} parent=1 // pred_check_branch
      %66 = sbr.rel (0) target = $region77
    $region76: #{forward_pallas.1} parent=1 // pred_region
      _
    $region77: #{forward_pallas.1} parent=1 // pred_fallthru
      _
    // Predicated region
    $region78: #{forward_pallas.1} parent=1 // pred_check
      _
    $region79: #{forward_pallas.1} parent=1 // pred_check_branch
      %68 = sbr.rel (0) target = $region81
    $region80: #{forward_pallas.1} parent=1 // pred_region
      _
    $region81: #{forward_pallas.1} parent=1 // pred_fallthru
      _
    // Predicated region
    $region82: #{forward_pallas.1} parent=1 // pred_check
      _
    $region83: #{forward_pallas.1} parent=1 // pred_check_branch
      %70 = sbr.rel (0) target = $region85
    $region84: #{forward_pallas.1} parent=1 // pred_region
      _
    $region85: #{forward_pallas.1} parent=1 // pred_fallthru
      _
    // Predicated region
    $region86: #{forward_pallas.1} parent=1 // pred_check
      _
    $region87: #{forward_pallas.1} parent=1 // pred_check_branch
      %72 = sbr.rel (0) target = $region89
    $region88: #{forward_pallas.1} parent=1 // pred_region
      _
    $region89: #{forward_pallas.1} parent=1 // pred_fallthru
      _
    // Predicated region
    $region90: #{forward_pallas.1} parent=1 // pred_check
      _
    $region91: #{forward_pallas.1} parent=1 // pred_check_branch
      %74 = sbr.rel (0) target = $region93
    $region92: #{forward_pallas.1} parent=1 // pred_region
      _
    $region93: #{forward_pallas.1} parent=1 // pred_fallthru
      _
    %v75 = vld [vmem:[%s0] sm:$0xff]
    %v76 = vld [vmem:[%s0 + $0x8] sm:$0xff]
    %v77 = vld [vmem:[%s0 + $0x10] sm:$0xff]
    %v78 = vld [vmem:[%s0 + $0x18] sm:$0xff]
    %v79 = vld [vmem:[%s0 + $0x20] sm:$0xff]
    %v80 = vld [vmem:[%s0 + $0x28] sm:$0xff]
    %v81 = vld [vmem:[%s0 + $0x30] sm:$0xff]
    %v82 = vld [vmem:[%s0 + $0x38] sm:$0xff]
    %v83 = vld [vmem:[%s4] sm:$0xff]
    %v84 = vld [vmem:[%s5] sm:$0xff]
    %v85 = vld [vmem:[%s5 + $0x8] sm:$0xff]
    %v86 = vld [vmem:[%s5 + $0x10] sm:$0xff]
    %v87 = vld [vmem:[%s5 + $0x18] sm:$0xff]
    %v88 = vld [vmem:[%s6] sm:$0x1]
    %v90 = vperm.slane %v88, 0
    %vm92 = vcmask 64512
    %v94 = vsel %vm92, %v75, 0
    %v97 = vsel %vm92, %v76, 0
    %v100 = vsel %vm92, %v77, 0
    %v103 = vsel %vm92, %v78, 0
    %v106 = vsel %vm92, %v79, 0
    %v109 = vsel %vm92, %v80, 0
    %v112 = vsel %vm92, %v81, 0
    %v115 = vsel %vm92, %v82, 0
    %117 = vmatpush.msra.mxu0 0.0
    %118 = vmatpush.msra.mxu0 0.0
    %119 = vmatpush.msra.mxu0 0.0
    %120 = vmatpush.msra.mxu0 0.0
    %121 = vmatpush.msra.mxu0 0.0
    %122 = vmatpush.msra.mxu0 0.0
    %123 = vmatpush.msra.mxu0 0.0
    %124 = vmatpush.msra.mxu0 0.0
    %125 = vmatpush.msra.mxu0 0.0
    %126 = vmatpush.msra.mxu0 0.0
    %127 = vmatpush.msra.mxu0 0.0
    %128 = vmatpush.msra.mxu0 0.0
    %129 = vmatpush.msra.mxu0 0.0
    %130 = vmatpush.msra.mxu0 0.0
    %131 = vmatpush.msra.mxu0 0.0
    %132 = vmatpush.msra.mxu0 %v83
    %133 = vmatmul.f32.gmra.mxu0 %v94
    %v134 = vpop.f32.mrf.mxu0
    %v135 = vadd.f32 %v90, %v134
    %136 = vmatmul.f32.gmra.mxu0 %v97
    %v137 = vpop.f32.mrf.mxu0
    %v138 = vadd.f32 %v90, %v137
    %139 = vmatmul.f32.gmra.mxu0 %v100
    %v140 = vpop.f32.mrf.mxu0
    %v141 = vadd.f32 %v90, %v140
    %142 = vmatmul.f32.gmra.mxu0 %v103
    %v143 = vpop.f32.mrf.mxu0
    %v144 = vadd.f32 %v90, %v143
    %145 = vmatmul.f32.gmra.mxu0 %v106
    %v146 = vpop.f32.mrf.mxu0
    %v147 = vadd.f32 %v90, %v146
    %148 = vmatmul.f32.gmra.mxu0 %v109
    %v149 = vpop.f32.mrf.mxu0
    %v150 = vadd.f32 %v90, %v149
    %151 = vmatmul.f32.gmra.mxu0 %v112
    %v152 = vpop.f32.mrf.mxu0
    %v153 = vadd.f32 %v90, %v152
    %154 = vmatmul.f32.gmra.mxu0 %v115
    %v155 = vpop.f32.mrf.mxu0
    %v156 = vadd.f32 %v90, %v155
    %157 = vdwg.mxu0
    %vm158 = vcmask 261120
    %v160 = vsel %vm158, 0.0, 0
    %162 = vmatpush.msra.mxu0 0.0
    %163 = vmatpush.msra.mxu0 0.0
    %164 = vmatpush.msra.mxu0 0.0
    %165 = vmatpush.msra.mxu0 0.0
    %166 = vmatpush.msra.mxu0 0.0
    %167 = vmatpush.msra.mxu0 0.0
    %168 = vmatpush.msra.mxu0 0.0
    %169 = vmatpush.msra.mxu0 0.0
    %170 = vmatpush.msra.mxu0 0.0
    %171 = vmatpush.msra.mxu0 0.0
    %172 = vmatpush.msra.mxu0 0.0
    %173 = vmatpush.msra.mxu0 0.0
    %174 = vmatpush.msra.mxu0 %v87
    %175 = vmatpush.msra.mxu0 %v86
    %176 = vmatpush.msra.mxu0 %v85
    %177 = vmatpush.msra.mxu0 %v84
    %178 = vmatmul.f32.gmra.mxu0 %v160
    %v179 = vpop.f32.mrf.mxu0
    %v180 = vadd.f32 0.0, %v179
    %181 = vdwg.mxu0
    %v182 = vadd.f32 %v135, %v180
    %v183 = vxor.u32 %v182, 2147483648
    %v184 = vmul.f32 %v183, 1.442695
    %v185 = vpow.pop %v184
    %v186 = vadd.f32 %v185, 1.0
    %v187 = vrcp.pop %v186
    %v188 = vmul.f32 %v186, %v187
    %v189 = vsub.f32 1.0, %v188
    %v190 = vmul.f32 %v187, %v189
    %v191 = vadd.f32 %v187, %v190
    %vm192 = vweird.f32 %v186
    %vm193 = vweird.f32 %v187
    %vm194 = vmor %vm192, %vm193
    %v195 = vsel %vm194, %v187, %v191
    %v196 = vand.u32 2147483647, %v186
    %vm197 = vcmp.eq.f32.partialorder %v196, 8.507059e+37
    %v198 = vand.u32 %v186, 2147483648
    %v199 = vor.u32 1.1754944e-38, %v198
    %v200 = vsel %vm197, %v199, %v195
    %v201 = vmul.f32 1.0, %v200
    %v202 = vtanh.pop %v182
    %v203 = vmul.f32 %v201, 0.0
    %205 = vrot.lane.b32.xlu0 %v202, 32
    %v206 = vpop.permute.xlu0 %205
    %v208 = vmul.f32 %v201, %v206
    %210 = vrot.lane.b32.xlu0 %v208, 32
    %v211 = vpop.permute.xlu0 %210
    %v213 = vadd.f32 %v203, %v211
    %v214 = vtanh.pop %v213
    %216 = vrot.lane.b32.xlu0 %v214, 32
    %v217 = vpop.permute.xlu0 %216
    %v219 = vmul.f32 %v201, %v217
    %221 = vrot.lane.b32.xlu0 %v219, 64
    %v222 = vpop.permute.xlu0 %221
    %v223 = vsel %vm158, %v222, 0
    %225 = vmatpush.msra.mxu0 0.0
    %226 = vmatpush.msra.mxu0 0.0
    %227 = vmatpush.msra.mxu0 0.0
    %228 = vmatpush.msra.mxu0 0.0
    %229 = vmatpush.msra.mxu0 0.0
    %230 = vmatpush.msra.mxu0 0.0
    %231 = vmatpush.msra.mxu0 0.0
    %232 = vmatpush.msra.mxu0 0.0
    %233 = vmatpush.msra.mxu0 0.0
    %234 = vmatpush.msra.mxu0 0.0
    %235 = vmatpush.msra.mxu0 0.0
    %236 = vmatpush.msra.mxu0 0.0
    %237 = vmatpush.msra.mxu0 %v87
    %238 = vmatpush.msra.mxu0 %v86
    %239 = vmatpush.msra.mxu0 %v85
    %240 = vmatpush.msra.mxu0 %v84
    %241 = vmatmul.f32.gmra.mxu0 %v223
    %v242 = vpop.f32.mrf.mxu0
    %v243 = vadd.f32 0.0, %v242
    %244 = vdwg.mxu0
    %v245 = vadd.f32 %v138, %v243
    %v246 = vxor.u32 %v245, 2147483648
    %v247 = vmul.f32 %v246, 1.442695
    %v248 = vpow.pop %v247
    %v249 = vadd.f32 %v248, 1.0
    %v250 = vrcp.pop %v249
    %v251 = vmul.f32 %v249, %v250
    %v252 = vsub.f32 1.0, %v251
    %v253 = vmul.f32 %v250, %v252
    %v254 = vadd.f32 %v250, %v253
    %vm255 = vweird.f32 %v249
    %vm256 = vweird.f32 %v250
    %vm257 = vmor %vm255, %vm256
    %v258 = vsel %vm257, %v250, %v254
    %v259 = vand.u32 2147483647, %v249
    %vm260 = vcmp.eq.f32.partialorder %v259, 8.507059e+37
    %v261 = vand.u32 %v249, 2147483648
    %v262 = vor.u32 1.1754944e-38, %v261
    %v263 = vsel %vm260, %v262, %v258
    %v264 = vmul.f32 1.0, %v263
    %v265 = vtanh.pop %v245
    %v266 = vmul.f32 %v264, %v213
    %268 = vrot.lane.b32.xlu0 %v265, 32
    %v269 = vpop.permute.xlu0 %268
    %v271 = vmul.f32 %v264, %v269
    %273 = vrot.lane.b32.xlu0 %v271, 32
    %v274 = vpop.permute.xlu0 %273
    %v276 = vadd.f32 %v266, %v274
    %v277 = vtanh.pop %v276
    %279 = vrot.lane.b32.xlu0 %v277, 32
    %v280 = vpop.permute.xlu0 %279
    %v282 = vmul.f32 %v264, %v280
    %284 = vrot.lane.b32.xlu0 %v282, 64
    %v285 = vpop.permute.xlu0 %284
    %v286 = vsel %vm158, %v285, 0
    %288 = vmatpush.msra.mxu0 0.0
    %289 = vmatpush.msra.mxu0 0.0
    %290 = vmatpush.msra.mxu0 0.0
    %291 = vmatpush.msra.mxu0 0.0
    %292 = vmatpush.msra.mxu0 0.0
    %293 = vmatpush.msra.mxu0 0.0
    %294 = vmatpush.msra.mxu0 0.0
    %295 = vmatpush.msra.mxu0 0.0
    %296 = vmatpush.msra.mxu0 0.0
    %297 = vmatpush.msra.mxu0 0.0
    %298 = vmatpush.msra.mxu0 0.0
    %299 = vmatpush.msra.mxu0 0.0
    %300 = vmatpush.msra.mxu0 %v87
    %301 = vmatpush.msra.mxu0 %v86
    %302 = vmatpush.msra.mxu0 %v85
    %303 = vmatpush.msra.mxu0 %v84
    %304 = vmatmul.f32.gmra.mxu0 %v286
    %v305 = vpop.f32.mrf.mxu0
    %v306 = vadd.f32 0.0, %v305
    %307 = vdwg.mxu0
    %v308 = vadd.f32 %v141, %v306
    %v309 = vxor.u32 %v308, 2147483648
    %v310 = vmul.f32 %v309, 1.442695
    %v311 = vpow.pop %v310
    %v312 = vadd.f32 %v311, 1.0
    %v313 = vrcp.pop %v312
    %v314 = vmul.f32 %v312, %v313
    %v315 = vsub.f32 1.0, %v314
    %v316 = vmul.f32 %v313, %v315
    %v317 = vadd.f32 %v313, %v316
    %vm318 = vweird.f32 %v312
    %vm319 = vweird.f32 %v313
    %vm320 = vmor %vm318, %vm319
    %v321 = vsel %vm320, %v313, %v317
    %v322 = vand.u32 2147483647, %v312
    %vm323 = vcmp.eq.f32.partialorder %v322, 8.507059e+37
    %v324 = vand.u32 %v312, 2147483648
    %v325 = vor.u32 1.1754944e-38, %v324
    %v326 = vsel %vm323, %v325, %v321
    %v327 = vmul.f32 1.0, %v326
    %v328 = vtanh.pop %v308
    %v329 = vmul.f32 %v327, %v276
    %331 = vrot.lane.b32.xlu0 %v328, 32
    %v332 = vpop.permute.xlu0 %331
    %v334 = vmul.f32 %v327, %v332
    %336 = vrot.lane.b32.xlu0 %v334, 32
    %v337 = vpop.permute.xlu0 %336
    %v339 = vadd.f32 %v329, %v337
    %v340 = vtanh.pop %v339
    %342 = vrot.lane.b32.xlu0 %v340, 32
    %v343 = vpop.permute.xlu0 %342
    %v345 = vmul.f32 %v327, %v343
    %347 = vrot.lane.b32.xlu0 %v345, 64
    %v348 = vpop.permute.xlu0 %347
    %v349 = vsel %vm158, %v348, 0
    %351 = vmatpush.msra.mxu0 0.0
    %352 = vmatpush.msra.mxu0 0.0
    %353 = vmatpush.msra.mxu0 0.0
    %354 = vmatpush.msra.mxu0 0.0
    %355 = vmatpush.msra.mxu0 0.0
    %356 = vmatpush.msra.mxu0 0.0
    %357 = vmatpush.msra.mxu0 0.0
    %358 = vmatpush.msra.mxu0 0.0
    %359 = vmatpush.msra.mxu0 0.0
    %360 = vmatpush.msra.mxu0 0.0
    %361 = vmatpush.msra.mxu0 0.0
    %362 = vmatpush.msra.mxu0 0.0
    %363 = vmatpush.msra.mxu0 %v87
    %364 = vmatpush.msra.mxu0 %v86
    %365 = vmatpush.msra.mxu0 %v85
    %366 = vmatpush.msra.mxu0 %v84
    %367 = vmatmul.f32.gmra.mxu0 %v349
    %v368 = vpop.f32.mrf.mxu0
    %v369 = vadd.f32 0.0, %v368
    %370 = vdwg.mxu0
    %v371 = vadd.f32 %v144, %v369
    %v372 = vxor.u32 %v371, 2147483648
    %v373 = vmul.f32 %v372, 1.442695
    %v374 = vpow.pop %v373
    %v375 = vadd.f32 %v374, 1.0
    %v376 = vrcp.pop %v375
    %v377 = vmul.f32 %v375, %v376
    %v378 = vsub.f32 1.0, %v377
    %v379 = vmul.f32 %v376, %v378
    %v380 = vadd.f32 %v376, %v379
    %vm381 = vweird.f32 %v375
    %vm382 = vweird.f32 %v376
    %vm383 = vmor %vm381, %vm382
    %v384 = vsel %vm383, %v376, %v380
    %v385 = vand.u32 2147483647, %v375
    %vm386 = vcmp.eq.f32.partialorder %v385, 8.507059e+37
    %v387 = vand.u32 %v375, 2147483648
    %v388 = vor.u32 1.1754944e-38, %v387
    %v389 = vsel %vm386, %v388, %v384
    %v390 = vmul.f32 1.0, %v389
    %v391 = vtanh.pop %v371
    %v392 = vmul.f32 %v390, %v339
    %394 = vrot.lane.b32.xlu0 %v391, 32
    %v395 = vpop.permute.xlu0 %394
    %v397 = vmul.f32 %v390, %v395
    %399 = vrot.lane.b32.xlu0 %v397, 32
    %v400 = vpop.permute.xlu0 %399
    %v402 = vadd.f32 %v392, %v400
    %v403 = vtanh.pop %v402
    %405 = vrot.lane.b32.xlu0 %v403, 32
    %v406 = vpop.permute.xlu0 %405
    %v408 = vmul.f32 %v390, %v406
    %410 = vrot.lane.b32.xlu0 %v408, 64
    %v411 = vpop.permute.xlu0 %410
    %v412 = vsel %vm158, %v411, 0
    %414 = vmatpush.msra.mxu0 0.0
    %415 = vmatpush.msra.mxu0 0.0
    %416 = vmatpush.msra.mxu0 0.0
    %417 = vmatpush.msra.mxu0 0.0
    %418 = vmatpush.msra.mxu0 0.0
    %419 = vmatpush.msra.mxu0 0.0
    %420 = vmatpush.msra.mxu0 0.0
    %421 = vmatpush.msra.mxu0 0.0
    %422 = vmatpush.msra.mxu0 0.0
    %423 = vmatpush.msra.mxu0 0.0
    %424 = vmatpush.msra.mxu0 0.0
    %425 = vmatpush.msra.mxu0 0.0
    %426 = vmatpush.msra.mxu0 %v87
    %427 = vmatpush.msra.mxu0 %v86
    %428 = vmatpush.msra.mxu0 %v85
    %429 = vmatpush.msra.mxu0 %v84
    %430 = vmatmul.f32.gmra.mxu0 %v412
    %v431 = vpop.f32.mrf.mxu0
    %v432 = vadd.f32 0.0, %v431
    %433 = vdwg.mxu0
    %v434 = vadd.f32 %v147, %v432
    %v435 = vxor.u32 %v434, 2147483648
    %v436 = vmul.f32 %v435, 1.442695
    %v437 = vpow.pop %v436
    %v438 = vadd.f32 %v437, 1.0
    %v439 = vrcp.pop %v438
    %v440 = vmul.f32 %v438, %v439
    %v441 = vsub.f32 1.0, %v440
    %v442 = vmul.f32 %v439, %v441
    %v443 = vadd.f32 %v439, %v442
    %vm444 = vweird.f32 %v438
    %vm445 = vweird.f32 %v439
    %vm446 = vmor %vm444, %vm445
    %v447 = vsel %vm446, %v439, %v443
    %v448 = vand.u32 2147483647, %v438
    %vm449 = vcmp.eq.f32.partialorder %v448, 8.507059e+37
    %v450 = vand.u32 %v438, 2147483648
    %v451 = vor.u32 1.1754944e-38, %v450
    %v452 = vsel %vm449, %v451, %v447
    %v453 = vmul.f32 1.0, %v452
    %v454 = vtanh.pop %v434
    %v455 = vmul.f32 %v453, %v402
    %457 = vrot.lane.b32.xlu0 %v454, 32
    %v458 = vpop.permute.xlu0 %457
    %v460 = vmul.f32 %v453, %v458
    %462 = vrot.lane.b32.xlu0 %v460, 32
    %v463 = vpop.permute.xlu0 %462
    %v465 = vadd.f32 %v455, %v463
    %v466 = vtanh.pop %v465
    %468 = vrot.lane.b32.xlu0 %v466, 32
    %v469 = vpop.permute.xlu0 %468
    %v471 = vmul.f32 %v453, %v469
    %473 = vrot.lane.b32.xlu0 %v471, 64
    %v474 = vpop.permute.xlu0 %473
    %v475 = vsel %vm158, %v474, 0
    %477 = vmatpush.msra.mxu0 0.0
    %478 = vmatpush.msra.mxu0 0.0
    %479 = vmatpush.msra.mxu0 0.0
    %480 = vmatpush.msra.mxu0 0.0
    %481 = vmatpush.msra.mxu0 0.0
    %482 = vmatpush.msra.mxu0 0.0
    %483 = vmatpush.msra.mxu0 0.0
    %484 = vmatpush.msra.mxu0 0.0
    %485 = vmatpush.msra.mxu0 0.0
    %486 = vmatpush.msra.mxu0 0.0
    %487 = vmatpush.msra.mxu0 0.0
    %488 = vmatpush.msra.mxu0 0.0
    %489 = vmatpush.msra.mxu0 %v87
    %490 = vmatpush.msra.mxu0 %v86
    %491 = vmatpush.msra.mxu0 %v85
    %492 = vmatpush.msra.mxu0 %v84
    %493 = vmatmul.f32.gmra.mxu0 %v475
    %v494 = vpop.f32.mrf.mxu0
    %v495 = vadd.f32 0.0, %v494
    %496 = vdwg.mxu0
    %v497 = vadd.f32 %v150, %v495
    %v498 = vxor.u32 %v497, 2147483648
    %v499 = vmul.f32 %v498, 1.442695
    %v500 = vpow.pop %v499
    %v501 = vadd.f32 %v500, 1.0
    %v502 = vrcp.pop %v501
    %v503 = vmul.f32 %v501, %v502
    %v504 = vsub.f32 1.0, %v503
    %v505 = vmul.f32 %v502, %v504
    %v506 = vadd.f32 %v502, %v505
    %vm507 = vweird.f32 %v501
    %vm508 = vweird.f32 %v502
    %vm509 = vmor %vm507, %vm508
    %v510 = vsel %vm509, %v502, %v506
    %v511 = vand.u32 2147483647, %v501
    %vm512 = vcmp.eq.f32.partialorder %v511, 8.507059e+37
    %v513 = vand.u32 %v501, 2147483648
    %v514 = vor.u32 1.1754944e-38, %v513
    %v515 = vsel %vm512, %v514, %v510
    %v516 = vmul.f32 1.0, %v515
    %v517 = vtanh.pop %v497
    %v518 = vmul.f32 %v516, %v465
    %520 = vrot.lane.b32.xlu0 %v517, 32
    %v521 = vpop.permute.xlu0 %520
    %v523 = vmul.f32 %v516, %v521
    %525 = vrot.lane.b32.xlu0 %v523, 32
    %v526 = vpop.permute.xlu0 %525
    %v528 = vadd.f32 %v518, %v526
    %v529 = vtanh.pop %v528
    %531 = vrot.lane.b32.xlu0 %v529, 32
    %v532 = vpop.permute.xlu0 %531
    %v534 = vmul.f32 %v516, %v532
    %536 = vrot.lane.b32.xlu0 %v534, 64
    %v537 = vpop.permute.xlu0 %536
    %v538 = vsel %vm158, %v537, 0
    %540 = vmatpush.msra.mxu0 0.0
    %541 = vmatpush.msra.mxu0 0.0
    %542 = vmatpush.msra.mxu0 0.0
    %543 = vmatpush.msra.mxu0 0.0
    %544 = vmatpush.msra.mxu0 0.0
    %545 = vmatpush.msra.mxu0 0.0
    %546 = vmatpush.msra.mxu0 0.0
    %547 = vmatpush.msra.mxu0 0.0
    %548 = vmatpush.msra.mxu0 0.0
    %549 = vmatpush.msra.mxu0 0.0
    %550 = vmatpush.msra.mxu0 0.0
    %551 = vmatpush.msra.mxu0 0.0
    %552 = vmatpush.msra.mxu0 %v87
    %553 = vmatpush.msra.mxu0 %v86
    %554 = vmatpush.msra.mxu0 %v85
    %555 = vmatpush.msra.mxu0 %v84
    %556 = vmatmul.f32.gmra.mxu0 %v538
    %v557 = vpop.f32.mrf.mxu0
    %v558 = vadd.f32 0.0, %v557
    %559 = vdwg.mxu0
    %v560 = vadd.f32 %v153, %v558
    %v561 = vxor.u32 %v560, 2147483648
    %v562 = vmul.f32 %v561, 1.442695
    %v563 = vpow.pop %v562
    %v564 = vadd.f32 %v563, 1.0
    %v565 = vrcp.pop %v564
    %v566 = vmul.f32 %v564, %v565
    %v567 = vsub.f32 1.0, %v566
    %v568 = vmul.f32 %v565, %v567
    %v569 = vadd.f32 %v565, %v568
    %vm570 = vweird.f32 %v564
    %vm571 = vweird.f32 %v565
    %vm572 = vmor %vm570, %vm571
    %v573 = vsel %vm572, %v565, %v569
    %v574 = vand.u32 2147483647, %v564
    %vm575 = vcmp.eq.f32.partialorder %v574, 8.507059e+37
    %v576 = vand.u32 %v564, 2147483648
    %v577 = vor.u32 1.1754944e-38, %v576
    %v578 = vsel %vm575, %v577, %v573
    %v579 = vmul.f32 1.0, %v578
    %v580 = vtanh.pop %v560
    %v581 = vmul.f32 %v579, %v528
    %583 = vrot.lane.b32.xlu0 %v580, 32
    %v584 = vpop.permute.xlu0 %583
    %v586 = vmul.f32 %v579, %v584
    %588 = vrot.lane.b32.xlu0 %v586, 32
    %v589 = vpop.permute.xlu0 %588
    %v591 = vadd.f32 %v581, %v589
    %v592 = vtanh.pop %v591
    %594 = vrot.lane.b32.xlu0 %v592, 32
    %v595 = vpop.permute.xlu0 %594
    %v597 = vmul.f32 %v579, %v595
    %599 = vrot.lane.b32.xlu0 %v597, 64
    %v600 = vpop.permute.xlu0 %599
    %v601 = vsel %vm158, %v600, 0
    %603 = vmatpush.msra.mxu0 0.0
    %604 = vmatpush.msra.mxu0 0.0
    %605 = vmatpush.msra.mxu0 0.0
    %606 = vmatpush.msra.mxu0 0.0
    %607 = vmatpush.msra.mxu0 0.0
    %608 = vmatpush.msra.mxu0 0.0
    %609 = vmatpush.msra.mxu0 0.0
    %610 = vmatpush.msra.mxu0 0.0
    %611 = vmatpush.msra.mxu0 0.0
    %612 = vmatpush.msra.mxu0 0.0
    %613 = vmatpush.msra.mxu0 0.0
    %614 = vmatpush.msra.mxu0 0.0
    %615 = vmatpush.msra.mxu0 %v87
    %616 = vmatpush.msra.mxu0 %v86
    %617 = vmatpush.msra.mxu0 %v85
    %618 = vmatpush.msra.mxu0 %v84
    %619 = vmatmul.f32.gmra.mxu0 %v601
    %v620 = vpop.f32.mrf.mxu0
    %v621 = vadd.f32 0.0, %v620
    %622 = vdwg.mxu0
    %v623 = vadd.f32 %v156, %v621
    %v624 = vxor.u32 %v623, 2147483648
    %v625 = vmul.f32 %v624, 1.442695
    %v626 = vpow.pop %v625
    %v627 = vadd.f32 %v626, 1.0
    %v628 = vrcp.pop %v627
    %v629 = vmul.f32 %v627, %v628
    %v630 = vsub.f32 1.0, %v629
    %v631 = vmul.f32 %v628, %v630
    %v632 = vadd.f32 %v628, %v631
    %vm633 = vweird.f32 %v627
    %vm634 = vweird.f32 %v628
    %vm635 = vmor %vm633, %vm634
    %v636 = vsel %vm635, %v628, %v632
    %v637 = vand.u32 2147483647, %v627
    %vm638 = vcmp.eq.f32.partialorder %v637, 8.507059e+37
    %v639 = vand.u32 %v627, 2147483648
    %v640 = vor.u32 1.1754944e-38, %v639
    %v641 = vsel %vm638, %v640, %v636
    %v642 = vmul.f32 1.0, %v641
    %v643 = vtanh.pop %v623
    %v644 = vmul.f32 %v642, %v591
    %646 = vrot.lane.b32.xlu0 %v643, 32
    %v647 = vpop.permute.xlu0 %646
    %v649 = vmul.f32 %v642, %v647
    %651 = vrot.lane.b32.xlu0 %v649, 32
    %v652 = vpop.permute.xlu0 %651
    %v654 = vadd.f32 %v644, %v652
    %v655 = vtanh.pop %v654
    %657 = vrot.lane.b32.xlu0 %v655, 32
    %v658 = vpop.permute.xlu0 %657
    %v660 = vmul.f32 %v642, %v658
    %v661 = vld [vmem:[%s7] sm:$0xff]
    %v662 = vld [vmem:[%s7 + $0x8] sm:$0xff]
    %v663 = vld [vmem:[%s7 + $0x10] sm:$0xff]
    %v664 = vld [vmem:[%s7 + $0x18] sm:$0xff]
    %v665 = vld [vmem:[%s8] sm:$0xff]
    %v666 = vld [vmem:[%s8 + $0x8] sm:$0xff]
    %v667 = vld [vmem:[%s8 + $0x10] sm:$0xff]
    %v668 = vld [vmem:[%s8 + $0x18] sm:$0xff]
    %v669 = vld [vmem:[%s9] sm:$0x1]
    %v671 = vperm.slane %v669, 0
    %673 = vmatpush.msra.mxu0 0.0
    %674 = vmatpush.msra.mxu0 0.0
    %675 = vmatpush.msra.mxu0 0.0
    %676 = vmatpush.msra.mxu0 0.0
    %677 = vmatpush.msra.mxu0 0.0
    %678 = vmatpush.msra.mxu0 0.0
    %679 = vmatpush.msra.mxu0 0.0
    %680 = vmatpush.msra.mxu0 0.0
    %681 = vmatpush.msra.mxu0 0.0
    %682 = vmatpush.msra.mxu0 0.0
    %683 = vmatpush.msra.mxu0 0.0
    %684 = vmatpush.msra.mxu0 0.0
    %685 = vmatpush.msra.mxu0 %v664
    %686 = vmatpush.msra.mxu0 %v663
    %687 = vmatpush.msra.mxu0 %v662
    %688 = vmatpush.msra.mxu0 %v661
    %689 = vmatmul.f32.gmra.mxu0 %v223
    %v690 = vpop.f32.mrf.mxu0
    %v691 = vadd.f32 %v671, %v690
    %692 = vdwg.mxu0
    %693 = vmatpush.msra.mxu0 0.0
    %694 = vmatpush.msra.mxu0 0.0
    %695 = vmatpush.msra.mxu0 0.0
    %696 = vmatpush.msra.mxu0 0.0
    %697 = vmatpush.msra.mxu0 0.0
    %698 = vmatpush.msra.mxu0 0.0
    %699 = vmatpush.msra.mxu0 0.0
    %700 = vmatpush.msra.mxu0 0.0
    %701 = vmatpush.msra.mxu0 0.0
    %702 = vmatpush.msra.mxu0 0.0
    %703 = vmatpush.msra.mxu0 0.0
    %704 = vmatpush.msra.mxu0 0.0
    %705 = vmatpush.msra.mxu0 %v668
    %706 = vmatpush.msra.mxu0 %v667
    %707 = vmatpush.msra.mxu0 %v666
    %708 = vmatpush.msra.mxu0 %v665
    %709 = vmatmul.f32.gmra.mxu0 %v160
    %v710 = vpop.f32.mrf.mxu0
    %v711 = vadd.f32 0.0, %v710
    %712 = vdwg.mxu0
    %v713 = vadd.f32 %v691, %v711
    %v714 = vxor.u32 %v713, 2147483648
    %v715 = vmul.f32 %v714, 1.442695
    %v716 = vpow.pop %v715
    %v717 = vadd.f32 %v716, 1.0
    %v718 = vrcp.pop %v717
    %v719 = vmul.f32 %v717, %v718
    %v720 = vsub.f32 1.0, %v719
    %v721 = vmul.f32 %v718, %v720
    %v722 = vadd.f32 %v718, %v721
    %vm723 = vweird.f32 %v717
    %vm724 = vweird.f32 %v718
    %vm725 = vmor %vm723, %vm724
    %v726 = vsel %vm725, %v718, %v722
    %v727 = vand.u32 2147483647, %v717
    %vm728 = vcmp.eq.f32.partialorder %v727, 8.507059e+37
    %v729 = vand.u32 %v717, 2147483648
    %v730 = vor.u32 1.1754944e-38, %v729
    %v731 = vsel %vm728, %v730, %v726
    %v732 = vmul.f32 1.0, %v731
    %v733 = vtanh.pop %v713
    %v734 = vmul.f32 %v732, 0.0
    %736 = vrot.lane.b32.xlu0 %v733, 32
    %v737 = vpop.permute.xlu0 %736
    %v739 = vmul.f32 %v732, %v737
    %741 = vrot.lane.b32.xlu0 %v739, 32
    %v742 = vpop.permute.xlu0 %741
    %v744 = vadd.f32 %v734, %v742
    %v745 = vtanh.pop %v744
    %747 = vrot.lane.b32.xlu0 %v745, 32
    %v748 = vpop.permute.xlu0 %747
    %v750 = vmul.f32 %v732, %v748
    %751 = vmatpush.msra.mxu0 0.0
    %752 = vmatpush.msra.mxu0 0.0
    %753 = vmatpush.msra.mxu0 0.0
    %754 = vmatpush.msra.mxu0 0.0
    %755 = vmatpush.msra.mxu0 0.0
    %756 = vmatpush.msra.mxu0 0.0
    %757 = vmatpush.msra.mxu0 0.0
    %758 = vmatpush.msra.mxu0 0.0
    %759 = vmatpush.msra.mxu0 0.0
    %760 = vmatpush.msra.mxu0 0.0
    %761 = vmatpush.msra.mxu0 0.0
    %762 = vmatpush.msra.mxu0 0.0
    %763 = vmatpush.msra.mxu0 %v664
    %764 = vmatpush.msra.mxu0 %v663
    %765 = vmatpush.msra.mxu0 %v662
    %766 = vmatpush.msra.mxu0 %v661
    %767 = vmatmul.f32.gmra.mxu0 %v286
    %v768 = vpop.f32.mrf.mxu0
    %v769 = vadd.f32 %v671, %v768
    %770 = vdwg.mxu0
    %772 = vrot.lane.b32.xlu0 %v750, 64
    %v773 = vpop.permute.xlu0 %772
    %v774 = vsel %vm158, %v773, 0
    %776 = vmatpush.msra.mxu0 0.0
    %777 = vmatpush.msra.mxu0 0.0
    %778 = vmatpush.msra.mxu0 0.0
    %779 = vmatpush.msra.mxu0 0.0
    %780 = vmatpush.msra.mxu0 0.0
    %781 = vmatpush.msra.mxu0 0.0
    %782 = vmatpush.msra.mxu0 0.0
    %783 = vmatpush.msra.mxu0 0.0
    %784 = vmatpush.msra.mxu0 0.0
    %785 = vmatpush.msra.mxu0 0.0
    %786 = vmatpush.msra.mxu0 0.0
    %787 = vmatpush.msra.mxu0 0.0
    %788 = vmatpush.msra.mxu0 %v668
    %789 = vmatpush.msra.mxu0 %v667
    %790 = vmatpush.msra.mxu0 %v666
    %791 = vmatpush.msra.mxu0 %v665
    %792 = vmatmul.f32.gmra.mxu0 %v774
    %v793 = vpop.f32.mrf.mxu0
    %v794 = vadd.f32 0.0, %v793
    %795 = vdwg.mxu0
    %v796 = vadd.f32 %v769, %v794
    %v797 = vxor.u32 %v796, 2147483648
    %v798 = vmul.f32 %v797, 1.442695
    %v799 = vpow.pop %v798
    %v800 = vadd.f32 %v799, 1.0
    %v801 = vrcp.pop %v800
    %v802 = vmul.f32 %v800, %v801
    %v803 = vsub.f32 1.0, %v802
    %v804 = vmul.f32 %v801, %v803
    %v805 = vadd.f32 %v801, %v804
    %vm806 = vweird.f32 %v800
    %vm807 = vweird.f32 %v801
    %vm808 = vmor %vm806, %vm807
    %v809 = vsel %vm808, %v801, %v805
    %v810 = vand.u32 2147483647, %v800
    %vm811 = vcmp.eq.f32.partialorder %v810, 8.507059e+37
    %v812 = vand.u32 %v800, 2147483648
    %v813 = vor.u32 1.1754944e-38, %v812
    %v814 = vsel %vm811, %v813, %v809
    %v815 = vmul.f32 1.0, %v814
    %v816 = vtanh.pop %v796
    %v817 = vmul.f32 %v815, %v744
    %819 = vrot.lane.b32.xlu0 %v816, 32
    %v820 = vpop.permute.xlu0 %819
    %v822 = vmul.f32 %v815, %v820
    %824 = vrot.lane.b32.xlu0 %v822, 32
    %v825 = vpop.permute.xlu0 %824
    %v827 = vadd.f32 %v817, %v825
    %v828 = vtanh.pop %v827
    %830 = vrot.lane.b32.xlu0 %v828, 32
    %v831 = vpop.permute.xlu0 %830
    %v833 = vmul.f32 %v815, %v831
    %834 = vmatpush.msra.mxu0 0.0
    %835 = vmatpush.msra.mxu0 0.0
    %836 = vmatpush.msra.mxu0 0.0
    %837 = vmatpush.msra.mxu0 0.0
    %838 = vmatpush.msra.mxu0 0.0
    %839 = vmatpush.msra.mxu0 0.0
    %840 = vmatpush.msra.mxu0 0.0
    %841 = vmatpush.msra.mxu0 0.0
    %842 = vmatpush.msra.mxu0 0.0
    %843 = vmatpush.msra.mxu0 0.0
    %844 = vmatpush.msra.mxu0 0.0
    %845 = vmatpush.msra.mxu0 0.0
    %846 = vmatpush.msra.mxu0 %v664
    %847 = vmatpush.msra.mxu0 %v663
    %848 = vmatpush.msra.mxu0 %v662
    %849 = vmatpush.msra.mxu0 %v661
    %850 = vmatmul.f32.gmra.mxu0 %v349
    %v851 = vpop.f32.mrf.mxu0
    %v852 = vadd.f32 %v671, %v851
    %853 = vdwg.mxu0
    %855 = vrot.lane.b32.xlu0 %v833, 64
    %v856 = vpop.permute.xlu0 %855
    %v857 = vsel %vm158, %v856, 0
    %859 = vmatpush.msra.mxu0 0.0
    %860 = vmatpush.msra.mxu0 0.0
    %861 = vmatpush.msra.mxu0 0.0
    %862 = vmatpush.msra.mxu0 0.0
    %863 = vmatpush.msra.mxu0 0.0
    %864 = vmatpush.msra.mxu0 0.0
    %865 = vmatpush.msra.mxu0 0.0
    %866 = vmatpush.msra.mxu0 0.0
    %867 = vmatpush.msra.mxu0 0.0
    %868 = vmatpush.msra.mxu0 0.0
    %869 = vmatpush.msra.mxu0 0.0
    %870 = vmatpush.msra.mxu0 0.0
    %871 = vmatpush.msra.mxu0 %v668
    %872 = vmatpush.msra.mxu0 %v667
    %873 = vmatpush.msra.mxu0 %v666
    %874 = vmatpush.msra.mxu0 %v665
    %875 = vmatmul.f32.gmra.mxu0 %v857
    %v876 = vpop.f32.mrf.mxu0
    %v877 = vadd.f32 0.0, %v876
    %878 = vdwg.mxu0
    %v879 = vadd.f32 %v852, %v877
    %v880 = vxor.u32 %v879, 2147483648
    %v881 = vmul.f32 %v880, 1.442695
    %v882 = vpow.pop %v881
    %v883 = vadd.f32 %v882, 1.0
    %v884 = vrcp.pop %v883
    %v885 = vmul.f32 %v883, %v884
    %v886 = vsub.f32 1.0, %v885
    %v887 = vmul.f32 %v884, %v886
    %v888 = vadd.f32 %v884, %v887
    %vm889 = vweird.f32 %v883
    %vm890 = vweird.f32 %v884
    %vm891 = vmor %vm889, %vm890
    %v892 = vsel %vm891, %v884, %v888
    %v893 = vand.u32 2147483647, %v883
    %vm894 = vcmp.eq.f32.partialorder %v893, 8.507059e+37
    %v895 = vand.u32 %v883, 2147483648
    %v896 = vor.u32 1.1754944e-38, %v895
    %v897 = vsel %vm894, %v896, %v892
    %v898 = vmul.f32 1.0, %v897
    %v899 = vtanh.pop %v879
    %v900 = vmul.f32 %v898, %v827
    %902 = vrot.lane.b32.xlu0 %v899, 32
    %v903 = vpop.permute.xlu0 %902
    %v905 = vmul.f32 %v898, %v903
    %907 = vrot.lane.b32.xlu0 %v905, 32
    %v908 = vpop.permute.xlu0 %907
    %v910 = vadd.f32 %v900, %v908
    %v911 = vtanh.pop %v910
    %913 = vrot.lane.b32.xlu0 %v911, 32
    %v914 = vpop.permute.xlu0 %913
    %v916 = vmul.f32 %v898, %v914
    %917 = vmatpush.msra.mxu0 0.0
    %918 = vmatpush.msra.mxu0 0.0
    %919 = vmatpush.msra.mxu0 0.0
    %920 = vmatpush.msra.mxu0 0.0
    %921 = vmatpush.msra.mxu0 0.0
    %922 = vmatpush.msra.mxu0 0.0
    %923 = vmatpush.msra.mxu0 0.0
    %924 = vmatpush.msra.mxu0 0.0
    %925 = vmatpush.msra.mxu0 0.0
    %926 = vmatpush.msra.mxu0 0.0
    %927 = vmatpush.msra.mxu0 0.0
    %928 = vmatpush.msra.mxu0 0.0
    %929 = vmatpush.msra.mxu0 %v664
    %930 = vmatpush.msra.mxu0 %v663
    %931 = vmatpush.msra.mxu0 %v662
    %932 = vmatpush.msra.mxu0 %v661
    %933 = vmatmul.f32.gmra.mxu0 %v412
    %v934 = vpop.f32.mrf.mxu0
    %v935 = vadd.f32 %v671, %v934
    %936 = vdwg.mxu0
    %938 = vrot.lane.b32.xlu0 %v916, 64
    %v939 = vpop.permute.xlu0 %938
    %v940 = vsel %vm158, %v939, 0
    %942 = vmatpush.msra.mxu0 0.0
    %943 = vmatpush.msra.mxu0 0.0
    %944 = vmatpush.msra.mxu0 0.0
    %945 = vmatpush.msra.mxu0 0.0
    %946 = vmatpush.msra.mxu0 0.0
    %947 = vmatpush.msra.mxu0 0.0
    %948 = vmatpush.msra.mxu0 0.0
    %949 = vmatpush.msra.mxu0 0.0
    %950 = vmatpush.msra.mxu0 0.0
    %951 = vmatpush.msra.mxu0 0.0
    %952 = vmatpush.msra.mxu0 0.0
    %953 = vmatpush.msra.mxu0 0.0
    %954 = vmatpush.msra.mxu0 %v668
    %955 = vmatpush.msra.mxu0 %v667
    %956 = vmatpush.msra.mxu0 %v666
    %957 = vmatpush.msra.mxu0 %v665
    %958 = vmatmul.f32.gmra.mxu0 %v940
    %v959 = vpop.f32.mrf.mxu0
    %v960 = vadd.f32 0.0, %v959
    %961 = vdwg.mxu0
    %v962 = vadd.f32 %v935, %v960
    %v963 = vxor.u32 %v962, 2147483648
    %v964 = vmul.f32 %v963, 1.442695
    %v965 = vpow.pop %v964
    %v966 = vadd.f32 %v965, 1.0
    %v967 = vrcp.pop %v966
    %v968 = vmul.f32 %v966, %v967
    %v969 = vsub.f32 1.0, %v968
    %v970 = vmul.f32 %v967, %v969
    %v971 = vadd.f32 %v967, %v970
    %vm972 = vweird.f32 %v966
    %vm973 = vweird.f32 %v967
    %vm974 = vmor %vm972, %vm973
    %v975 = vsel %vm974, %v967, %v971
    %v976 = vand.u32 2147483647, %v966
    %vm977 = vcmp.eq.f32.partialorder %v976, 8.507059e+37
    %v978 = vand.u32 %v966, 2147483648
    %v979 = vor.u32 1.1754944e-38, %v978
    %v980 = vsel %vm977, %v979, %v975
    %v981 = vmul.f32 1.0, %v980
    %v982 = vtanh.pop %v962
    %v983 = vmul.f32 %v981, %v910
    %985 = vrot.lane.b32.xlu0 %v982, 32
    %v986 = vpop.permute.xlu0 %985
    %v988 = vmul.f32 %v981, %v986
    %990 = vrot.lane.b32.xlu0 %v988, 32
    %v991 = vpop.permute.xlu0 %990
    %v993 = vadd.f32 %v983, %v991
    %v994 = vtanh.pop %v993
    %996 = vrot.lane.b32.xlu0 %v994, 32
    %v997 = vpop.permute.xlu0 %996
    %v999 = vmul.f32 %v981, %v997
    %1000 = vmatpush.msra.mxu0 0.0
    %1001 = vmatpush.msra.mxu0 0.0
    %1002 = vmatpush.msra.mxu0 0.0
    %1003 = vmatpush.msra.mxu0 0.0
    %1004 = vmatpush.msra.mxu0 0.0
    %1005 = vmatpush.msra.mxu0 0.0
    %1006 = vmatpush.msra.mxu0 0.0
    %1007 = vmatpush.msra.mxu0 0.0
    %1008 = vmatpush.msra.mxu0 0.0
    %1009 = vmatpush.msra.mxu0 0.0
    %1010 = vmatpush.msra.mxu0 0.0
    %1011 = vmatpush.msra.mxu0 0.0
    %1012 = vmatpush.msra.mxu0 %v664
    %1013 = vmatpush.msra.mxu0 %v663
    %1014 = vmatpush.msra.mxu0 %v662
    %1015 = vmatpush.msra.mxu0 %v661
    %1016 = vmatmul.f32.gmra.mxu0 %v475
    %v1017 = vpop.f32.mrf.mxu0
    %v1018 = vadd.f32 %v671, %v1017
    %1019 = vdwg.mxu0
    %1021 = vrot.lane.b32.xlu0 %v999, 64
    %v1022 = vpop.permute.xlu0 %1021
    %v1023 = vsel %vm158, %v1022, 0
    %1025 = vmatpush.msra.mxu0 0.0
    %1026 = vmatpush.msra.mxu0 0.0
    %1027 = vmatpush.msra.mxu0 0.0
    %1028 = vmatpush.msra.mxu0 0.0
    %1029 = vmatpush.msra.mxu0 0.0
    %1030 = vmatpush.msra.mxu0 0.0
    %1031 = vmatpush.msra.mxu0 0.0
    %1032 = vmatpush.msra.mxu0 0.0
    %1033 = vmatpush.msra.mxu0 0.0
    %1034 = vmatpush.msra.mxu0 0.0
    %1035 = vmatpush.msra.mxu0 0.0
    %1036 = vmatpush.msra.mxu0 0.0
    %1037 = vmatpush.msra.mxu0 %v668
    %1038 = vmatpush.msra.mxu0 %v667
    %1039 = vmatpush.msra.mxu0 %v666
    %1040 = vmatpush.msra.mxu0 %v665
    %1041 = vmatmul.f32.gmra.mxu0 %v1023
    %v1042 = vpop.f32.mrf.mxu0
    %v1043 = vadd.f32 0.0, %v1042
    %1044 = vdwg.mxu0
    %v1045 = vadd.f32 %v1018, %v1043
    %v1046 = vxor.u32 %v1045, 2147483648
    %v1047 = vmul.f32 %v1046, 1.442695
    %v1048 = vpow.pop %v1047
    %v1049 = vadd.f32 %v1048, 1.0
    %v1050 = vrcp.pop %v1049
    %v1051 = vmul.f32 %v1049, %v1050
    %v1052 = vsub.f32 1.0, %v1051
    %v1053 = vmul.f32 %v1050, %v1052
    %v1054 = vadd.f32 %v1050, %v1053
    %vm1055 = vweird.f32 %v1049
    %vm1056 = vweird.f32 %v1050
    %vm1057 = vmor %vm1055, %vm1056
    %v1058 = vsel %vm1057, %v1050, %v1054
    %v1059 = vand.u32 2147483647, %v1049
    %vm1060 = vcmp.eq.f32.partialorder %v1059, 8.507059e+37
    %v1061 = vand.u32 %v1049, 2147483648
    %v1062 = vor.u32 1.1754944e-38, %v1061
    %v1063 = vsel %vm1060, %v1062, %v1058
    %v1064 = vmul.f32 1.0, %v1063
    %v1065 = vtanh.pop %v1045
    %v1066 = vmul.f32 %v1064, %v993
    %1068 = vrot.lane.b32.xlu0 %v1065, 32
    %v1069 = vpop.permute.xlu0 %1068
    %v1071 = vmul.f32 %v1064, %v1069
    %1073 = vrot.lane.b32.xlu0 %v1071, 32
    %v1074 = vpop.permute.xlu0 %1073
    %v1076 = vadd.f32 %v1066, %v1074
    %v1077 = vtanh.pop %v1076
    %1079 = vrot.lane.b32.xlu0 %v1077, 32
    %v1080 = vpop.permute.xlu0 %1079
    %v1082 = vmul.f32 %v1064, %v1080
    %1083 = vmatpush.msra.mxu0 0.0
    %1084 = vmatpush.msra.mxu0 0.0
    %1085 = vmatpush.msra.mxu0 0.0
    %1086 = vmatpush.msra.mxu0 0.0
    %1087 = vmatpush.msra.mxu0 0.0
    %1088 = vmatpush.msra.mxu0 0.0
    %1089 = vmatpush.msra.mxu0 0.0
    %1090 = vmatpush.msra.mxu0 0.0
    %1091 = vmatpush.msra.mxu0 0.0
    %1092 = vmatpush.msra.mxu0 0.0
    %1093 = vmatpush.msra.mxu0 0.0
    %1094 = vmatpush.msra.mxu0 0.0
    %1095 = vmatpush.msra.mxu0 %v664
    %1096 = vmatpush.msra.mxu0 %v663
    %1097 = vmatpush.msra.mxu0 %v662
    %1098 = vmatpush.msra.mxu0 %v661
    %1099 = vmatmul.f32.gmra.mxu0 %v538
    %v1100 = vpop.f32.mrf.mxu0
    %v1101 = vadd.f32 %v671, %v1100
    %1102 = vdwg.mxu0
    %1104 = vrot.lane.b32.xlu0 %v1082, 64
    %v1105 = vpop.permute.xlu0 %1104
    %v1106 = vsel %vm158, %v1105, 0
    %1108 = vmatpush.msra.mxu0 0.0
    %1109 = vmatpush.msra.mxu0 0.0
    %1110 = vmatpush.msra.mxu0 0.0
    %1111 = vmatpush.msra.mxu0 0.0
    %1112 = vmatpush.msra.mxu0 0.0
    %1113 = vmatpush.msra.mxu0 0.0
    %1114 = vmatpush.msra.mxu0 0.0
    %1115 = vmatpush.msra.mxu0 0.0
    %1116 = vmatpush.msra.mxu0 0.0
    %1117 = vmatpush.msra.mxu0 0.0
    %1118 = vmatpush.msra.mxu0 0.0
    %1119 = vmatpush.msra.mxu0 0.0
    %1120 = vmatpush.msra.mxu0 %v668
    %1121 = vmatpush.msra.mxu0 %v667
    %1122 = vmatpush.msra.mxu0 %v666
    %1123 = vmatpush.msra.mxu0 %v665
    %1124 = vmatmul.f32.gmra.mxu0 %v1106
    %v1125 = vpop.f32.mrf.mxu0
    %v1126 = vadd.f32 0.0, %v1125
    %1127 = vdwg.mxu0
    %v1128 = vadd.f32 %v1101, %v1126
    %v1129 = vxor.u32 %v1128, 2147483648
    %v1130 = vmul.f32 %v1129, 1.442695
    %v1131 = vpow.pop %v1130
    %v1132 = vadd.f32 %v1131, 1.0
    %v1133 = vrcp.pop %v1132
    %v1134 = vmul.f32 %v1132, %v1133
    %v1135 = vsub.f32 1.0, %v1134
    %v1136 = vmul.f32 %v1133, %v1135
    %v1137 = vadd.f32 %v1133, %v1136
    %vm1138 = vweird.f32 %v1132
    %vm1139 = vweird.f32 %v1133
    %vm1140 = vmor %vm1138, %vm1139
    %v1141 = vsel %vm1140, %v1133, %v1137
    %v1142 = vand.u32 2147483647, %v1132
    %vm1143 = vcmp.eq.f32.partialorder %v1142, 8.507059e+37
    %v1144 = vand.u32 %v1132, 2147483648
    %v1145 = vor.u32 1.1754944e-38, %v1144
    %v1146 = vsel %vm1143, %v1145, %v1141
    %v1147 = vmul.f32 1.0, %v1146
    %v1148 = vtanh.pop %v1128
    %v1149 = vmul.f32 %v1147, %v1076
    %1151 = vrot.lane.b32.xlu0 %v1148, 32
    %v1152 = vpop.permute.xlu0 %1151
    %v1154 = vmul.f32 %v1147, %v1152
    %1156 = vrot.lane.b32.xlu0 %v1154, 32
    %v1157 = vpop.permute.xlu0 %1156
    %v1159 = vadd.f32 %v1149, %v1157
    %v1160 = vtanh.pop %v1159
    %1162 = vrot.lane.b32.xlu0 %v1160, 32
    %v1163 = vpop.permute.xlu0 %1162
    %v1165 = vmul.f32 %v1147, %v1163
    %1166 = vmatpush.msra.mxu0 0.0
    %1167 = vmatpush.msra.mxu0 0.0
    %1168 = vmatpush.msra.mxu0 0.0
    %1169 = vmatpush.msra.mxu0 0.0
    %1170 = vmatpush.msra.mxu0 0.0
    %1171 = vmatpush.msra.mxu0 0.0
    %1172 = vmatpush.msra.mxu0 0.0
    %1173 = vmatpush.msra.mxu0 0.0
    %1174 = vmatpush.msra.mxu0 0.0
    %1175 = vmatpush.msra.mxu0 0.0
    %1176 = vmatpush.msra.mxu0 0.0
    %1177 = vmatpush.msra.mxu0 0.0
    %1178 = vmatpush.msra.mxu0 %v664
    %1179 = vmatpush.msra.mxu0 %v663
    %1180 = vmatpush.msra.mxu0 %v662
    %1181 = vmatpush.msra.mxu0 %v661
    %1182 = vmatmul.f32.gmra.mxu0 %v601
    %v1183 = vpop.f32.mrf.mxu0
    %v1184 = vadd.f32 %v671, %v1183
    %1185 = vdwg.mxu0
    %1187 = vrot.lane.b32.xlu0 %v1165, 64
    %v1188 = vpop.permute.xlu0 %1187
    %v1189 = vsel %vm158, %v1188, 0
    %1191 = vmatpush.msra.mxu0 0.0
    %1192 = vmatpush.msra.mxu0 0.0
    %1193 = vmatpush.msra.mxu0 0.0
    %1194 = vmatpush.msra.mxu0 0.0
    %1195 = vmatpush.msra.mxu0 0.0
    %1196 = vmatpush.msra.mxu0 0.0
    %1197 = vmatpush.msra.mxu0 0.0
    %1198 = vmatpush.msra.mxu0 0.0
    %1199 = vmatpush.msra.mxu0 0.0
    %1200 = vmatpush.msra.mxu0 0.0
    %1201 = vmatpush.msra.mxu0 0.0
    %1202 = vmatpush.msra.mxu0 0.0
    %1203 = vmatpush.msra.mxu0 %v668
    %1204 = vmatpush.msra.mxu0 %v667
    %1205 = vmatpush.msra.mxu0 %v666
    %1206 = vmatpush.msra.mxu0 %v665
    %1207 = vmatmul.f32.gmra.mxu0 %v1189
    %v1208 = vpop.f32.mrf.mxu0
    %v1209 = vadd.f32 0.0, %v1208
    %1210 = vdwg.mxu0
    %v1211 = vadd.f32 %v1184, %v1209
    %v1212 = vxor.u32 %v1211, 2147483648
    %v1213 = vmul.f32 %v1212, 1.442695
    %v1214 = vpow.pop %v1213
    %v1215 = vadd.f32 %v1214, 1.0
    %v1216 = vrcp.pop %v1215
    %v1217 = vmul.f32 %v1215, %v1216
    %v1218 = vsub.f32 1.0, %v1217
    %v1219 = vmul.f32 %v1216, %v1218
    %v1220 = vadd.f32 %v1216, %v1219
    %vm1221 = vweird.f32 %v1215
    %vm1222 = vweird.f32 %v1216
    %vm1223 = vmor %vm1221, %vm1222
    %v1224 = vsel %vm1223, %v1216, %v1220
    %v1225 = vand.u32 2147483647, %v1215
    %vm1226 = vcmp.eq.f32.partialorder %v1225, 8.507059e+37
    %v1227 = vand.u32 %v1215, 2147483648
    %v1228 = vor.u32 1.1754944e-38, %v1227
    %v1229 = vsel %vm1226, %v1228, %v1224
    %v1230 = vmul.f32 1.0, %v1229
    %v1231 = vtanh.pop %v1211
    %v1232 = vmul.f32 %v1230, %v1159
    %1234 = vrot.lane.b32.xlu0 %v1231, 32
    %v1235 = vpop.permute.xlu0 %1234
    %v1237 = vmul.f32 %v1230, %v1235
    %1239 = vrot.lane.b32.xlu0 %v1237, 32
    %v1240 = vpop.permute.xlu0 %1239
    %v1242 = vadd.f32 %v1232, %v1240
    %v1243 = vtanh.pop %v1242
    %1245 = vrot.lane.b32.xlu0 %v1243, 32
    %v1246 = vpop.permute.xlu0 %1245
    %v1248 = vmul.f32 %v1230, %v1246
    %1250 = vrot.lane.b32.xlu0 %v660, 64
    %v1251 = vpop.permute.xlu0 %1250
    %v1252 = vsel %vm158, %v1251, 0
    %1254 = vmatpush.msra.mxu0 0.0
    %1255 = vmatpush.msra.mxu0 0.0
    %1256 = vmatpush.msra.mxu0 0.0
    %1257 = vmatpush.msra.mxu0 0.0
    %1258 = vmatpush.msra.mxu0 0.0
    %1259 = vmatpush.msra.mxu0 0.0
    %1260 = vmatpush.msra.mxu0 0.0
    %1261 = vmatpush.msra.mxu0 0.0
    %1262 = vmatpush.msra.mxu0 0.0
    %1263 = vmatpush.msra.mxu0 0.0
    %1264 = vmatpush.msra.mxu0 0.0
    %1265 = vmatpush.msra.mxu0 0.0
    %1266 = vmatpush.msra.mxu0 %v664
    %1267 = vmatpush.msra.mxu0 %v663
    %1268 = vmatpush.msra.mxu0 %v662
    %1269 = vmatpush.msra.mxu0 %v661
    %1270 = vmatmul.f32.gmra.mxu0 %v1252
    %v1271 = vpop.f32.mrf.mxu0
    %v1272 = vadd.f32 %v671, %v1271
    %1273 = vdwg.mxu0
    %1275 = vrot.lane.b32.xlu0 %v1248, 64
    %v1276 = vpop.permute.xlu0 %1275
    %v1277 = vsel %vm158, %v1276, 0
    %1279 = vmatpush.msra.mxu0 0.0
    %1280 = vmatpush.msra.mxu0 0.0
    %1281 = vmatpush.msra.mxu0 0.0
    %1282 = vmatpush.msra.mxu0 0.0
    %1283 = vmatpush.msra.mxu0 0.0
    %1284 = vmatpush.msra.mxu0 0.0
    %1285 = vmatpush.msra.mxu0 0.0
    %1286 = vmatpush.msra.mxu0 0.0
    %1287 = vmatpush.msra.mxu0 0.0
    %1288 = vmatpush.msra.mxu0 0.0
    %1289 = vmatpush.msra.mxu0 0.0
    %1290 = vmatpush.msra.mxu0 0.0
    %1291 = vmatpush.msra.mxu0 %v668
    %1292 = vmatpush.msra.mxu0 %v667
    %1293 = vmatpush.msra.mxu0 %v666
    %1294 = vmatpush.msra.mxu0 %v665
    %1295 = vmatmul.f32.gmra.mxu0 %v1277
    %v1296 = vpop.f32.mrf.mxu0
    %v1297 = vadd.f32 0.0, %v1296
    %1298 = vdwg.mxu0
    %v1299 = vadd.f32 %v1272, %v1297
    %v1300 = vxor.u32 %v1299, 2147483648
    %v1301 = vmul.f32 %v1300, 1.442695
    %v1302 = vpow.pop %v1301
    %v1303 = vadd.f32 %v1302, 1.0
    %v1304 = vrcp.pop %v1303
    %v1305 = vmul.f32 %v1303, %v1304
    %v1306 = vsub.f32 1.0, %v1305
    %v1307 = vmul.f32 %v1304, %v1306
    %v1308 = vadd.f32 %v1304, %v1307
    %vm1309 = vweird.f32 %v1303
    %vm1310 = vweird.f32 %v1304
    %vm1311 = vmor %vm1309, %vm1310
    %v1312 = vsel %vm1311, %v1304, %v1308
    %v1313 = vand.u32 2147483647, %v1303
    %vm1314 = vcmp.eq.f32.partialorder %v1313, 8.507059e+37
    %v1315 = vand.u32 %v1303, 2147483648
    %v1316 = vor.u32 1.1754944e-38, %v1315
    %v1317 = vsel %vm1314, %v1316, %v1312
    %v1318 = vmul.f32 1.0, %v1317
    %v1319 = vtanh.pop %v1299
    %v1320 = vmul.f32 %v1318, %v1242
    %1322 = vrot.lane.b32.xlu0 %v1319, 32
    %v1323 = vpop.permute.xlu0 %1322
    %v1325 = vmul.f32 %v1318, %v1323
    %1327 = vrot.lane.b32.xlu0 %v1325, 32
    %v1328 = vpop.permute.xlu0 %1327
    %v1330 = vadd.f32 %v1320, %v1328
    %v1331 = vtanh.pop %v1330
    %1333 = vrot.lane.b32.xlu0 %v1331, 32
    %v1334 = vpop.permute.xlu0 %1333
    %v1336 = vmul.f32 %v1318, %v1334
    %v1337 = vld [vmem:[%s1] sm:$0xff]
    %v1338 = vld [vmem:[%s1 + $0x8] sm:$0xff]
    %v1339 = vld [vmem:[%s1 + $0x10] sm:$0xff]
    %v1340 = vld [vmem:[%s1 + $0x18] sm:$0xff]
    %v1341 = vld [vmem:[%s1 + $0x20] sm:$0xff]
    %v1342 = vld [vmem:[%s1 + $0x28] sm:$0xff]
    %v1343 = vld [vmem:[%s1 + $0x30] sm:$0xff]
    %v1344 = vld [vmem:[%s2] sm:$0xff]
    %v1345 = vld [vmem:[%s2 + $0x8] sm:$0xff]
    %v1346 = vld [vmem:[%s2 + $0x10] sm:$0xff]
    %v1347 = vld [vmem:[%s2 + $0x18] sm:$0xff]
    %v1348 = vld [vmem:[%s2 + $0x20] sm:$0xff]
    %v1349 = vld [vmem:[%s2 + $0x28] sm:$0xff]
    %v1350 = vld [vmem:[%s2 + $0x30] sm:$0xff]
    %v1351 = vld [vmem:[%s10] sm:$0xff]
    %v1352 = vld [vmem:[%s10 + $0x8] sm:$0xff]
    %v1353 = vld [vmem:[%s11] sm:$0xff]
    %v1354 = vld [vmem:[%s11 + $0x8] sm:$0xff]
    %v1355 = vld [vmem:[%s11 + $0x10] sm:$0xff]
    %v1356 = vld [vmem:[%s11 + $0x18] sm:$0xff]
    %v1357 = vld [vmem:[%s12] sm:$0x1]
    %v1359 = vperm.slane %v1357, 0
    %vm1361 = vcmask 130048
    %v1363 = vsel %vm1361, %v1337, 0
    %v1366 = vsel %vm1361, %v1338, 0
    %v1369 = vsel %vm1361, %v1339, 0
    %v1372 = vsel %vm1361, %v1340, 0
    %v1375 = vsel %vm1361, %v1341, 0
    %v1378 = vsel %vm1361, %v1342, 0
    %v1381 = vsel %vm1361, %v1343, 0
    %1383 = vmatpush.msra.mxu0 0.0
    %1384 = vmatpush.msra.mxu0 0.0
    %1385 = vmatpush.msra.mxu0 0.0
    %1386 = vmatpush.msra.mxu0 0.0
    %1387 = vmatpush.msra.mxu0 0.0
    %1388 = vmatpush.msra.mxu0 0.0
    %1389 = vmatpush.msra.mxu0 0.0
    %1390 = vmatpush.msra.mxu0 0.0
    %1391 = vmatpush.msra.mxu0 0.0
    %1392 = vmatpush.msra.mxu0 0.0
    %1393 = vmatpush.msra.mxu0 0.0
    %1394 = vmatpush.msra.mxu0 0.0
    %1395 = vmatpush.msra.mxu0 0.0
    %1396 = vmatpush.msra.mxu0 0.0
    %1397 = vmatpush.msra.mxu0 %v1352
    %1398 = vmatpush.msra.mxu0 %v1351
    %1399 = vmatmul.f32.gmra.mxu0 %v1363
    %v1400 = vpop.f32.mrf.mxu0
    %v1401 = vadd.f32 %v1359, %v1400
    %1402 = vmatmul.f32.gmra.mxu0 %v1366
    %v1403 = vpop.f32.mrf.mxu0
    %v1404 = vadd.f32 %v1359, %v1403
    %1405 = vmatmul.f32.gmra.mxu0 %v1369
    %v1406 = vpop.f32.mrf.mxu0
    %v1407 = vadd.f32 %v1359, %v1406
    %1408 = vmatmul.f32.gmra.mxu0 %v1372
    %v1409 = vpop.f32.mrf.mxu0
    %v1410 = vadd.f32 %v1359, %v1409
    %1411 = vmatmul.f32.gmra.mxu0 %v1375
    %v1412 = vpop.f32.mrf.mxu0
    %v1413 = vadd.f32 %v1359, %v1412
    %1414 = vmatmul.f32.gmra.mxu0 %v1378
    %v1415 = vpop.f32.mrf.mxu0
    %v1416 = vadd.f32 %v1359, %v1415
    %1417 = vmatmul.f32.gmra.mxu0 %v1381
    %v1418 = vpop.f32.mrf.mxu0
    %v1419 = vadd.f32 %v1359, %v1418
    %1420 = vdwg.mxu0
    %1421 = vmatpush.msra.mxu0 0.0
    %1422 = vmatpush.msra.mxu0 0.0
    %1423 = vmatpush.msra.mxu0 0.0
    %1424 = vmatpush.msra.mxu0 0.0
    %1425 = vmatpush.msra.mxu0 0.0
    %1426 = vmatpush.msra.mxu0 0.0
    %1427 = vmatpush.msra.mxu0 0.0
    %1428 = vmatpush.msra.mxu0 0.0
    %1429 = vmatpush.msra.mxu0 0.0
    %1430 = vmatpush.msra.mxu0 0.0
    %1431 = vmatpush.msra.mxu0 0.0
    %1432 = vmatpush.msra.mxu0 0.0
    %1433 = vmatpush.msra.mxu0 %v1356
    %1434 = vmatpush.msra.mxu0 %v1355
    %1435 = vmatpush.msra.mxu0 %v1354
    %1436 = vmatpush.msra.mxu0 %v1353
    %1437 = vmatmul.f32.gmra.mxu0 %v1252
    %v1438 = vpop.f32.mrf.mxu0
    %v1439 = vadd.f32 0.0, %v1438
    %1440 = vdwg.mxu0
    %v1441 = vadd.f32 %v1401, %v1439
    %v1442 = vxor.u32 %v1441, 2147483648
    %v1443 = vmul.f32 %v1442, 1.442695
    %v1444 = vpow.pop %v1443
    %v1445 = vadd.f32 %v1444, 1.0
    %v1446 = vrcp.pop %v1445
    %v1447 = vmul.f32 %v1445, %v1446
    %v1448 = vsub.f32 1.0, %v1447
    %v1449 = vmul.f32 %v1446, %v1448
    %v1450 = vadd.f32 %v1446, %v1449
    %vm1451 = vweird.f32 %v1445
    %vm1452 = vweird.f32 %v1446
    %vm1453 = vmor %vm1451, %vm1452
    %v1454 = vsel %vm1453, %v1446, %v1450
    %v1455 = vand.u32 2147483647, %v1445
    %vm1456 = vcmp.eq.f32.partialorder %v1455, 8.507059e+37
    %v1457 = vand.u32 %v1445, 2147483648
    %v1458 = vor.u32 1.1754944e-38, %v1457
    %v1459 = vsel %vm1456, %v1458, %v1454
    %v1460 = vmul.f32 1.0, %v1459
    %v1461 = vtanh.pop %v1441
    %v1462 = vmul.f32 %v1460, %v654
    %1464 = vrot.lane.b32.xlu0 %v1461, 32
    %v1465 = vpop.permute.xlu0 %1464
    %v1467 = vmul.f32 %v1460, %v1465
    %1469 = vrot.lane.b32.xlu0 %v1467, 32
    %v1470 = vpop.permute.xlu0 %1469
    %v1472 = vadd.f32 %v1462, %v1470
    %v1473 = vtanh.pop %v1472
    %1475 = vrot.lane.b32.xlu0 %v1473, 32
    %v1476 = vpop.permute.xlu0 %1475
    %v1478 = vmul.f32 %v1460, %v1476
    %1480 = vrot.lane.b32.xlu0 %v1478, 64
    %v1481 = vpop.permute.xlu0 %1480
    %v1482 = vsel %vm158, %v1481, 0
    %1484 = vmatpush.msra.mxu0 0.0
    %1485 = vmatpush.msra.mxu0 0.0
    %1486 = vmatpush.msra.mxu0 0.0
    %1487 = vmatpush.msra.mxu0 0.0
    %1488 = vmatpush.msra.mxu0 0.0
    %1489 = vmatpush.msra.mxu0 0.0
    %1490 = vmatpush.msra.mxu0 0.0
    %1491 = vmatpush.msra.mxu0 0.0
    %1492 = vmatpush.msra.mxu0 0.0
    %1493 = vmatpush.msra.mxu0 0.0
    %1494 = vmatpush.msra.mxu0 0.0
    %1495 = vmatpush.msra.mxu0 0.0
    %1496 = vmatpush.msra.mxu0 %v1356
    %1497 = vmatpush.msra.mxu0 %v1355
    %1498 = vmatpush.msra.mxu0 %v1354
    %1499 = vmatpush.msra.mxu0 %v1353
    %1500 = vmatmul.f32.gmra.mxu0 %v1482
    %v1501 = vpop.f32.mrf.mxu0
    %v1502 = vadd.f32 0.0, %v1501
    %1503 = vdwg.mxu0
    %v1504 = vadd.f32 %v1404, %v1502
    %v1505 = vxor.u32 %v1504, 2147483648
    %v1506 = vmul.f32 %v1505, 1.442695
    %v1507 = vpow.pop %v1506
    %v1508 = vadd.f32 %v1507, 1.0
    %v1509 = vrcp.pop %v1508
    %v1510 = vmul.f32 %v1508, %v1509
    %v1511 = vsub.f32 1.0, %v1510
    %v1512 = vmul.f32 %v1509, %v1511
    %v1513 = vadd.f32 %v1509, %v1512
    %vm1514 = vweird.f32 %v1508
    %vm1515 = vweird.f32 %v1509
    %vm1516 = vmor %vm1514, %vm1515
    %v1517 = vsel %vm1516, %v1509, %v1513
    %v1518 = vand.u32 2147483647, %v1508
    %vm1519 = vcmp.eq.f32.partialorder %v1518, 8.507059e+37
    %v1520 = vand.u32 %v1508, 2147483648
    %v1521 = vor.u32 1.1754944e-38, %v1520
    %v1522 = vsel %vm1519, %v1521, %v1517
    %v1523 = vmul.f32 1.0, %v1522
    %v1524 = vtanh.pop %v1504
    %v1525 = vmul.f32 %v1523, %v1472
    %1527 = vrot.lane.b32.xlu0 %v1524, 32
    %v1528 = vpop.permute.xlu0 %1527
    %v1530 = vmul.f32 %v1523, %v1528
    %1532 = vrot.lane.b32.xlu0 %v1530, 32
    %v1533 = vpop.permute.xlu0 %1532
    %v1535 = vadd.f32 %v1525, %v1533
    %v1536 = vtanh.pop %v1535
    %1538 = vrot.lane.b32.xlu0 %v1536, 32
    %v1539 = vpop.permute.xlu0 %1538
    %v1541 = vmul.f32 %v1523, %v1539
    %1543 = vrot.lane.b32.xlu0 %v1541, 64
    %v1544 = vpop.permute.xlu0 %1543
    %v1545 = vsel %vm158, %v1544, 0
    %1547 = vmatpush.msra.mxu0 0.0
    %1548 = vmatpush.msra.mxu0 0.0
    %1549 = vmatpush.msra.mxu0 0.0
    %1550 = vmatpush.msra.mxu0 0.0
    %1551 = vmatpush.msra.mxu0 0.0
    %1552 = vmatpush.msra.mxu0 0.0
    %1553 = vmatpush.msra.mxu0 0.0
    %1554 = vmatpush.msra.mxu0 0.0
    %1555 = vmatpush.msra.mxu0 0.0
    %1556 = vmatpush.msra.mxu0 0.0
    %1557 = vmatpush.msra.mxu0 0.0
    %1558 = vmatpush.msra.mxu0 0.0
    %1559 = vmatpush.msra.mxu0 %v1356
    %1560 = vmatpush.msra.mxu0 %v1355
    %1561 = vmatpush.msra.mxu0 %v1354
    %1562 = vmatpush.msra.mxu0 %v1353
    %1563 = vmatmul.f32.gmra.mxu0 %v1545
    %v1564 = vpop.f32.mrf.mxu0
    %v1565 = vadd.f32 0.0, %v1564
    %1566 = vdwg.mxu0
    %v1567 = vadd.f32 %v1407, %v1565
    %v1568 = vxor.u32 %v1567, 2147483648
    %v1569 = vmul.f32 %v1568, 1.442695
    %v1570 = vpow.pop %v1569
    %v1571 = vadd.f32 %v1570, 1.0
    %v1572 = vrcp.pop %v1571
    %v1573 = vmul.f32 %v1571, %v1572
    %v1574 = vsub.f32 1.0, %v1573
    %v1575 = vmul.f32 %v1572, %v1574
    %v1576 = vadd.f32 %v1572, %v1575
    %vm1577 = vweird.f32 %v1571
    %vm1578 = vweird.f32 %v1572
    %vm1579 = vmor %vm1577, %vm1578
    %v1580 = vsel %vm1579, %v1572, %v1576
    %v1581 = vand.u32 2147483647, %v1571
    %vm1582 = vcmp.eq.f32.partialorder %v1581, 8.507059e+37
    %v1583 = vand.u32 %v1571, 2147483648
    %v1584 = vor.u32 1.1754944e-38, %v1583
    %v1585 = vsel %vm1582, %v1584, %v1580
    %v1586 = vmul.f32 1.0, %v1585
    %v1587 = vtanh.pop %v1567
    %v1588 = vmul.f32 %v1586, %v1535
    %1590 = vrot.lane.b32.xlu0 %v1587, 32
    %v1591 = vpop.permute.xlu0 %1590
    %v1593 = vmul.f32 %v1586, %v1591
    %1595 = vrot.lane.b32.xlu0 %v1593, 32
    %v1596 = vpop.permute.xlu0 %1595
    %v1598 = vadd.f32 %v1588, %v1596
    %v1599 = vtanh.pop %v1598
    %1601 = vrot.lane.b32.xlu0 %v1599, 32
    %v1602 = vpop.permute.xlu0 %1601
    %v1604 = vmul.f32 %v1586, %v1602
    %1606 = vrot.lane.b32.xlu0 %v1604, 64
    %v1607 = vpop.permute.xlu0 %1606
    %v1608 = vsel %vm158, %v1607, 0
    %1610 = vmatpush.msra.mxu0 0.0
    %1611 = vmatpush.msra.mxu0 0.0
    %1612 = vmatpush.msra.mxu0 0.0
    %1613 = vmatpush.msra.mxu0 0.0
    %1614 = vmatpush.msra.mxu0 0.0
    %1615 = vmatpush.msra.mxu0 0.0
    %1616 = vmatpush.msra.mxu0 0.0
    %1617 = vmatpush.msra.mxu0 0.0
    %1618 = vmatpush.msra.mxu0 0.0
    %1619 = vmatpush.msra.mxu0 0.0
    %1620 = vmatpush.msra.mxu0 0.0
    %1621 = vmatpush.msra.mxu0 0.0
    %1622 = vmatpush.msra.mxu0 %v1356
    %1623 = vmatpush.msra.mxu0 %v1355
    %1624 = vmatpush.msra.mxu0 %v1354
    %1625 = vmatpush.msra.mxu0 %v1353
    %1626 = vmatmul.f32.gmra.mxu0 %v1608
    %v1627 = vpop.f32.mrf.mxu0
    %v1628 = vadd.f32 0.0, %v1627
    %1629 = vdwg.mxu0
    %v1630 = vadd.f32 %v1410, %v1628
    %v1631 = vxor.u32 %v1630, 2147483648
    %v1632 = vmul.f32 %v1631, 1.442695
    %v1633 = vpow.pop %v1632
    %v1634 = vadd.f32 %v1633, 1.0
    %v1635 = vrcp.pop %v1634
    %v1636 = vmul.f32 %v1634, %v1635
    %v1637 = vsub.f32 1.0, %v1636
    %v1638 = vmul.f32 %v1635, %v1637
    %v1639 = vadd.f32 %v1635, %v1638
    %vm1640 = vweird.f32 %v1634
    %vm1641 = vweird.f32 %v1635
    %vm1642 = vmor %vm1640, %vm1641
    %v1643 = vsel %vm1642, %v1635, %v1639
    %v1644 = vand.u32 2147483647, %v1634
    %vm1645 = vcmp.eq.f32.partialorder %v1644, 8.507059e+37
    %v1646 = vand.u32 %v1634, 2147483648
    %v1647 = vor.u32 1.1754944e-38, %v1646
    %v1648 = vsel %vm1645, %v1647, %v1643
    %v1649 = vmul.f32 1.0, %v1648
    %v1650 = vtanh.pop %v1630
    %v1651 = vmul.f32 %v1649, %v1598
    %1653 = vrot.lane.b32.xlu0 %v1650, 32
    %v1654 = vpop.permute.xlu0 %1653
    %v1656 = vmul.f32 %v1649, %v1654
    %1658 = vrot.lane.b32.xlu0 %v1656, 32
    %v1659 = vpop.permute.xlu0 %1658
    %v1661 = vadd.f32 %v1651, %v1659
    %v1662 = vtanh.pop %v1661
    %1664 = vrot.lane.b32.xlu0 %v1662, 32
    %v1665 = vpop.permute.xlu0 %1664
    %v1667 = vmul.f32 %v1649, %v1665
    %1669 = vrot.lane.b32.xlu0 %v1667, 64
    %v1670 = vpop.permute.xlu0 %1669
    %v1671 = vsel %vm158, %v1670, 0
    %1673 = vmatpush.msra.mxu0 0.0
    %1674 = vmatpush.msra.mxu0 0.0
    %1675 = vmatpush.msra.mxu0 0.0
    %1676 = vmatpush.msra.mxu0 0.0
    %1677 = vmatpush.msra.mxu0 0.0
    %1678 = vmatpush.msra.mxu0 0.0
    %1679 = vmatpush.msra.mxu0 0.0
    %1680 = vmatpush.msra.mxu0 0.0
    %1681 = vmatpush.msra.mxu0 0.0
    %1682 = vmatpush.msra.mxu0 0.0
    %1683 = vmatpush.msra.mxu0 0.0
    %1684 = vmatpush.msra.mxu0 0.0
    %1685 = vmatpush.msra.mxu0 %v1356
    %1686 = vmatpush.msra.mxu0 %v1355
    %1687 = vmatpush.msra.mxu0 %v1354
    %1688 = vmatpush.msra.mxu0 %v1353
    %1689 = vmatmul.f32.gmra.mxu0 %v1671
    %v1690 = vpop.f32.mrf.mxu0
    %v1691 = vadd.f32 0.0, %v1690
    %1692 = vdwg.mxu0
    %v1693 = vadd.f32 %v1413, %v1691
    %v1694 = vxor.u32 %v1693, 2147483648
    %v1695 = vmul.f32 %v1694, 1.442695
    %v1696 = vpow.pop %v1695
    %v1697 = vadd.f32 %v1696, 1.0
    %v1698 = vrcp.pop %v1697
    %v1699 = vmul.f32 %v1697, %v1698
    %v1700 = vsub.f32 1.0, %v1699
    %v1701 = vmul.f32 %v1698, %v1700
    %v1702 = vadd.f32 %v1698, %v1701
    %vm1703 = vweird.f32 %v1697
    %vm1704 = vweird.f32 %v1698
    %vm1705 = vmor %vm1703, %vm1704
    %v1706 = vsel %vm1705, %v1698, %v1702
    %v1707 = vand.u32 2147483647, %v1697
    %vm1708 = vcmp.eq.f32.partialorder %v1707, 8.507059e+37
    %v1709 = vand.u32 %v1697, 2147483648
    %v1710 = vor.u32 1.1754944e-38, %v1709
    %v1711 = vsel %vm1708, %v1710, %v1706
    %v1712 = vmul.f32 1.0, %v1711
    %v1713 = vtanh.pop %v1693
    %v1714 = vmul.f32 %v1712, %v1661
    %1716 = vrot.lane.b32.xlu0 %v1713, 32
    %v1717 = vpop.permute.xlu0 %1716
    %v1719 = vmul.f32 %v1712, %v1717
    %1721 = vrot.lane.b32.xlu0 %v1719, 32
    %v1722 = vpop.permute.xlu0 %1721
    %v1724 = vadd.f32 %v1714, %v1722
    %v1725 = vtanh.pop %v1724
    %1727 = vrot.lane.b32.xlu0 %v1725, 32
    %v1728 = vpop.permute.xlu0 %1727
    %v1730 = vmul.f32 %v1712, %v1728
    %1732 = vrot.lane.b32.xlu0 %v1730, 64
    %v1733 = vpop.permute.xlu0 %1732
    %v1734 = vsel %vm158, %v1733, 0
    %1736 = vmatpush.msra.mxu0 0.0
    %1737 = vmatpush.msra.mxu0 0.0
    %1738 = vmatpush.msra.mxu0 0.0
    %1739 = vmatpush.msra.mxu0 0.0
    %1740 = vmatpush.msra.mxu0 0.0
    %1741 = vmatpush.msra.mxu0 0.0
    %1742 = vmatpush.msra.mxu0 0.0
    %1743 = vmatpush.msra.mxu0 0.0
    %1744 = vmatpush.msra.mxu0 0.0
    %1745 = vmatpush.msra.mxu0 0.0
    %1746 = vmatpush.msra.mxu0 0.0
    %1747 = vmatpush.msra.mxu0 0.0
    %1748 = vmatpush.msra.mxu0 %v1356
    %1749 = vmatpush.msra.mxu0 %v1355
    %1750 = vmatpush.msra.mxu0 %v1354
    %1751 = vmatpush.msra.mxu0 %v1353
    %1752 = vmatmul.f32.gmra.mxu0 %v1734
    %v1753 = vpop.f32.mrf.mxu0
    %v1754 = vadd.f32 0.0, %v1753
    %1755 = vdwg.mxu0
    %v1756 = vadd.f32 %v1416, %v1754
    %v1757 = vxor.u32 %v1756, 2147483648
    %v1758 = vmul.f32 %v1757, 1.442695
    %v1759 = vpow.pop %v1758
    %v1760 = vadd.f32 %v1759, 1.0
    %v1761 = vrcp.pop %v1760
    %v1762 = vmul.f32 %v1760, %v1761
    %v1763 = vsub.f32 1.0, %v1762
    %v1764 = vmul.f32 %v1761, %v1763
    %v1765 = vadd.f32 %v1761, %v1764
    %vm1766 = vweird.f32 %v1760
    %vm1767 = vweird.f32 %v1761
    %vm1768 = vmor %vm1766, %vm1767
    %v1769 = vsel %vm1768, %v1761, %v1765
    %v1770 = vand.u32 2147483647, %v1760
    %vm1771 = vcmp.eq.f32.partialorder %v1770, 8.507059e+37
    %v1772 = vand.u32 %v1760, 2147483648
    %v1773 = vor.u32 1.1754944e-38, %v1772
    %v1774 = vsel %vm1771, %v1773, %v1769
    %v1775 = vmul.f32 1.0, %v1774
    %v1776 = vtanh.pop %v1756
    %v1777 = vmul.f32 %v1775, %v1724
    %1779 = vrot.lane.b32.xlu0 %v1776, 32
    %v1780 = vpop.permute.xlu0 %1779
    %v1782 = vmul.f32 %v1775, %v1780
    %1784 = vrot.lane.b32.xlu0 %v1782, 32
    %v1785 = vpop.permute.xlu0 %1784
    %v1787 = vadd.f32 %v1777, %v1785
    %v1788 = vtanh.pop %v1787
    %1790 = vrot.lane.b32.xlu0 %v1788, 32
    %v1791 = vpop.permute.xlu0 %1790
    %v1793 = vmul.f32 %v1775, %v1791
    %1795 = vrot.lane.b32.xlu0 %v1793, 64
    %v1796 = vpop.permute.xlu0 %1795
    %v1797 = vsel %vm158, %v1796, 0
    %1799 = vmatpush.msra.mxu0 0.0
    %1800 = vmatpush.msra.mxu0 0.0
    %1801 = vmatpush.msra.mxu0 0.0
    %1802 = vmatpush.msra.mxu0 0.0
    %1803 = vmatpush.msra.mxu0 0.0
    %1804 = vmatpush.msra.mxu0 0.0
    %1805 = vmatpush.msra.mxu0 0.0
    %1806 = vmatpush.msra.mxu0 0.0
    %1807 = vmatpush.msra.mxu0 0.0
    %1808 = vmatpush.msra.mxu0 0.0
    %1809 = vmatpush.msra.mxu0 0.0
    %1810 = vmatpush.msra.mxu0 0.0
    %1811 = vmatpush.msra.mxu0 %v1356
    %1812 = vmatpush.msra.mxu0 %v1355
    %1813 = vmatpush.msra.mxu0 %v1354
    %1814 = vmatpush.msra.mxu0 %v1353
    %1815 = vmatmul.f32.gmra.mxu0 %v1797
    %v1816 = vpop.f32.mrf.mxu0
    %v1817 = vadd.f32 0.0, %v1816
    %1818 = vdwg.mxu0
    %v1819 = vadd.f32 %v1419, %v1817
    %v1820 = vxor.u32 %v1819, 2147483648
    %v1821 = vmul.f32 %v1820, 1.442695
    %v1822 = vpow.pop %v1821
    %v1823 = vadd.f32 %v1822, 1.0
    %v1824 = vrcp.pop %v1823
    %v1825 = vmul.f32 %v1823, %v1824
    %v1826 = vsub.f32 1.0, %v1825
    %v1827 = vmul.f32 %v1824, %v1826
    %v1828 = vadd.f32 %v1824, %v1827
    %vm1829 = vweird.f32 %v1823
    %vm1830 = vweird.f32 %v1824
    %vm1831 = vmor %vm1829, %vm1830
    %v1832 = vsel %vm1831, %v1824, %v1828
    %v1833 = vand.u32 2147483647, %v1823
    %vm1834 = vcmp.eq.f32.partialorder %v1833, 8.507059e+37
    %v1835 = vand.u32 %v1823, 2147483648
    %v1836 = vor.u32 1.1754944e-38, %v1835
    %v1837 = vsel %vm1834, %v1836, %v1832
    %v1838 = vmul.f32 1.0, %v1837
    %v1839 = vtanh.pop %v1819
    %v1840 = vmul.f32 %v1838, %v1787
    %1842 = vrot.lane.b32.xlu0 %v1839, 32
    %v1843 = vpop.permute.xlu0 %1842
    %v1845 = vmul.f32 %v1838, %v1843
    %1847 = vrot.lane.b32.xlu0 %v1845, 32
    %v1848 = vpop.permute.xlu0 %1847
    %v1850 = vadd.f32 %v1840, %v1848
    %v1851 = vtanh.pop %v1850
    %1853 = vrot.lane.b32.xlu0 %v1851, 32
    %v1854 = vpop.permute.xlu0 %1853
    %v1856 = vmul.f32 %v1838, %v1854
    %v1857 = vld [vmem:[%s13] sm:$0xff]
    %v1858 = vld [vmem:[%s13 + $0x8] sm:$0xff]
    %v1859 = vld [vmem:[%s13 + $0x10] sm:$0xff]
    %v1860 = vld [vmem:[%s13 + $0x18] sm:$0xff]
    %v1861 = vld [vmem:[%s14] sm:$0xff]
    %v1862 = vld [vmem:[%s14 + $0x8] sm:$0xff]
    %v1863 = vld [vmem:[%s14 + $0x10] sm:$0xff]
    %v1864 = vld [vmem:[%s14 + $0x18] sm:$0xff]
    %v1865 = vld [vmem:[%s15] sm:$0x1]
    %v1867 = vperm.slane %v1865, 0
    %1869 = vmatpush.msra.mxu0 0.0
    %1870 = vmatpush.msra.mxu0 0.0
    %1871 = vmatpush.msra.mxu0 0.0
    %1872 = vmatpush.msra.mxu0 0.0
    %1873 = vmatpush.msra.mxu0 0.0
    %1874 = vmatpush.msra.mxu0 0.0
    %1875 = vmatpush.msra.mxu0 0.0
    %1876 = vmatpush.msra.mxu0 0.0
    %1877 = vmatpush.msra.mxu0 0.0
    %1878 = vmatpush.msra.mxu0 0.0
    %1879 = vmatpush.msra.mxu0 0.0
    %1880 = vmatpush.msra.mxu0 0.0
    %1881 = vmatpush.msra.mxu0 %v1860
    %1882 = vmatpush.msra.mxu0 %v1859
    %1883 = vmatpush.msra.mxu0 %v1858
    %1884 = vmatpush.msra.mxu0 %v1857
    %1885 = vmatmul.f32.gmra.mxu0 %v1482
    %v1886 = vpop.f32.mrf.mxu0
    %v1887 = vadd.f32 %v1867, %v1886
    %1888 = vdwg.mxu0
    %1890 = vrot.lane.b32.xlu0 %v1336, 64
    %v1891 = vpop.permute.xlu0 %1890
    %v1892 = vsel %vm158, %v1891, 0
    %1894 = vmatpush.msra.mxu0 0.0
    %1895 = vmatpush.msra.mxu0 0.0
    %1896 = vmatpush.msra.mxu0 0.0
    %1897 = vmatpush.msra.mxu0 0.0
    %1898 = vmatpush.msra.mxu0 0.0
    %1899 = vmatpush.msra.mxu0 0.0
    %1900 = vmatpush.msra.mxu0 0.0
    %1901 = vmatpush.msra.mxu0 0.0
    %1902 = vmatpush.msra.mxu0 0.0
    %1903 = vmatpush.msra.mxu0 0.0
    %1904 = vmatpush.msra.mxu0 0.0
    %1905 = vmatpush.msra.mxu0 0.0
    %1906 = vmatpush.msra.mxu0 %v1864
    %1907 = vmatpush.msra.mxu0 %v1863
    %1908 = vmatpush.msra.mxu0 %v1862
    %1909 = vmatpush.msra.mxu0 %v1861
    %1910 = vmatmul.f32.gmra.mxu0 %v1892
    %v1911 = vpop.f32.mrf.mxu0
    %v1912 = vadd.f32 0.0, %v1911
    %1913 = vdwg.mxu0
    %v1914 = vadd.f32 %v1887, %v1912
    %v1915 = vxor.u32 %v1914, 2147483648
    %v1916 = vmul.f32 %v1915, 1.442695
    %v1917 = vpow.pop %v1916
    %v1918 = vadd.f32 %v1917, 1.0
    %v1919 = vrcp.pop %v1918
    %v1920 = vmul.f32 %v1918, %v1919
    %v1921 = vsub.f32 1.0, %v1920
    %v1922 = vmul.f32 %v1919, %v1921
    %v1923 = vadd.f32 %v1919, %v1922
    %vm1924 = vweird.f32 %v1918
    %vm1925 = vweird.f32 %v1919
    %vm1926 = vmor %vm1924, %vm1925
    %v1927 = vsel %vm1926, %v1919, %v1923
    %v1928 = vand.u32 2147483647, %v1918
    %vm1929 = vcmp.eq.f32.partialorder %v1928, 8.507059e+37
    %v1930 = vand.u32 %v1918, 2147483648
    %v1931 = vor.u32 1.1754944e-38, %v1930
    %v1932 = vsel %vm1929, %v1931, %v1927
    %v1933 = vmul.f32 1.0, %v1932
    %v1934 = vtanh.pop %v1914
    %v1935 = vmul.f32 %v1933, %v1330
    %1937 = vrot.lane.b32.xlu0 %v1934, 32
    %v1938 = vpop.permute.xlu0 %1937
    %v1940 = vmul.f32 %v1933, %v1938
    %1942 = vrot.lane.b32.xlu0 %v1940, 32
    %v1943 = vpop.permute.xlu0 %1942
    %v1945 = vadd.f32 %v1935, %v1943
    %v1946 = vtanh.pop %v1945
    %1948 = vrot.lane.b32.xlu0 %v1946, 32
    %v1949 = vpop.permute.xlu0 %1948
    %v1951 = vmul.f32 %v1933, %v1949
    %1953 = vset.pattern.permute.xlu0 0
    %1954 = vperm.xlu0 %1953, %v1344
    %v1955 = vpop.permute.xlu0 %1954
    %v1957 = vmul.f32 %v1955, %v1951
    %v1958 = vadd.f32 %v1957, 0.0
    %1959 = vmatpush.msra.mxu0 0.0
    %1960 = vmatpush.msra.mxu0 0.0
    %1961 = vmatpush.msra.mxu0 0.0
    %1962 = vmatpush.msra.mxu0 0.0
    %1963 = vmatpush.msra.mxu0 0.0
    %1964 = vmatpush.msra.mxu0 0.0
    %1965 = vmatpush.msra.mxu0 0.0
    %1966 = vmatpush.msra.mxu0 0.0
    %1967 = vmatpush.msra.mxu0 0.0
    %1968 = vmatpush.msra.mxu0 0.0
    %1969 = vmatpush.msra.mxu0 0.0
    %1970 = vmatpush.msra.mxu0 0.0
    %1971 = vmatpush.msra.mxu0 %v1860
    %1972 = vmatpush.msra.mxu0 %v1859
    %1973 = vmatpush.msra.mxu0 %v1858
    %1974 = vmatpush.msra.mxu0 %v1857
    %1975 = vmatmul.f32.gmra.mxu0 %v1545
    %v1976 = vpop.f32.mrf.mxu0
    %v1977 = vadd.f32 %v1867, %v1976
    %1978 = vdwg.mxu0
    %1980 = vrot.lane.b32.xlu0 %v1951, 64
    %v1981 = vpop.permute.xlu0 %1980
    %v1982 = vsel %vm158, %v1981, 0
    %1984 = vmatpush.msra.mxu0 0.0
    %1985 = vmatpush.msra.mxu0 0.0
    %1986 = vmatpush.msra.mxu0 0.0
    %1987 = vmatpush.msra.mxu0 0.0
    %1988 = vmatpush.msra.mxu0 0.0
    %1989 = vmatpush.msra.mxu0 0.0
    %1990 = vmatpush.msra.mxu0 0.0
    %1991 = vmatpush.msra.mxu0 0.0
    %1992 = vmatpush.msra.mxu0 0.0
    %1993 = vmatpush.msra.mxu0 0.0
    %1994 = vmatpush.msra.mxu0 0.0
    %1995 = vmatpush.msra.mxu0 0.0
    %1996 = vmatpush.msra.mxu0 %v1864
    %1997 = vmatpush.msra.mxu0 %v1863
    %1998 = vmatpush.msra.mxu0 %v1862
    %1999 = vmatpush.msra.mxu0 %v1861
    %2000 = vmatmul.f32.gmra.mxu0 %v1982
    %v2001 = vpop.f32.mrf.mxu0
    %v2002 = vadd.f32 0.0, %v2001
    %2003 = vdwg.mxu0
    %v2004 = vadd.f32 %v1977, %v2002
    %v2005 = vxor.u32 %v2004, 2147483648
    %v2006 = vmul.f32 %v2005, 1.442695
    %v2007 = vpow.pop %v2006
    %v2008 = vadd.f32 %v2007, 1.0
    %v2009 = vrcp.pop %v2008
    %v2010 = vmul.f32 %v2008, %v2009
    %v2011 = vsub.f32 1.0, %v2010
    %v2012 = vmul.f32 %v2009, %v2011
    %v2013 = vadd.f32 %v2009, %v2012
    %vm2014 = vweird.f32 %v2008
    %vm2015 = vweird.f32 %v2009
    %vm2016 = vmor %vm2014, %vm2015
    %v2017 = vsel %vm2016, %v2009, %v2013
    %v2018 = vand.u32 2147483647, %v2008
    %vm2019 = vcmp.eq.f32.partialorder %v2018, 8.507059e+37
    %v2020 = vand.u32 %v2008, 2147483648
    %v2021 = vor.u32 1.1754944e-38, %v2020
    %v2022 = vsel %vm2019, %v2021, %v2017
    %v2023 = vmul.f32 1.0, %v2022
    %v2024 = vtanh.pop %v2004
    %v2025 = vmul.f32 %v2023, %v1945
    %2027 = vrot.lane.b32.xlu0 %v2024, 32
    %v2028 = vpop.permute.xlu0 %2027
    %v2030 = vmul.f32 %v2023, %v2028
    %2032 = vrot.lane.b32.xlu0 %v2030, 32
    %v2033 = vpop.permute.xlu0 %2032
    %v2035 = vadd.f32 %v2025, %v2033
    %v2036 = vtanh.pop %v2035
    %2038 = vrot.lane.b32.xlu0 %v2036, 32
    %v2039 = vpop.permute.xlu0 %2038
    %v2041 = vmul.f32 %v2023, %v2039
    %2043 = vset.pattern.permute.xlu0 0
    %2044 = vperm.xlu0 %2043, %v1345
    %v2045 = vpop.permute.xlu0 %2044
    %v2047 = vmul.f32 %v2045, %v2041
    %v2048 = vadd.f32 %v1958, %v2047
    %2049 = vmatpush.msra.mxu0 0.0
    %2050 = vmatpush.msra.mxu0 0.0
    %2051 = vmatpush.msra.mxu0 0.0
    %2052 = vmatpush.msra.mxu0 0.0
    %2053 = vmatpush.msra.mxu0 0.0
    %2054 = vmatpush.msra.mxu0 0.0
    %2055 = vmatpush.msra.mxu0 0.0
    %2056 = vmatpush.msra.mxu0 0.0
    %2057 = vmatpush.msra.mxu0 0.0
    %2058 = vmatpush.msra.mxu0 0.0
    %2059 = vmatpush.msra.mxu0 0.0
    %2060 = vmatpush.msra.mxu0 0.0
    %2061 = vmatpush.msra.mxu0 %v1860
    %2062 = vmatpush.msra.mxu0 %v1859
    %2063 = vmatpush.msra.mxu0 %v1858
    %2064 = vmatpush.msra.mxu0 %v1857
    %2065 = vmatmul.f32.gmra.mxu0 %v1608
    %v2066 = vpop.f32.mrf.mxu0
    %v2067 = vadd.f32 %v1867, %v2066
    %2068 = vdwg.mxu0
    %2070 = vrot.lane.b32.xlu0 %v2041, 64
    %v2071 = vpop.permute.xlu0 %2070
    %v2072 = vsel %vm158, %v2071, 0
    %2074 = vmatpush.msra.mxu0 0.0
    %2075 = vmatpush.msra.mxu0 0.0
    %2076 = vmatpush.msra.mxu0 0.0
    %2077 = vmatpush.msra.mxu0 0.0
    %2078 = vmatpush.msra.mxu0 0.0
    %2079 = vmatpush.msra.mxu0 0.0
    %2080 = vmatpush.msra.mxu0 0.0
    %2081 = vmatpush.msra.mxu0 0.0
    %2082 = vmatpush.msra.mxu0 0.0
    %2083 = vmatpush.msra.mxu0 0.0
    %2084 = vmatpush.msra.mxu0 0.0
    %2085 = vmatpush.msra.mxu0 0.0
    %2086 = vmatpush.msra.mxu0 %v1864
    %2087 = vmatpush.msra.mxu0 %v1863
    %2088 = vmatpush.msra.mxu0 %v1862
    %2089 = vmatpush.msra.mxu0 %v1861
    %2090 = vmatmul.f32.gmra.mxu0 %v2072
    %v2091 = vpop.f32.mrf.mxu0
    %v2092 = vadd.f32 0.0, %v2091
    %2093 = vdwg.mxu0
    %v2094 = vadd.f32 %v2067, %v2092
    %v2095 = vxor.u32 %v2094, 2147483648
    %v2096 = vmul.f32 %v2095, 1.442695
    %v2097 = vpow.pop %v2096
    %v2098 = vadd.f32 %v2097, 1.0
    %v2099 = vrcp.pop %v2098
    %v2100 = vmul.f32 %v2098, %v2099
    %v2101 = vsub.f32 1.0, %v2100
    %v2102 = vmul.f32 %v2099, %v2101
    %v2103 = vadd.f32 %v2099, %v2102
    %vm2104 = vweird.f32 %v2098
    %vm2105 = vweird.f32 %v2099
    %vm2106 = vmor %vm2104, %vm2105
    %v2107 = vsel %vm2106, %v2099, %v2103
    %v2108 = vand.u32 2147483647, %v2098
    %vm2109 = vcmp.eq.f32.partialorder %v2108, 8.507059e+37
    %v2110 = vand.u32 %v2098, 2147483648
    %v2111 = vor.u32 1.1754944e-38, %v2110
    %v2112 = vsel %vm2109, %v2111, %v2107
    %v2113 = vmul.f32 1.0, %v2112
    %v2114 = vtanh.pop %v2094
    %v2115 = vmul.f32 %v2113, %v2035
    %2117 = vrot.lane.b32.xlu0 %v2114, 32
    %v2118 = vpop.permute.xlu0 %2117
    %v2120 = vmul.f32 %v2113, %v2118
    %2122 = vrot.lane.b32.xlu0 %v2120, 32
    %v2123 = vpop.permute.xlu0 %2122
    %v2125 = vadd.f32 %v2115, %v2123
    %v2126 = vtanh.pop %v2125
    %2128 = vrot.lane.b32.xlu0 %v2126, 32
    %v2129 = vpop.permute.xlu0 %2128
    %v2131 = vmul.f32 %v2113, %v2129
    %2133 = vset.pattern.permute.xlu0 0
    %2134 = vperm.xlu0 %2133, %v1346
    %v2135 = vpop.permute.xlu0 %2134
    %v2137 = vmul.f32 %v2135, %v2131
    %v2138 = vadd.f32 %v2048, %v2137
    %2139 = vmatpush.msra.mxu0 0.0
    %2140 = vmatpush.msra.mxu0 0.0
    %2141 = vmatpush.msra.mxu0 0.0
    %2142 = vmatpush.msra.mxu0 0.0
    %2143 = vmatpush.msra.mxu0 0.0
    %2144 = vmatpush.msra.mxu0 0.0
    %2145 = vmatpush.msra.mxu0 0.0
    %2146 = vmatpush.msra.mxu0 0.0
    %2147 = vmatpush.msra.mxu0 0.0
    %2148 = vmatpush.msra.mxu0 0.0
    %2149 = vmatpush.msra.mxu0 0.0
    %2150 = vmatpush.msra.mxu0 0.0
    %2151 = vmatpush.msra.mxu0 %v1860
    %2152 = vmatpush.msra.mxu0 %v1859
    %2153 = vmatpush.msra.mxu0 %v1858
    %2154 = vmatpush.msra.mxu0 %v1857
    %2155 = vmatmul.f32.gmra.mxu0 %v1671
    %v2156 = vpop.f32.mrf.mxu0
    %v2157 = vadd.f32 %v1867, %v2156
    %2158 = vdwg.mxu0
    %2160 = vrot.lane.b32.xlu0 %v2131, 64
    %v2161 = vpop.permute.xlu0 %2160
    %v2162 = vsel %vm158, %v2161, 0
    %2164 = vmatpush.msra.mxu0 0.0
    %2165 = vmatpush.msra.mxu0 0.0
    %2166 = vmatpush.msra.mxu0 0.0
    %2167 = vmatpush.msra.mxu0 0.0
    %2168 = vmatpush.msra.mxu0 0.0
    %2169 = vmatpush.msra.mxu0 0.0
    %2170 = vmatpush.msra.mxu0 0.0
    %2171 = vmatpush.msra.mxu0 0.0
    %2172 = vmatpush.msra.mxu0 0.0
    %2173 = vmatpush.msra.mxu0 0.0
    %2174 = vmatpush.msra.mxu0 0.0
    %2175 = vmatpush.msra.mxu0 0.0
    %2176 = vmatpush.msra.mxu0 %v1864
    %2177 = vmatpush.msra.mxu0 %v1863
    %2178 = vmatpush.msra.mxu0 %v1862
    %2179 = vmatpush.msra.mxu0 %v1861
    %2180 = vmatmul.f32.gmra.mxu0 %v2162
    %v2181 = vpop.f32.mrf.mxu0
    %v2182 = vadd.f32 0.0, %v2181
    %2183 = vdwg.mxu0
    %v2184 = vadd.f32 %v2157, %v2182
    %v2185 = vxor.u32 %v2184, 2147483648
    %v2186 = vmul.f32 %v2185, 1.442695
    %v2187 = vpow.pop %v2186
    %v2188 = vadd.f32 %v2187, 1.0
    %v2189 = vrcp.pop %v2188
    %v2190 = vmul.f32 %v2188, %v2189
    %v2191 = vsub.f32 1.0, %v2190
    %v2192 = vmul.f32 %v2189, %v2191
    %v2193 = vadd.f32 %v2189, %v2192
    %vm2194 = vweird.f32 %v2188
    %vm2195 = vweird.f32 %v2189
    %vm2196 = vmor %vm2194, %vm2195
    %v2197 = vsel %vm2196, %v2189, %v2193
    %v2198 = vand.u32 2147483647, %v2188
    %vm2199 = vcmp.eq.f32.partialorder %v2198, 8.507059e+37
    %v2200 = vand.u32 %v2188, 2147483648
    %v2201 = vor.u32 1.1754944e-38, %v2200
    %v2202 = vsel %vm2199, %v2201, %v2197
    %v2203 = vmul.f32 1.0, %v2202
    %v2204 = vtanh.pop %v2184
    %v2205 = vmul.f32 %v2203, %v2125
    %2207 = vrot.lane.b32.xlu0 %v2204, 32
    %v2208 = vpop.permute.xlu0 %2207
    %v2210 = vmul.f32 %v2203, %v2208
    %2212 = vrot.lane.b32.xlu0 %v2210, 32
    %v2213 = vpop.permute.xlu0 %2212
    %v2215 = vadd.f32 %v2205, %v2213
    %v2216 = vtanh.pop %v2215
    %2218 = vrot.lane.b32.xlu0 %v2216, 32
    %v2219 = vpop.permute.xlu0 %2218
    %v2221 = vmul.f32 %v2203, %v2219
    %2223 = vset.pattern.permute.xlu0 0
    %2224 = vperm.xlu0 %2223, %v1347
    %v2225 = vpop.permute.xlu0 %2224
    %v2227 = vmul.f32 %v2225, %v2221
    %v2228 = vadd.f32 %v2138, %v2227
    %2229 = vmatpush.msra.mxu0 0.0
    %2230 = vmatpush.msra.mxu0 0.0
    %2231 = vmatpush.msra.mxu0 0.0
    %2232 = vmatpush.msra.mxu0 0.0
    %2233 = vmatpush.msra.mxu0 0.0
    %2234 = vmatpush.msra.mxu0 0.0
    %2235 = vmatpush.msra.mxu0 0.0
    %2236 = vmatpush.msra.mxu0 0.0
    %2237 = vmatpush.msra.mxu0 0.0
    %2238 = vmatpush.msra.mxu0 0.0
    %2239 = vmatpush.msra.mxu0 0.0
    %2240 = vmatpush.msra.mxu0 0.0
    %2241 = vmatpush.msra.mxu0 %v1860
    %2242 = vmatpush.msra.mxu0 %v1859
    %2243 = vmatpush.msra.mxu0 %v1858
    %2244 = vmatpush.msra.mxu0 %v1857
    %2245 = vmatmul.f32.gmra.mxu0 %v1734
    %v2246 = vpop.f32.mrf.mxu0
    %v2247 = vadd.f32 %v1867, %v2246
    %2248 = vdwg.mxu0
    %2250 = vrot.lane.b32.xlu0 %v2221, 64
    %v2251 = vpop.permute.xlu0 %2250
    %v2252 = vsel %vm158, %v2251, 0
    %2254 = vmatpush.msra.mxu0 0.0
    %2255 = vmatpush.msra.mxu0 0.0
    %2256 = vmatpush.msra.mxu0 0.0
    %2257 = vmatpush.msra.mxu0 0.0
    %2258 = vmatpush.msra.mxu0 0.0
    %2259 = vmatpush.msra.mxu0 0.0
    %2260 = vmatpush.msra.mxu0 0.0
    %2261 = vmatpush.msra.mxu0 0.0
    %2262 = vmatpush.msra.mxu0 0.0
    %2263 = vmatpush.msra.mxu0 0.0
    %2264 = vmatpush.msra.mxu0 0.0
    %2265 = vmatpush.msra.mxu0 0.0
    %2266 = vmatpush.msra.mxu0 %v1864
    %2267 = vmatpush.msra.mxu0 %v1863
    %2268 = vmatpush.msra.mxu0 %v1862
    %2269 = vmatpush.msra.mxu0 %v1861
    %2270 = vmatmul.f32.gmra.mxu0 %v2252
    %v2271 = vpop.f32.mrf.mxu0
    %v2272 = vadd.f32 0.0, %v2271
    %2273 = vdwg.mxu0
    %v2274 = vadd.f32 %v2247, %v2272
    %v2275 = vxor.u32 %v2274, 2147483648
    %v2276 = vmul.f32 %v2275, 1.442695
    %v2277 = vpow.pop %v2276
    %v2278 = vadd.f32 %v2277, 1.0
    %v2279 = vrcp.pop %v2278
    %v2280 = vmul.f32 %v2278, %v2279
    %v2281 = vsub.f32 1.0, %v2280
    %v2282 = vmul.f32 %v2279, %v2281
    %v2283 = vadd.f32 %v2279, %v2282
    %vm2284 = vweird.f32 %v2278
    %vm2285 = vweird.f32 %v2279
    %vm2286 = vmor %vm2284, %vm2285
    %v2287 = vsel %vm2286, %v2279, %v2283
    %v2288 = vand.u32 2147483647, %v2278
    %vm2289 = vcmp.eq.f32.partialorder %v2288, 8.507059e+37
    %v2290 = vand.u32 %v2278, 2147483648
    %v2291 = vor.u32 1.1754944e-38, %v2290
    %v2292 = vsel %vm2289, %v2291, %v2287
    %v2293 = vmul.f32 1.0, %v2292
    %v2294 = vtanh.pop %v2274
    %v2295 = vmul.f32 %v2293, %v2215
    %2297 = vrot.lane.b32.xlu0 %v2294, 32
    %v2298 = vpop.permute.xlu0 %2297
    %v2300 = vmul.f32 %v2293, %v2298
    %2302 = vrot.lane.b32.xlu0 %v2300, 32
    %v2303 = vpop.permute.xlu0 %2302
    %v2305 = vadd.f32 %v2295, %v2303
    %v2306 = vtanh.pop %v2305
    %2308 = vrot.lane.b32.xlu0 %v2306, 32
    %v2309 = vpop.permute.xlu0 %2308
    %v2311 = vmul.f32 %v2293, %v2309
    %2313 = vset.pattern.permute.xlu0 0
    %2314 = vperm.xlu0 %2313, %v1348
    %v2315 = vpop.permute.xlu0 %2314
    %v2317 = vmul.f32 %v2315, %v2311
    %v2318 = vadd.f32 %v2228, %v2317
    %2319 = vmatpush.msra.mxu0 0.0
    %2320 = vmatpush.msra.mxu0 0.0
    %2321 = vmatpush.msra.mxu0 0.0
    %2322 = vmatpush.msra.mxu0 0.0
    %2323 = vmatpush.msra.mxu0 0.0
    %2324 = vmatpush.msra.mxu0 0.0
    %2325 = vmatpush.msra.mxu0 0.0
    %2326 = vmatpush.msra.mxu0 0.0
    %2327 = vmatpush.msra.mxu0 0.0
    %2328 = vmatpush.msra.mxu0 0.0
    %2329 = vmatpush.msra.mxu0 0.0
    %2330 = vmatpush.msra.mxu0 0.0
    %2331 = vmatpush.msra.mxu0 %v1860
    %2332 = vmatpush.msra.mxu0 %v1859
    %2333 = vmatpush.msra.mxu0 %v1858
    %2334 = vmatpush.msra.mxu0 %v1857
    %2335 = vmatmul.f32.gmra.mxu0 %v1797
    %v2336 = vpop.f32.mrf.mxu0
    %v2337 = vadd.f32 %v1867, %v2336
    %2338 = vdwg.mxu0
    %2340 = vrot.lane.b32.xlu0 %v2311, 64
    %v2341 = vpop.permute.xlu0 %2340
    %v2342 = vsel %vm158, %v2341, 0
    %2344 = vmatpush.msra.mxu0 0.0
    %2345 = vmatpush.msra.mxu0 0.0
    %2346 = vmatpush.msra.mxu0 0.0
    %2347 = vmatpush.msra.mxu0 0.0
    %2348 = vmatpush.msra.mxu0 0.0
    %2349 = vmatpush.msra.mxu0 0.0
    %2350 = vmatpush.msra.mxu0 0.0
    %2351 = vmatpush.msra.mxu0 0.0
    %2352 = vmatpush.msra.mxu0 0.0
    %2353 = vmatpush.msra.mxu0 0.0
    %2354 = vmatpush.msra.mxu0 0.0
    %2355 = vmatpush.msra.mxu0 0.0
    %2356 = vmatpush.msra.mxu0 %v1864
    %2357 = vmatpush.msra.mxu0 %v1863
    %2358 = vmatpush.msra.mxu0 %v1862
    %2359 = vmatpush.msra.mxu0 %v1861
    %2360 = vmatmul.f32.gmra.mxu0 %v2342
    %v2361 = vpop.f32.mrf.mxu0
    %v2362 = vadd.f32 0.0, %v2361
    %2363 = vdwg.mxu0
    %v2364 = vadd.f32 %v2337, %v2362
    %v2365 = vxor.u32 %v2364, 2147483648
    %v2366 = vmul.f32 %v2365, 1.442695
    %v2367 = vpow.pop %v2366
    %v2368 = vadd.f32 %v2367, 1.0
    %v2369 = vrcp.pop %v2368
    %v2370 = vmul.f32 %v2368, %v2369
    %v2371 = vsub.f32 1.0, %v2370
    %v2372 = vmul.f32 %v2369, %v2371
    %v2373 = vadd.f32 %v2369, %v2372
    %vm2374 = vweird.f32 %v2368
    %vm2375 = vweird.f32 %v2369
    %vm2376 = vmor %vm2374, %vm2375
    %v2377 = vsel %vm2376, %v2369, %v2373
    %v2378 = vand.u32 2147483647, %v2368
    %vm2379 = vcmp.eq.f32.partialorder %v2378, 8.507059e+37
    %v2380 = vand.u32 %v2368, 2147483648
    %v2381 = vor.u32 1.1754944e-38, %v2380
    %v2382 = vsel %vm2379, %v2381, %v2377
    %v2383 = vmul.f32 1.0, %v2382
    %v2384 = vtanh.pop %v2364
    %v2385 = vmul.f32 %v2383, %v2305
    %2387 = vrot.lane.b32.xlu0 %v2384, 32
    %v2388 = vpop.permute.xlu0 %2387
    %v2390 = vmul.f32 %v2383, %v2388
    %2392 = vrot.lane.b32.xlu0 %v2390, 32
    %v2393 = vpop.permute.xlu0 %2392
    %v2395 = vadd.f32 %v2385, %v2393
    %v2396 = vtanh.pop %v2395
    %2398 = vrot.lane.b32.xlu0 %v2396, 32
    %v2399 = vpop.permute.xlu0 %2398
    %v2401 = vmul.f32 %v2383, %v2399
    %2403 = vset.pattern.permute.xlu0 0
    %2404 = vperm.xlu0 %2403, %v1349
    %v2405 = vpop.permute.xlu0 %2404
    %v2407 = vmul.f32 %v2405, %v2401
    %v2408 = vadd.f32 %v2318, %v2407
    %2410 = vrot.lane.b32.xlu0 %v1856, 64
    %v2411 = vpop.permute.xlu0 %2410
    %v2412 = vsel %vm158, %v2411, 0
    %2414 = vmatpush.msra.mxu0 0.0
    %2415 = vmatpush.msra.mxu0 0.0
    %2416 = vmatpush.msra.mxu0 0.0
    %2417 = vmatpush.msra.mxu0 0.0
    %2418 = vmatpush.msra.mxu0 0.0
    %2419 = vmatpush.msra.mxu0 0.0
    %2420 = vmatpush.msra.mxu0 0.0
    %2421 = vmatpush.msra.mxu0 0.0
    %2422 = vmatpush.msra.mxu0 0.0
    %2423 = vmatpush.msra.mxu0 0.0
    %2424 = vmatpush.msra.mxu0 0.0
    %2425 = vmatpush.msra.mxu0 0.0
    %2426 = vmatpush.msra.mxu0 %v1860
    %2427 = vmatpush.msra.mxu0 %v1859
    %2428 = vmatpush.msra.mxu0 %v1858
    %2429 = vmatpush.msra.mxu0 %v1857
    %2430 = vmatmul.f32.gmra.mxu0 %v2412
    %v2431 = vpop.f32.mrf.mxu0
    %v2432 = vadd.f32 %v1867, %v2431
    %2433 = vdwg.mxu0
    %2435 = vrot.lane.b32.xlu0 %v2401, 64
    %v2436 = vpop.permute.xlu0 %2435
    %v2437 = vsel %vm158, %v2436, 0
    %2439 = vmatpush.msra.mxu0 0.0
    %2440 = vmatpush.msra.mxu0 0.0
    %2441 = vmatpush.msra.mxu0 0.0
    %2442 = vmatpush.msra.mxu0 0.0
    %2443 = vmatpush.msra.mxu0 0.0
    %2444 = vmatpush.msra.mxu0 0.0
    %2445 = vmatpush.msra.mxu0 0.0
    %2446 = vmatpush.msra.mxu0 0.0
    %2447 = vmatpush.msra.mxu0 0.0
    %2448 = vmatpush.msra.mxu0 0.0
    %2449 = vmatpush.msra.mxu0 0.0
    %2450 = vmatpush.msra.mxu0 0.0
    %2451 = vmatpush.msra.mxu0 %v1864
    %2452 = vmatpush.msra.mxu0 %v1863
    %2453 = vmatpush.msra.mxu0 %v1862
    %2454 = vmatpush.msra.mxu0 %v1861
    %2455 = vmatmul.f32.gmra.mxu0 %v2437
    %v2456 = vpop.f32.mrf.mxu0
    %v2457 = vadd.f32 0.0, %v2456
    %2458 = vdwg.mxu0
    %v2459 = vadd.f32 %v2432, %v2457
    %v2460 = vxor.u32 %v2459, 2147483648
    %v2461 = vmul.f32 %v2460, 1.442695
    %v2462 = vpow.pop %v2461
    %v2463 = vadd.f32 %v2462, 1.0
    %v2464 = vrcp.pop %v2463
    %v2465 = vmul.f32 %v2463, %v2464
    %v2466 = vsub.f32 1.0, %v2465
    %v2467 = vmul.f32 %v2464, %v2466
    %v2468 = vadd.f32 %v2464, %v2467
    %vm2469 = vweird.f32 %v2463
    %vm2470 = vweird.f32 %v2464
    %vm2471 = vmor %vm2469, %vm2470
    %v2472 = vsel %vm2471, %v2464, %v2468
    %v2473 = vand.u32 2147483647, %v2463
    %vm2474 = vcmp.eq.f32.partialorder %v2473, 8.507059e+37
    %v2475 = vand.u32 %v2463, 2147483648
    %v2476 = vor.u32 1.1754944e-38, %v2475
    %v2477 = vsel %vm2474, %v2476, %v2472
    %v2478 = vmul.f32 1.0, %v2477
    %v2479 = vtanh.pop %v2459
    %v2480 = vmul.f32 %v2478, %v2395
    %2482 = vrot.lane.b32.xlu0 %v2479, 32
    %v2483 = vpop.permute.xlu0 %2482
    %v2485 = vmul.f32 %v2478, %v2483
    %2487 = vrot.lane.b32.xlu0 %v2485, 32
    %v2488 = vpop.permute.xlu0 %2487
    %v2490 = vadd.f32 %v2480, %v2488
    %v2491 = vtanh.pop %v2490
    %2493 = vrot.lane.b32.xlu0 %v2491, 32
    %v2494 = vpop.permute.xlu0 %2493
    %v2496 = vmul.f32 %v2478, %v2494
    %2498 = vset.pattern.permute.xlu0 0
    %2499 = vperm.xlu0 %2498, %v1350
    %v2500 = vpop.permute.xlu0 %2499
    %v2502 = vmul.f32 %v2500, %v2496
    %v2503 = vadd.f32 %v2408, %v2502
    %v2504 = vld [vmem:[%s16] sm:$0xff]
    %v2505 = vld [vmem:[%s16 + $0x8] sm:$0xff]
    %v2506 = vld [vmem:[%s16 + $0x10] sm:$0xff]
    %v2507 = vld [vmem:[%s16 + $0x18] sm:$0xff]
    %v2508 = vld [vmem:[%s16 + $0x20] sm:$0xff]
    %v2509 = vld [vmem:[%s16 + $0x28] sm:$0xff]
    %v2510 = vld [vmem:[%s16 + $0x30] sm:$0xff]
    %v2511 = vld [vmem:[%s16 + $0x38] sm:$0xff]
    %v2512 = vld [vmem:[%s17] sm:$0x3]
    %v2514 = vperm.slane %v2512, 0
    %v2515 = vperm.slane %v2512, 1
    %2519 = vrot.lane.b32.xlu0 %v2503, 64
    %v2520 = vpop.permute.xlu0 %2519
    %v2521 = vsel %vm158, %v2520, 0
    %2523 = vmatpush.msra.mxu0 0.0
    %2524 = vmatpush.msra.mxu0 0.0
    %2525 = vmatpush.msra.mxu0 0.0
    %2526 = vmatpush.msra.mxu0 0.0
    %2527 = vmatpush.msra.mxu0 0.0
    %2528 = vmatpush.msra.mxu0 0.0
    %2529 = vmatpush.msra.mxu0 0.0
    %2530 = vmatpush.msra.mxu0 0.0
    %2531 = vmatpush.msra.mxu0 0.0
    %2532 = vmatpush.msra.mxu0 0.0
    %2533 = vmatpush.msra.mxu0 0.0
    %2534 = vmatpush.msra.mxu0 0.0
    %2535 = vmatpush.msra.mxu0 %v2510
    %2536 = vmatpush.msra.mxu0 %v2508
    %2537 = vmatpush.msra.mxu0 %v2506
    %2538 = vmatpush.msra.mxu0 %v2504
    %2539 = vmatmul.f32.gmra.mxu0 %v2521
    %v2540 = vpop.f32.mrf.mxu0
    %v2541 = vadd.f32 %v2514, %v2540
    %2542 = vdwg.mxu0
    %2543 = vmatpush.msra.mxu0 0.0
    %2544 = vmatpush.msra.mxu0 0.0
    %2545 = vmatpush.msra.mxu0 0.0
    %2546 = vmatpush.msra.mxu0 0.0
    %2547 = vmatpush.msra.mxu0 0.0
    %2548 = vmatpush.msra.mxu0 0.0
    %2549 = vmatpush.msra.mxu0 0.0
    %2550 = vmatpush.msra.mxu0 0.0
    %2551 = vmatpush.msra.mxu0 0.0
    %2552 = vmatpush.msra.mxu0 0.0
    %2553 = vmatpush.msra.mxu0 0.0
    %2554 = vmatpush.msra.mxu0 0.0
    %2555 = vmatpush.msra.mxu0 %v2511
    %2556 = vmatpush.msra.mxu0 %v2509
    %2557 = vmatpush.msra.mxu0 %v2507
    %2558 = vmatpush.msra.mxu0 %v2505
    %2559 = vmatmul.f32.gmra.mxu0 %v2521
    %v2560 = vpop.f32.mrf.mxu0
    %v2561 = vadd.f32 %v2515, %v2560
    %2562 = vdwg.mxu0
    %v2563 = vld [vmem:[%s18] sm:$0xff]
    %v2564 = vld [vmem:[%s18 + $0x8] sm:$0xff]
    %v2565 = vld [vmem:[%s18 + $0x10] sm:$0xff]
    %v2566 = vld [vmem:[%s18 + $0x18] sm:$0xff]
    %v2567 = vld [vmem:[%s18 + $0x20] sm:$0xff]
    %v2568 = vld [vmem:[%s18 + $0x28] sm:$0xff]
    %v2569 = vld [vmem:[%s18 + $0x30] sm:$0xff]
    %v2570 = vld [vmem:[%s18 + $0x38] sm:$0xff]
    %v2571 = vld [vmem:[%s18 + $0x40] sm:$0xff]
    %v2572 = vld [vmem:[%s18 + $0x48] sm:$0xff]
    %v2573 = vld [vmem:[%s18 + $0x50] sm:$0xff]
    %v2574 = vld [vmem:[%s18 + $0x58] sm:$0xff]
    %v2575 = vld [vmem:[%s18 + $0x60] sm:$0xff]
    %v2576 = vld [vmem:[%s18 + $0x68] sm:$0xff]
    %v2577 = vld [vmem:[%s18 + $0x70] sm:$0xff]
    %v2578 = vld [vmem:[%s18 + $0x78] sm:$0xff]
    %v2579 = vld [vmem:[%s18 + $0x80] sm:$0xff]
    %v2580 = vld [vmem:[%s18 + $0x88] sm:$0xff]
    %v2581 = vld [vmem:[%s18 + $0x90] sm:$0xff]
    %v2582 = vld [vmem:[%s18 + $0x98] sm:$0xff]
    %v2583 = vld [vmem:[%s19] sm:$0x1]
    %v2585 = vperm.slane %v2583, 0
    %v2588 = vsel %vm158, %v2561, 0
    %2590 = vmatpush.msra.mxu0 %v2578
    %2591 = vmatpush.msra.mxu0 %v2577
    %2592 = vmatpush.msra.mxu0 %v2576
    %2593 = vmatpush.msra.mxu0 %v2575
    %2594 = vmatpush.msra.mxu0 %v2574
    %2595 = vmatpush.msra.mxu0 %v2573
    %2596 = vmatpush.msra.mxu0 %v2572
    %2597 = vmatpush.msra.mxu0 %v2571
    %2598 = vmatpush.msra.mxu0 %v2570
    %2599 = vmatpush.msra.mxu0 %v2569
    %2600 = vmatpush.msra.mxu0 %v2568
    %2601 = vmatpush.msra.mxu0 %v2567
    %2602 = vmatpush.msra.mxu0 %v2566
    %2603 = vmatpush.msra.mxu0 %v2565
    %2604 = vmatpush.msra.mxu0 %v2564
    %2605 = vmatpush.msra.mxu0 %v2563
    %2606 = vmatmul.f32.gmra.mxu0 %v2541
    %v2607 = vpop.f32.mrf.mxu0
    %v2608 = vadd.f32 %v2585, %v2607
    %2609 = vdwg.mxu0
    %2610 = vmatpush.msra.mxu0 0.0
    %2611 = vmatpush.msra.mxu0 0.0
    %2612 = vmatpush.msra.mxu0 0.0
    %2613 = vmatpush.msra.mxu0 0.0
    %2614 = vmatpush.msra.mxu0 0.0
    %2615 = vmatpush.msra.mxu0 0.0
    %2616 = vmatpush.msra.mxu0 0.0
    %2617 = vmatpush.msra.mxu0 0.0
    %2618 = vmatpush.msra.mxu0 0.0
    %2619 = vmatpush.msra.mxu0 0.0
    %2620 = vmatpush.msra.mxu0 0.0
    %2621 = vmatpush.msra.mxu0 0.0
    %2622 = vmatpush.msra.mxu0 %v2582
    %2623 = vmatpush.msra.mxu0 %v2581
    %2624 = vmatpush.msra.mxu0 %v2580
    %2625 = vmatpush.msra.mxu0 %v2579
    %2626 = vmatmul.f32.gmra.mxu0 %v2588
    %v2627 = vpop.f32.mrf.mxu0
    %v2628 = vadd.f32 %v2608, %v2627
    %2629 = vdwg.mxu0
    %v2630 = vld [vmem:[%s20] sm:$0xff]
    %v2631 = vld [vmem:[%s20 + $0x8] sm:$0xff]
    %v2632 = vld [vmem:[%s20 + $0x10] sm:$0xff]
    %v2633 = vld [vmem:[%s20 + $0x18] sm:$0xff]
    %v2634 = vld [vmem:[%s20 + $0x20] sm:$0xff]
    %v2635 = vld [vmem:[%s20 + $0x28] sm:$0xff]
    %v2636 = vld [vmem:[%s20 + $0x30] sm:$0xff]
    %v2637 = vld [vmem:[%s20 + $0x38] sm:$0xff]
    %v2638 = vld [vmem:[%s21] sm:$0x1]
    %v2640 = vperm.slane %v2638, 0
    %vm2642 = vcmask 523264
    %v2644 = vsel %vm2642, %v2628, 0
    %2646 = vmatpush.msra.mxu0 0.0
    %2647 = vmatpush.msra.mxu0 0.0
    %2648 = vmatpush.msra.mxu0 0.0
    %2649 = vmatpush.msra.mxu0 0.0
    %2650 = vmatpush.msra.mxu0 0.0
    %2651 = vmatpush.msra.mxu0 0.0
    %2652 = vmatpush.msra.mxu0 0.0
    %2653 = vmatpush.msra.mxu0 0.0
    %2654 = vmatpush.msra.mxu0 %v2637
    %2655 = vmatpush.msra.mxu0 %v2636
    %2656 = vmatpush.msra.mxu0 %v2635
    %2657 = vmatpush.msra.mxu0 %v2634
    %2658 = vmatpush.msra.mxu0 %v2633
    %2659 = vmatpush.msra.mxu0 %v2632
    %2660 = vmatpush.msra.mxu0 %v2631
    %2661 = vmatpush.msra.mxu0 %v2630
    %2662 = vmatmul.f32.gmra.mxu0 %v2644
    %v2663 = vpop.f32.mrf.mxu0
    %v2664 = vadd.f32 %v2640, %v2663
    %2665 = vdwg.mxu0
    %vm2666 = vcmask 97280
    %v2667 = vsel %vm2666, %v2664, -inf
    %2668 = vmax.xlane.f32.xlu0 %v2667
    %v2669 = vpop.xlane.xlu0 %2668
    %v2670 = vsub.f32 %v2664, %v2669
    %v2671 = vmul.f32 %v2670, 1.442695
    %v2672 = vpow.pop %v2671
    %v2673 = vsel %vm2666, %v2672, 0.0
    %2674 = vadd.xlane.f32.xlu0 %v2673
    %v2675 = vpop.xlane.xlu0 %2674
    %v2676 = vrcp.pop %v2675
    %v2677 = vmul.f32 %v2672, %v2676
    %v2678 = vsel %vm2666, %v2677, -inf
    %2679 = vmax.xlane.f32.xlu0 %v2678
    %v2680 = vpop.xlane.xlu0 %2679
    %v2681 = vsub.f32 %v2677, %v2680
    %v2682 = vmul.f32 %v2681, 1.442695
    %v2683 = vpow.pop %v2682
    %v2684 = vsel %vm2666, %v2683, 0.0
    %2685 = vadd.xlane.f32.xlu0 %v2684
    %v2686 = vpop.xlane.xlu0 %2685
    %v2687 = vlog2.pop %v2686
    %v2688 = vmul.f32 %v2687, 0.6931472
    %v2689 = vadd.f32 %v2688, %v2680
    %v2690 = vld [vmem:[%s22] sm:$0x1]
    %v2692 = vperm.slane %v2690, 0
    %v2694 = vmul.f32 %v2677, %v2692
    %v2695 = vsel %vm2666, %v2694, 0.0
    %2696 = vadd.xlane.f32.xlu0 %v2695
    %v2697 = vpop.xlane.xlu0 %2696
    %v2698 = vsub.f32 %v2689, %v2697
    %v2699 = vld [vmem:[%s3] sm:$0xff]
    %v2700 = vmul.f32 %v2698, %v2699
    %vm2701 = vcmask 7168
    %v2702 = vsel %vm2701, %v2700, 0.0
    %v2703 = vrot.slane %v2702, 4
    %v2704 = vadd.f32 %v2702, %v2703
    %v2705 = vrot.slane %v2704, 2
    %v2706 = vadd.f32 %v2704, %v2705
    %v2707 = vrot.slane %v2706, 1
    %v2708 = vadd.f32 %v2706, %v2707
    %vm2709 = vcmask 0
    %2710 = vst.msk [vmem:[#allocation2] sm:$0x1] %vm2709, %v2708
    // Predicated region
    $region94: #{forward_pallas.1} parent=1 // pred_check
      _
    $region95: #{forward_pallas.1} parent=1 // pred_check_branch
      %2712 = sbr.rel (0) target = $region97
    $region96: #{forward_pallas.1} parent=1 // pred_region
      %2714 = vsyncadd [#allocation3], 0
      %s2716 = sshll.u32 [#allocation2], 4
      %s2717 = int_to_ptr.vmem [resolvable:$true] %s2716
      %s2718 = sshll.u32 %s23, 4
      %s2719 = int_to_ptr.hbm [resolvable:$true] %s2718
      %2721 = dma.vmem_to_hbm [thread:$0]  %s2717, 16, %s2719, [#allocation3]
    $region97: #{forward_pallas.1} parent=1 // pred_fallthru
      _
    // Predicated region
    $region98: #{forward_pallas.1} parent=1 // pred_check
      _
    $region99: #{forward_pallas.1} parent=1 // pred_check_branch
      %2723 = sbr.rel (0) target = $region101
    $region100: #{forward_pallas.1} parent=1 // pred_region
      %2725 = dma.done [#allocation3], 16
    $region101: #{forward_pallas.1} parent=1 // pred_fallthru
      _
    %2726 = vsyncpa [#allocation3], 1

</llo_original>
